<compile_context>
chip_gen: v6e
topology: v6e:2x2x1
jax: 0.10.0
libtpu: 0.0.40
codegen_flags: <defaults>
</compile_context>

<pallas_src>
import functools

import jax
import jax.numpy as jnp
from jax.experimental import pallas as pl
from jax.experimental.pallas import tpu as pltpu


# ----------------------------------------------------------------------------
# Fused forward kernel (one batch tile of TB images per grid step)
# ----------------------------------------------------------------------------
def _testnet_kernel(x_ref, t1_ref, b1_ref, p1_ref, w2t_ref, b2_ref, p2_ref,
                    wfc1_ref, bfc1_ref, wfc2_ref, bfc2_ref,
                    feat_ref, logits_ref):
    TB = x_ref.shape[1]
    f32 = jnp.float32
    bf16 = jnp.bfloat16

    # ---- conv1 (5x5, 1->16): 5 MXU matmuls, width-Toeplitz over dx --------
    # rows=(b,i), lanes=(c1*24 + j); 0.25 of pool1 already folded into t1/b1.
    xb = x_ref[0].astype(bf16)                                  # (TB,28,28)
    acc1 = jnp.zeros((TB * 24, 384), f32)
    for dy in range(5):
        lhs = xb[:, dy:dy + 24, :].reshape(TB * 24, 28)
        acc1 = acc1 + jnp.dot(lhs, t1_ref[dy], preferred_element_type=f32)
    y1 = jnp.maximum(acc1 + b1_ref[...], 0.0)                   # (TB*24,384)

    # ---- pool1 (2x2 avg): rows via pairwise add, lanes via 0/1 matmul -----
    y1p = y1.reshape(TB * 12, 2, 384)
    y1 = y1p[:, 0, :] + y1p[:, 1, :]                            # (TB*12,384)
    pooled1 = jnp.dot(y1, p1_ref[...], preferred_element_type=f32)   # (TB*12,192)
    pooled1 = pooled1.reshape(TB, 12, 192).astype(bf16)

    # ---- conv2 (5x5, 16->32): 5 MXU matmuls with K=192 --------------------
    # rows=(b,p), lanes=(c2*8 + q); 0.25 of pool2 folded into w2t/b2.
    acc2 = jnp.zeros((TB * 8, 256), f32)
    for dy in range(5):
        lhs2 = pooled1[:, dy:dy + 8, :].reshape(TB * 8, 192)
        acc2 = acc2 + jnp.dot(lhs2, w2t_ref[dy], preferred_element_type=f32)
    y2 = jnp.maximum(acc2 + b2_ref[...], 0.0)                   # (TB*8,256)

    # ---- pool2 + NCHW flatten --------------------------------------------
    y2p = y2.reshape(TB * 4, 2, 256)
    y2 = (y2p[:, 0, :] + y2p[:, 1, :]).reshape(TB, 4, 256)      # rows=(b,pp)
    feat = jnp.zeros((TB, 512), f32)
    for pp in range(4):                                         # q-pool + scatter to
        feat = feat + jnp.dot(y2[:, pp, :], p2_ref[pp],         # lanes c*16+pp*4+qp
                              preferred_element_type=f32)
    feat_ref[0, :, :] = feat                                    # NCHW-flat, lane-dense

    # ---- fc1 + ReLU, (dropout = eval identity), fc2 (padded to 128 lanes) -
    h = jnp.dot(feat.astype(bf16), wfc1_ref[...],
                preferred_element_type=f32) + bfc1_ref[...]
    h = jnp.maximum(h, 0.0)
    # TODO(synk): Dropout(p=0.5) implemented as inference-mode identity; a
    # training-mode mask would use pltpu.prng_seed / pltpu.prng_random_bits.
    logits_ref[0, :, :] = jnp.dot(h.astype(bf16), wfc2_ref[...],
                                  preferred_element_type=f32) + bfc2_ref[...]


def _fused_forward_call(xb, pk):
    nb, TB = xb.shape[0], xb.shape[1]
    flops = 2 * nb * TB * (5 * 24 * 28 * 384 + 12 * 384 * 192 +
                           5 * 8 * 192 * 256 + 4 * 256 * 512 +
                           512 * 512 + 512 * 128)
    w_bytes = sum(int(v.size) * v.dtype.itemsize for v in pk.values())
    bytes_accessed = int(xb.size) * 4 + w_bytes + nb * TB * (512 + 128) * 4

    feat, logits = pl.pallas_call(
        _testnet_kernel,
        grid=(nb,),
        in_specs=[
            pl.BlockSpec((1, TB, 28, 28), lambda i: (i, 0, 0, 0)),   # x tile
            pl.BlockSpec((5, 28, 384), lambda i: (0, 0, 0)),         # conv1 Toeplitz
            pl.BlockSpec((1, 384), lambda i: (0, 0)),                # conv1 bias
            pl.BlockSpec((384, 192), lambda i: (0, 0)),              # pool1 lane matrix
            pl.BlockSpec((5, 192, 256), lambda i: (0, 0, 0)),        # conv2 Toeplitz
            pl.BlockSpec((1, 256), lambda i: (0, 0)),                # conv2 bias
            pl.BlockSpec((4, 256, 512), lambda i: (0, 0, 0)),        # pool2+NCHW scatter
            pl.BlockSpec((512, 512), lambda i: (0, 0)),              # fc1 weight
            pl.BlockSpec((1, 512), lambda i: (0, 0)),                # fc1 bias
            pl.BlockSpec((512, 128), lambda i: (0, 0)),              # fc2 weight (padded)
            pl.BlockSpec((1, 128), lambda i: (0, 0)),                # fc2 bias  (padded)
        ],
        out_specs=(
            pl.BlockSpec((1, TB, 512), lambda i: (i, 0, 0)),
            pl.BlockSpec((1, TB, 128), lambda i: (i, 0, 0)),
        ),
        out_shape=(
            jax.ShapeDtypeStruct((nb, TB, 512), jnp.float32),
            jax.ShapeDtypeStruct((nb, TB, 128), jnp.float32),
        ),
        compiler_params=pltpu.CompilerParams(
            dimension_semantics=("parallel",),          # both TCs on v7x
            vmem_limit_bytes=32 * 1024 * 1024),         # explicit, fits v7x's 64 MiB
        cost_estimate=pl.CostEstimate(flops=flops, transcendentals=0,
                                      bytes_accessed=bytes_accessed),
    )(xb, pk["t1"], pk["b1"], pk["p1"], pk["w2t"], pk["b2"], pk["p2"],
      pk["wfc1"], pk["bfc1"], pk["wfc2"], pk["bfc2"])
    return feat, logits


# ----------------------------------------------------------------------------
# One-time weight packing (hoisted out of the forward)
# ----------------------------------------------------------------------------
def pack_params(params):
    f32, bf16 = jnp.float32, jnp.bfloat16

    # conv1 -> width-Toeplitz: t1[dy][jin, c*24+j] = 0.25*w1[c,0,dy,jin-j]
    w1 = params["w_conv1"].astype(f32) * 0.25           # pool1 scale folded (exact)
    t1 = jnp.zeros((5, 28, 16, 24), f32)                # [dy, jin, c, j]
    j24 = jnp.arange(24)
    for dy in range(5):
        for dx in range(5):
            t1 = t1.at[dy, j24 + dx, :, j24].set(w1[:, 0, dy, dx])
    t1 = t1.reshape(5, 28, 384).astype(bf16)
    b1 = jnp.repeat(params["b_conv1"].astype(f32) * 0.25, 24).reshape(1, 384)

    # pool1 lane half: 0/1 matrix (c*24+j) -> (c*12+j//2), exact f32
    c16 = jnp.arange(16)
    rows = (c16[:, None] * 24 + j24[None, :]).reshape(-1)
    cols = (c16[:, None] * 12 + (j24[None, :] // 2)).reshape(-1)
    p1 = jnp.zeros((384, 192), f32).at[rows, cols].set(1.0)

    # conv2 -> Toeplitz over dx & cin: w2t[dy][cin*12+jp, cout*8+q] = 0.25*w2[cout,cin,dy,jp-q]
    w2 = params["w_conv2"].astype(f32) * 0.25           # pool2 scale folded (exact)
    w2t = jnp.zeros((5, 16, 12, 32, 8), f32)            # [dy, cin, jp, cout, q]
    q8 = jnp.arange(8)
    for dy in range(5):
        for dx in range(5):
            w2t = w2t.at[dy, :, q8 + dx, :, q8].set(w2[:, :, dy, dx].T)
    w2t = w2t.reshape(5, 192, 256).astype(bf16)
    b2 = jnp.repeat(params["b_conv2"].astype(f32) * 0.25, 8).reshape(1, 256)

    # pool2 lane half + NCHW scatter: p2[pp][c*8+q, c*16+pp*4+q//2] = 1
    c32 = jnp.arange(32)
    rows2 = (c32[:, None] * 8 + q8[None, :]).reshape(-1)
    p2 = jnp.zeros((4, 256, 512), f32)
    for pp in range(4):
        cols2 = (c32[:, None] * 16 + pp * 4 + (q8[None, :] // 2)).reshape(-1)
        p2 = p2.at[pp, rows2, cols2].set(1.0)

    # fc1: PyTorch weight is (out,in) with NCHW-flat input == kernel feature order
    wfc1 = params["w_fc1"].T.astype(bf16)                                   # (512,512)
    bfc1 = params["b_fc1"].reshape(1, 512).astype(f32)
    n_out = params["w_fc2"].shape[0]
    wfc2 = jnp.zeros((512, 128), f32).at[:, :n_out].set(params["w_fc2"].T).astype(bf16)
    bfc2 = jnp.zeros((1, 128), f32).at[0, :n_out].set(params["b_fc2"])

    return {"t1": t1, "b1": b1, "p1": p1, "w2t": w2t, "b2": b2, "p2": p2,
            "wfc1": wfc1, "bfc1": bfc1, "wfc2": wfc2, "bfc2": bfc2}


@functools.partial(jax.jit, static_argnames=("n_out",))
def testnet_forward(x_nchw, packed, n_out=10):
    """Returns (feature, logits) — same semantics as TestNet.forward (eval mode)."""
    B = x_nchw.shape[0]
    assert x_nchw.shape[1:] == (1, 28, 28)
    TB = 1 if B <= 4 else 8                 # small batches: 1 image/step (2 TCs on v7x)
    nb = -(-B // TB)
    B_pad = nb * TB
    x = x_nchw.reshape(B, 28, 28).astype(jnp.float32)   # C==1 -> drop channel dim
    if B_pad != B:
        x = jnp.concatenate([x, jnp.zeros((B_pad - B, 28, 28), jnp.float32)], axis=0)
    xb = x.reshape(nb, TB, 28, 28)
    feat, logits = _fused_forward_call(xb, packed)
    feature = feat.reshape(B_pad, 512)[:B]               # already NCHW-flat
    logits = logits.reshape(B_pad, 128)[:B, :n_out]
    return feature, logits


# ----------------------------------------------------------------------------
# Pure-JAX reference (bf16-faithful) for a correctness check
# ----------------------------------------------------------------------------
def _reference_forward(x_nchw, params, n_out=10):
    B = x_nchw.shape[0]
    x = jnp.transpose(x_nchw, (0, 2, 3, 1)).astype(jnp.float32)     # NHWC

    def conv_relu_pool(xn, w_oihw, b_o):
        Bb, H, W, Cin = xn.shape
        Cout, _, KH, KW = w_oihw.shape
        Ho, Wo = H - KH + 1, W - KW + 1
        cols = [xn[:, dy:dy + Ho, dx:dx + Wo, :]
                for dy in range(KH) for dx in range(KW)]
        patches = jnp.concatenate(cols, axis=-1).reshape(Bb * Ho * Wo, KH * KW * Cin)
        wcol = jnp.transpose(w_oihw, (2, 3, 1, 0)).reshape(KH * KW * Cin, Cout)
        y = jnp.dot(patches.astype(jnp.bfloat16), wcol.astype(jnp.bfloat16),
                    preferred_element_type=jnp.float32) + b_o
        y = jnp.maximum(y, 0.0).reshape(Bb, Ho, Wo, Cout)
        return y.reshape(Bb, Ho // 2, 2, Wo // 2, 2, Cout).mean(axis=(2, 4))

    h = conv_relu_pool(x, params["w_conv1"], params["b_conv1"])
    h = conv_relu_pool(h, params["w_conv2"], params["b_conv2"])
    feature = jnp.transpose(h, (0, 3, 1, 2)).reshape(B, 512)
    z = jnp.dot(feature.astype(jnp.bfloat16), params["w_fc1"].T.astype(jnp.bfloat16),
                preferred_element_type=jnp.float32) + params["b_fc1"]
    z = jnp.maximum(z, 0.0)
    logits = jnp.dot(z.astype(jnp.bfloat16), params["w_fc2"].T.astype(jnp.bfloat16),
                     preferred_element_type=jnp.float32) + params["b_fc2"]
    return feature, logits[:, :n_out]


# ----------------------------------------------------------------------------
# Deterministic parameter init (shapes from TestNet.__init__)
# ----------------------------------------------------------------------------
def init_params(key, output_num=10):
    ks = jax.random.split(key, 8)
    return {
        "w_conv1": jax.random.normal(ks[0], (16, 1, 5, 5), jnp.float32) * 0.1,
        "b_conv1": jax.random.normal(ks[1], (16,), jnp.float32) * 0.01,
        "w_conv2": jax.random.normal(ks[2], (32, 16, 5, 5), jnp.float32) * 0.05,
        "b_conv2": jax.random.normal(ks[3], (32,), jnp.float32) * 0.01,
        "w_fc1": jax.random.normal(ks[4], (512, 512), jnp.float32) * 0.02,   # (out, in)
        "b_fc1": jax.random.normal(ks[5], (512,), jnp.float32) * 0.01,
        "w_fc2": jax.random.normal(ks[6], (output_num, 512), jnp.float32) * 0.02,
        "b_fc2": jax.random.normal(ks[7], (output_num,), jnp.float32) * 0.01,
    }


if __name__ == "__main__":
    key = jax.random.PRNGKey(0)
    k_in, k_par = jax.random.split(key)

    # fc1_input_features=512 => 28x28 single-channel input (MNIST), batch=2
    x = jax.random.normal(k_in, (2, 1, 28, 28), jnp.float32)
    params = init_params(k_par, output_num=10)
    packed = pack_params(params)          # one-time weight packing (hoisted)

    feature, logits = testnet_forward(x, packed, n_out=10)
    jax.block_until_ready((feature, logits))
    assert feature.shape == (2, 512) and logits.shape == (2, 10)

    ref_feature, ref_logits = _reference_forward(x, params, n_out=10)
    assert jnp.allclose(feature, ref_feature, atol=2e-2, rtol=2e-2)
    assert jnp.allclose(logits, ref_logits, atol=2e-2, rtol=2e-2)

    print("KERNEL_OK")
</pallas_src>

<mosaic_0001>
module attributes {stable_mosaic.version = 11 : i64} {
  func.func @_testnet_kernel(%arg0: i32, %arg1: memref<1x1x28x28xf32, #tpu.memory_space<vmem>>, %arg2: memref<5x28x384xbf16, #tpu.memory_space<vmem>>, %arg3: memref<1x384xf32, #tpu.memory_space<vmem>>, %arg4: memref<384x192xf32, #tpu.memory_space<vmem>>, %arg5: memref<5x192x256xbf16, #tpu.memory_space<vmem>>, %arg6: memref<1x256xf32, #tpu.memory_space<vmem>>, %arg7: memref<4x256x512xf32, #tpu.memory_space<vmem>>, %arg8: memref<512x512xbf16, #tpu.memory_space<vmem>>, %arg9: memref<1x512xf32, #tpu.memory_space<vmem>>, %arg10: memref<512x128xbf16, #tpu.memory_space<vmem>>, %arg11: memref<1x128xf32, #tpu.memory_space<vmem>>, %arg12: memref<1x1x512xf32, #tpu.memory_space<vmem>>, %arg13: memref<1x1x128xf32, #tpu.memory_space<vmem>>) attributes {dimension_semantics = [#tpu.dimension_semantics<parallel>], iteration_bounds = array<i64: 2>, scalar_prefetch = 0 : i64, scratch_operands = 0 : i64, tpu.core_type = #tpu.core_type<tc>, window_params = [{transform_indices = @transform_0, window_bounds = array<i64: 1, 1, 28, 28>}, {pipeline_mode = #tpu.pipeline_mode<synchronous>, transform_indices = @transform_1, window_bounds = array<i64: 5, 28, 384>}, {pipeline_mode = #tpu.pipeline_mode<synchronous>, transform_indices = @transform_2, window_bounds = array<i64: 1, 384>}, {pipeline_mode = #tpu.pipeline_mode<synchronous>, transform_indices = @transform_3, window_bounds = array<i64: 384, 192>}, {pipeline_mode = #tpu.pipeline_mode<synchronous>, transform_indices = @transform_4, window_bounds = array<i64: 5, 192, 256>}, {pipeline_mode = #tpu.pipeline_mode<synchronous>, transform_indices = @transform_5, window_bounds = array<i64: 1, 256>}, {pipeline_mode = #tpu.pipeline_mode<synchronous>, transform_indices = @transform_6, window_bounds = array<i64: 4, 256, 512>}, {pipeline_mode = #tpu.pipeline_mode<synchronous>, transform_indices = @transform_7, window_bounds = array<i64: 512, 512>}, {pipeline_mode = #tpu.pipeline_mode<synchronous>, transform_indices = @transform_8, window_bounds = array<i64: 1, 512>}, {pipeline_mode = #tpu.pipeline_mode<synchronous>, transform_indices = @transform_9, window_bounds = array<i64: 512, 128>}, {pipeline_mode = #tpu.pipeline_mode<synchronous>, transform_indices = @transform_10, window_bounds = array<i64: 1, 128>}, {transform_indices = @transform_11, window_bounds = array<i64: 1, 1, 512>}, {transform_indices = @transform_12, window_bounds = array<i64: 1, 1, 128>}]} {
    %c0 = arith.constant 0 : index
    %c0_0 = arith.constant 0 : index
    %c0_1 = arith.constant 0 : index
    %c0_2 = arith.constant 0 : index
    %0 = vector.load %arg1[%c0, %c0_0, %c0_1, %c0_2] : memref<1x1x28x28xf32, #tpu.memory_space<vmem>>, vector<1x1x28x28xf32>
    %1 = vector.shape_cast %0 : vector<1x1x28x28xf32> to vector<1x28x28xf32>
    %2 = arith.truncf %1 : vector<1x28x28xf32> to vector<1x28x28xbf16>
    %cst = arith.constant 0.000000e+00 : f32
    %3 = vector.broadcast %cst : f32 to vector<24x384xf32>
    %4 = vector.extract_strided_slice %2 {offsets = [0, 0, 0], sizes = [1, 24, 28], strides = [1, 1, 1]} : vector<1x28x28xbf16> to vector<1x24x28xbf16>
    %5 = vector.shape_cast %4 : vector<1x24x28xbf16> to vector<24x28xbf16>
    %c0_3 = arith.constant 0 : index
    %c0_4 = arith.constant 0 : index
    %c0_5 = arith.constant 0 : index
    %6 = vector.load %arg2[%c0_3, %c0_4, %c0_5] : memref<5x28x384xbf16, #tpu.memory_space<vmem>>, vector<1x28x384xbf16>
    %7 = vector.shape_cast %6 : vector<1x28x384xbf16> to vector<28x384xbf16>
    %cst_6 = arith.constant dense<0.000000e+00> : vector<24x384xf32>
    %8 = tpu.matmul %5, %7, %cst_6 {dimension_numbers = #tpu.dot_dimension_numbers<[1], [0], [0], [1], [0, 0, 1, 1], [], []>} : vector<24x28xbf16>, vector<28x384xbf16>, vector<24x384xf32> -> vector<24x384xf32>
    %9 = arith.addf %3, %8 : vector<24x384xf32>
    %10 = vector.extract_strided_slice %2 {offsets = [0, 1, 0], sizes = [1, 24, 28], strides = [1, 1, 1]} : vector<1x28x28xbf16> to vector<1x24x28xbf16>
    %11 = vector.shape_cast %10 : vector<1x24x28xbf16> to vector<24x28xbf16>
    %c1 = arith.constant 1 : index
    %c0_7 = arith.constant 0 : index
    %c0_8 = arith.constant 0 : index
    %12 = vector.load %arg2[%c1, %c0_7, %c0_8] : memref<5x28x384xbf16, #tpu.memory_space<vmem>>, vector<1x28x384xbf16>
    %13 = vector.shape_cast %12 : vector<1x28x384xbf16> to vector<28x384xbf16>
    %cst_9 = arith.constant dense<0.000000e+00> : vector<24x384xf32>
    %14 = tpu.matmul %11, %13, %cst_9 {dimension_numbers = #tpu.dot_dimension_numbers<[1], [0], [0], [1], [0, 0, 1, 1], [], []>} : vector<24x28xbf16>, vector<28x384xbf16>, vector<24x384xf32> -> vector<24x384xf32>
    %15 = arith.addf %9, %14 : vector<24x384xf32>
    %16 = vector.extract_strided_slice %2 {offsets = [0, 2, 0], sizes = [1, 24, 28], strides = [1, 1, 1]} : vector<1x28x28xbf16> to vector<1x24x28xbf16>
    %17 = vector.shape_cast %16 : vector<1x24x28xbf16> to vector<24x28xbf16>
    %c2 = arith.constant 2 : index
    %c0_10 = arith.constant 0 : index
    %c0_11 = arith.constant 0 : index
    %18 = vector.load %arg2[%c2, %c0_10, %c0_11] : memref<5x28x384xbf16, #tpu.memory_space<vmem>>, vector<1x28x384xbf16>
    %19 = vector.shape_cast %18 : vector<1x28x384xbf16> to vector<28x384xbf16>
    %cst_12 = arith.constant dense<0.000000e+00> : vector<24x384xf32>
    %20 = tpu.matmul %17, %19, %cst_12 {dimension_numbers = #tpu.dot_dimension_numbers<[1], [0], [0], [1], [0, 0, 1, 1], [], []>} : vector<24x28xbf16>, vector<28x384xbf16>, vector<24x384xf32> -> vector<24x384xf32>
    %21 = arith.addf %15, %20 : vector<24x384xf32>
    %22 = vector.extract_strided_slice %2 {offsets = [0, 3, 0], sizes = [1, 24, 28], strides = [1, 1, 1]} : vector<1x28x28xbf16> to vector<1x24x28xbf16>
    %23 = vector.shape_cast %22 : vector<1x24x28xbf16> to vector<24x28xbf16>
    %c3 = arith.constant 3 : index
    %c0_13 = arith.constant 0 : index
    %c0_14 = arith.constant 0 : index
    %24 = vector.load %arg2[%c3, %c0_13, %c0_14] : memref<5x28x384xbf16, #tpu.memory_space<vmem>>, vector<1x28x384xbf16>
    %25 = vector.shape_cast %24 : vector<1x28x384xbf16> to vector<28x384xbf16>
    %cst_15 = arith.constant dense<0.000000e+00> : vector<24x384xf32>
    %26 = tpu.matmul %23, %25, %cst_15 {dimension_numbers = #tpu.dot_dimension_numbers<[1], [0], [0], [1], [0, 0, 1, 1], [], []>} : vector<24x28xbf16>, vector<28x384xbf16>, vector<24x384xf32> -> vector<24x384xf32>
    %27 = arith.addf %21, %26 : vector<24x384xf32>
    %28 = vector.extract_strided_slice %2 {offsets = [0, 4, 0], sizes = [1, 24, 28], strides = [1, 1, 1]} : vector<1x28x28xbf16> to vector<1x24x28xbf16>
    %29 = vector.shape_cast %28 : vector<1x24x28xbf16> to vector<24x28xbf16>
    %c4 = arith.constant 4 : index
    %c0_16 = arith.constant 0 : index
    %c0_17 = arith.constant 0 : index
    %30 = vector.load %arg2[%c4, %c0_16, %c0_17] : memref<5x28x384xbf16, #tpu.memory_space<vmem>>, vector<1x28x384xbf16>
    %31 = vector.shape_cast %30 : vector<1x28x384xbf16> to vector<28x384xbf16>
    %cst_18 = arith.constant dense<0.000000e+00> : vector<24x384xf32>
    %32 = tpu.matmul %29, %31, %cst_18 {dimension_numbers = #tpu.dot_dimension_numbers<[1], [0], [0], [1], [0, 0, 1, 1], [], []>} : vector<24x28xbf16>, vector<28x384xbf16>, vector<24x384xf32> -> vector<24x384xf32>
    %33 = arith.addf %27, %32 : vector<24x384xf32>
    %c0_19 = arith.constant 0 : index
    %c0_20 = arith.constant 0 : index
    %34 = vector.load %arg3[%c0_19, %c0_20] : memref<1x384xf32, #tpu.memory_space<vmem>>, vector<1x384xf32>
    %35 = vector.broadcast %34 : vector<1x384xf32> to vector<24x384xf32>
    %36 = arith.addf %33, %35 : vector<24x384xf32>
    %cst_21 = arith.constant 0.000000e+00 : f32
    %37 = vector.broadcast %cst_21 : f32 to vector<24x384xf32>
    %38 = arith.maximumf %36, %37 : vector<24x384xf32>
    %39 = vector.shape_cast %38 : vector<24x384xf32> to vector<12x2x384xf32>
    %40 = vector.extract_strided_slice %39 {offsets = [0, 0, 0], sizes = [12, 1, 384], strides = [1, 1, 1]} : vector<12x2x384xf32> to vector<12x1x384xf32>
    %41 = vector.shape_cast %40 : vector<12x1x384xf32> to vector<12x384xf32>
    %42 = vector.extract_strided_slice %39 {offsets = [0, 1, 0], sizes = [12, 1, 384], strides = [1, 1, 1]} : vector<12x2x384xf32> to vector<12x1x384xf32>
    %43 = vector.shape_cast %42 : vector<12x1x384xf32> to vector<12x384xf32>
    %44 = arith.addf %41, %43 : vector<12x384xf32>
    %c0_22 = arith.constant 0 : index
    %c0_23 = arith.constant 0 : index
    %45 = vector.load %arg4[%c0_22, %c0_23] : memref<384x192xf32, #tpu.memory_space<vmem>>, vector<384x192xf32>
    %cst_24 = arith.constant dense<0.000000e+00> : vector<12x192xf32>
    %46 = tpu.matmul %44, %45, %cst_24 {dimension_numbers = #tpu.dot_dimension_numbers<[1], [0], [0], [1], [0, 0, 1, 1], [], []>} : vector<12x384xf32>, vector<384x192xf32>, vector<12x192xf32> -> vector<12x192xf32>
    %47 = vector.shape_cast %46 : vector<12x192xf32> to vector<1x12x192xf32>
    %48 = arith.truncf %47 : vector<1x12x192xf32> to vector<1x12x192xbf16>
    %cst_25 = arith.constant 0.000000e+00 : f32
    %49 = vector.broadcast %cst_25 : f32 to vector<8x256xf32>
    %50 = vector.extract_strided_slice %48 {offsets = [0, 0, 0], sizes = [1, 8, 192], strides = [1, 1, 1]} : vector<1x12x192xbf16> to vector<1x8x192xbf16>
    %51 = vector.shape_cast %50 : vector<1x8x192xbf16> to vector<8x192xbf16>
    %c0_26 = arith.constant 0 : index
    %c0_27 = arith.constant 0 : index
    %c0_28 = arith.constant 0 : index
    %52 = vector.load %arg5[%c0_26, %c0_27, %c0_28] : memref<5x192x256xbf16, #tpu.memory_space<vmem>>, vector<1x192x256xbf16>
    %53 = vector.shape_cast %52 : vector<1x192x256xbf16> to vector<192x256xbf16>
    %cst_29 = arith.constant dense<0.000000e+00> : vector<8x256xf32>
    %54 = tpu.matmul %51, %53, %cst_29 {dimension_numbers = #tpu.dot_dimension_numbers<[1], [0], [0], [1], [0, 0, 1, 1], [], []>} : vector<8x192xbf16>, vector<192x256xbf16>, vector<8x256xf32> -> vector<8x256xf32>
    %55 = arith.addf %49, %54 : vector<8x256xf32>
    %56 = vector.extract_strided_slice %48 {offsets = [0, 1, 0], sizes = [1, 8, 192], strides = [1, 1, 1]} : vector<1x12x192xbf16> to vector<1x8x192xbf16>
    %57 = vector.shape_cast %56 : vector<1x8x192xbf16> to vector<8x192xbf16>
    %c1_30 = arith.constant 1 : index
    %c0_31 = arith.constant 0 : index
    %c0_32 = arith.constant 0 : index
    %58 = vector.load %arg5[%c1_30, %c0_31, %c0_32] : memref<5x192x256xbf16, #tpu.memory_space<vmem>>, vector<1x192x256xbf16>
    %59 = vector.shape_cast %58 : vector<1x192x256xbf16> to vector<192x256xbf16>
    %cst_33 = arith.constant dense<0.000000e+00> : vector<8x256xf32>
    %60 = tpu.matmul %57, %59, %cst_33 {dimension_numbers = #tpu.dot_dimension_numbers<[1], [0], [0], [1], [0, 0, 1, 1], [], []>} : vector<8x192xbf16>, vector<192x256xbf16>, vector<8x256xf32> -> vector<8x256xf32>
    %61 = arith.addf %55, %60 : vector<8x256xf32>
    %62 = vector.extract_strided_slice %48 {offsets = [0, 2, 0], sizes = [1, 8, 192], strides = [1, 1, 1]} : vector<1x12x192xbf16> to vector<1x8x192xbf16>
    %63 = vector.shape_cast %62 : vector<1x8x192xbf16> to vector<8x192xbf16>
    %c2_34 = arith.constant 2 : index
    %c0_35 = arith.constant 0 : index
    %c0_36 = arith.constant 0 : index
    %64 = vector.load %arg5[%c2_34, %c0_35, %c0_36] : memref<5x192x256xbf16, #tpu.memory_space<vmem>>, vector<1x192x256xbf16>
    %65 = vector.shape_cast %64 : vector<1x192x256xbf16> to vector<192x256xbf16>
    %cst_37 = arith.constant dense<0.000000e+00> : vector<8x256xf32>
    %66 = tpu.matmul %63, %65, %cst_37 {dimension_numbers = #tpu.dot_dimension_numbers<[1], [0], [0], [1], [0, 0, 1, 1], [], []>} : vector<8x192xbf16>, vector<192x256xbf16>, vector<8x256xf32> -> vector<8x256xf32>
    %67 = arith.addf %61, %66 : vector<8x256xf32>
    %68 = vector.extract_strided_slice %48 {offsets = [0, 3, 0], sizes = [1, 8, 192], strides = [1, 1, 1]} : vector<1x12x192xbf16> to vector<1x8x192xbf16>
    %69 = vector.shape_cast %68 : vector<1x8x192xbf16> to vector<8x192xbf16>
    %c3_38 = arith.constant 3 : index
    %c0_39 = arith.constant 0 : index
    %c0_40 = arith.constant 0 : index
    %70 = vector.load %arg5[%c3_38, %c0_39, %c0_40] : memref<5x192x256xbf16, #tpu.memory_space<vmem>>, vector<1x192x256xbf16>
    %71 = vector.shape_cast %70 : vector<1x192x256xbf16> to vector<192x256xbf16>
    %cst_41 = arith.constant dense<0.000000e+00> : vector<8x256xf32>
    %72 = tpu.matmul %69, %71, %cst_41 {dimension_numbers = #tpu.dot_dimension_numbers<[1], [0], [0], [1], [0, 0, 1, 1], [], []>} : vector<8x192xbf16>, vector<192x256xbf16>, vector<8x256xf32> -> vector<8x256xf32>
    %73 = arith.addf %67, %72 : vector<8x256xf32>
    %74 = vector.extract_strided_slice %48 {offsets = [0, 4, 0], sizes = [1, 8, 192], strides = [1, 1, 1]} : vector<1x12x192xbf16> to vector<1x8x192xbf16>
    %75 = vector.shape_cast %74 : vector<1x8x192xbf16> to vector<8x192xbf16>
    %c4_42 = arith.constant 4 : index
    %c0_43 = arith.constant 0 : index
    %c0_44 = arith.constant 0 : index
    %76 = vector.load %arg5[%c4_42, %c0_43, %c0_44] : memref<5x192x256xbf16, #tpu.memory_space<vmem>>, vector<1x192x256xbf16>
    %77 = vector.shape_cast %76 : vector<1x192x256xbf16> to vector<192x256xbf16>
    %cst_45 = arith.constant dense<0.000000e+00> : vector<8x256xf32>
    %78 = tpu.matmul %75, %77, %cst_45 {dimension_numbers = #tpu.dot_dimension_numbers<[1], [0], [0], [1], [0, 0, 1, 1], [], []>} : vector<8x192xbf16>, vector<192x256xbf16>, vector<8x256xf32> -> vector<8x256xf32>
    %79 = arith.addf %73, %78 : vector<8x256xf32>
    %c0_46 = arith.constant 0 : index
    %c0_47 = arith.constant 0 : index
    %80 = vector.load %arg6[%c0_46, %c0_47] : memref<1x256xf32, #tpu.memory_space<vmem>>, vector<1x256xf32>
    %81 = vector.broadcast %80 : vector<1x256xf32> to vector<8x256xf32>
    %82 = arith.addf %79, %81 : vector<8x256xf32>
    %cst_48 = arith.constant 0.000000e+00 : f32
    %83 = vector.broadcast %cst_48 : f32 to vector<8x256xf32>
    %84 = arith.maximumf %82, %83 : vector<8x256xf32>
    %85 = vector.shape_cast %84 : vector<8x256xf32> to vector<4x2x256xf32>
    %86 = vector.extract_strided_slice %85 {offsets = [0, 0, 0], sizes = [4, 1, 256], strides = [1, 1, 1]} : vector<4x2x256xf32> to vector<4x1x256xf32>
    %87 = vector.shape_cast %86 : vector<4x1x256xf32> to vector<4x256xf32>
    %88 = vector.extract_strided_slice %85 {offsets = [0, 1, 0], sizes = [4, 1, 256], strides = [1, 1, 1]} : vector<4x2x256xf32> to vector<4x1x256xf32>
    %89 = vector.shape_cast %88 : vector<4x1x256xf32> to vector<4x256xf32>
    %90 = arith.addf %87, %89 : vector<4x256xf32>
    %91 = vector.shape_cast %90 : vector<4x256xf32> to vector<1x4x256xf32>
    %cst_49 = arith.constant 0.000000e+00 : f32
    %92 = vector.broadcast %cst_49 : f32 to vector<1x512xf32>
    %93 = vector.extract_strided_slice %91 {offsets = [0, 0, 0], sizes = [1, 1, 256], strides = [1, 1, 1]} : vector<1x4x256xf32> to vector<1x1x256xf32>
    %94 = vector.shape_cast %93 : vector<1x1x256xf32> to vector<1x256xf32>
    %c0_50 = arith.constant 0 : index
    %c0_51 = arith.constant 0 : index
    %c0_52 = arith.constant 0 : index
    %95 = vector.load %arg7[%c0_50, %c0_51, %c0_52] : memref<4x256x512xf32, #tpu.memory_space<vmem>>, vector<1x256x512xf32>
    %96 = vector.shape_cast %95 : vector<1x256x512xf32> to vector<256x512xf32>
    %cst_53 = arith.constant dense<0.000000e+00> : vector<1x512xf32>
    %97 = tpu.matmul %94, %96, %cst_53 {dimension_numbers = #tpu.dot_dimension_numbers<[1], [0], [0], [1], [0, 0, 1, 1], [], []>} : vector<1x256xf32>, vector<256x512xf32>, vector<1x512xf32> -> vector<1x512xf32>
    %98 = arith.addf %92, %97 : vector<1x512xf32>
    %99 = vector.extract_strided_slice %91 {offsets = [0, 1, 0], sizes = [1, 1, 256], strides = [1, 1, 1]} : vector<1x4x256xf32> to vector<1x1x256xf32>
    %100 = vector.shape_cast %99 : vector<1x1x256xf32> to vector<1x256xf32>
    %c1_54 = arith.constant 1 : index
    %c0_55 = arith.constant 0 : index
    %c0_56 = arith.constant 0 : index
    %101 = vector.load %arg7[%c1_54, %c0_55, %c0_56] : memref<4x256x512xf32, #tpu.memory_space<vmem>>, vector<1x256x512xf32>
    %102 = vector.shape_cast %101 : vector<1x256x512xf32> to vector<256x512xf32>
    %cst_57 = arith.constant dense<0.000000e+00> : vector<1x512xf32>
    %103 = tpu.matmul %100, %102, %cst_57 {dimension_numbers = #tpu.dot_dimension_numbers<[1], [0], [0], [1], [0, 0, 1, 1], [], []>} : vector<1x256xf32>, vector<256x512xf32>, vector<1x512xf32> -> vector<1x512xf32>
    %104 = arith.addf %98, %103 : vector<1x512xf32>
    %105 = vector.extract_strided_slice %91 {offsets = [0, 2, 0], sizes = [1, 1, 256], strides = [1, 1, 1]} : vector<1x4x256xf32> to vector<1x1x256xf32>
    %106 = vector.shape_cast %105 : vector<1x1x256xf32> to vector<1x256xf32>
    %c2_58 = arith.constant 2 : index
    %c0_59 = arith.constant 0 : index
    %c0_60 = arith.constant 0 : index
    %107 = vector.load %arg7[%c2_58, %c0_59, %c0_60] : memref<4x256x512xf32, #tpu.memory_space<vmem>>, vector<1x256x512xf32>
    %108 = vector.shape_cast %107 : vector<1x256x512xf32> to vector<256x512xf32>
    %cst_61 = arith.constant dense<0.000000e+00> : vector<1x512xf32>
    %109 = tpu.matmul %106, %108, %cst_61 {dimension_numbers = #tpu.dot_dimension_numbers<[1], [0], [0], [1], [0, 0, 1, 1], [], []>} : vector<1x256xf32>, vector<256x512xf32>, vector<1x512xf32> -> vector<1x512xf32>
    %110 = arith.addf %104, %109 : vector<1x512xf32>
    %111 = vector.extract_strided_slice %91 {offsets = [0, 3, 0], sizes = [1, 1, 256], strides = [1, 1, 1]} : vector<1x4x256xf32> to vector<1x1x256xf32>
    %112 = vector.shape_cast %111 : vector<1x1x256xf32> to vector<1x256xf32>
    %c3_62 = arith.constant 3 : index
    %c0_63 = arith.constant 0 : index
    %c0_64 = arith.constant 0 : index
    %113 = vector.load %arg7[%c3_62, %c0_63, %c0_64] : memref<4x256x512xf32, #tpu.memory_space<vmem>>, vector<1x256x512xf32>
    %114 = vector.shape_cast %113 : vector<1x256x512xf32> to vector<256x512xf32>
    %cst_65 = arith.constant dense<0.000000e+00> : vector<1x512xf32>
    %115 = tpu.matmul %112, %114, %cst_65 {dimension_numbers = #tpu.dot_dimension_numbers<[1], [0], [0], [1], [0, 0, 1, 1], [], []>} : vector<1x256xf32>, vector<256x512xf32>, vector<1x512xf32> -> vector<1x512xf32>
    %116 = arith.addf %110, %115 : vector<1x512xf32>
    %c0_66 = arith.constant 0 : index
    %c0_67 = arith.constant 0 : index
    %c0_68 = arith.constant 0 : index
    %117 = vector.load %arg12[%c0_66, %c0_67, %c0_68] : memref<1x1x512xf32, #tpu.memory_space<vmem>>, vector<1x1x512xf32>
    %118 = vector.shape_cast %117 : vector<1x1x512xf32> to vector<1x512xf32>
    %119 = vector.shape_cast %116 : vector<1x512xf32> to vector<1x1x512xf32>
    tpu.vector_store %arg12[%c0_66, %c0_67, %c0_68], %119 {strides = array<i32>} : memref<1x1x512xf32, #tpu.memory_space<vmem>>, vector<1x1x512xf32>,
    %120 = arith.truncf %116 : vector<1x512xf32> to vector<1x512xbf16>
    %c0_69 = arith.constant 0 : index
    %c0_70 = arith.constant 0 : index
    %121 = vector.load %arg8[%c0_69, %c0_70] : memref<512x512xbf16, #tpu.memory_space<vmem>>, vector<512x512xbf16>
    %cst_71 = arith.constant dense<0.000000e+00> : vector<1x512xf32>
    %122 = tpu.matmul %120, %121, %cst_71 {dimension_numbers = #tpu.dot_dimension_numbers<[1], [0], [0], [1], [0, 0, 1, 1], [], []>} : vector<1x512xbf16>, vector<512x512xbf16>, vector<1x512xf32> -> vector<1x512xf32>
    %c0_72 = arith.constant 0 : index
    %c0_73 = arith.constant 0 : index
    %123 = vector.load %arg9[%c0_72, %c0_73] : memref<1x512xf32, #tpu.memory_space<vmem>>, vector<1x512xf32>
    %124 = arith.addf %122, %123 : vector<1x512xf32>
    %cst_74 = arith.constant 0.000000e+00 : f32
    %125 = vector.broadcast %cst_74 : f32 to vector<1x512xf32>
    %126 = arith.maximumf %124, %125 : vector<1x512xf32>
    %127 = arith.truncf %126 : vector<1x512xf32> to vector<1x512xbf16>
    %c0_75 = arith.constant 0 : index
    %c0_76 = arith.constant 0 : index
    %128 = vector.load %arg10[%c0_75, %c0_76] : memref<512x128xbf16, #tpu.memory_space<vmem>>, vector<512x128xbf16>
    %cst_77 = arith.constant dense<0.000000e+00> : vector<1x128xf32>
    %129 = tpu.matmul %127, %128, %cst_77 {dimension_numbers = #tpu.dot_dimension_numbers<[1], [0], [0], [1], [0, 0, 1, 1], [], []>} : vector<1x512xbf16>, vector<512x128xbf16>, vector<1x128xf32> -> vector<1x128xf32>
    %c0_78 = arith.constant 0 : index
    %c0_79 = arith.constant 0 : index
    %130 = vector.load %arg11[%c0_78, %c0_79] : memref<1x128xf32, #tpu.memory_space<vmem>>, vector<1x128xf32>
    %131 = arith.addf %129, %130 : vector<1x128xf32>
    %c0_80 = arith.constant 0 : index
    %c0_81 = arith.constant 0 : index
    %c0_82 = arith.constant 0 : index
    %132 = vector.load %arg13[%c0_80, %c0_81, %c0_82] : memref<1x1x128xf32, #tpu.memory_space<vmem>>, vector<1x1x128xf32>
    %133 = vector.shape_cast %132 : vector<1x1x128xf32> to vector<1x128xf32>
    %134 = vector.shape_cast %131 : vector<1x128xf32> to vector<1x1x128xf32>
    tpu.vector_store %arg13[%c0_80, %c0_81, %c0_82], %134 {strides = array<i32>} : memref<1x1x128xf32, #tpu.memory_space<vmem>>, vector<1x1x128xf32>,
    return
  }
  func.func @transform_0(%arg0: i32) -> (i32, i32, i32, i32) {
    %c0_i32 = arith.constant 0 : i32
    %c0_i32_0 = arith.constant 0 : i32
    %c0_i32_1 = arith.constant 0 : i32
    %c0_i32_2 = arith.constant 0 : i32
    return %arg0, %c0_i32, %c0_i32_0, %c0_i32_1 : i32, i32, i32, i32
  }
  func.func @transform_1(%arg0: i32) -> (i32, i32, i32) {
    %c0_i32 = arith.constant 0 : i32
    %c0_i32_0 = arith.constant 0 : i32
    %c0_i32_1 = arith.constant 0 : i32
    %c0_i32_2 = arith.constant 0 : i32
    return %c0_i32, %c0_i32_0, %c0_i32_1 : i32, i32, i32
  }
  func.func @transform_2(%arg0: i32) -> (i32, i32) {
    %c0_i32 = arith.constant 0 : i32
    %c0_i32_0 = arith.constant 0 : i32
    %c0_i32_1 = arith.constant 0 : i32
    return %c0_i32, %c0_i32_0 : i32, i32
  }
  func.func @transform_3(%arg0: i32) -> (i32, i32) {
    %c0_i32 = arith.constant 0 : i32
    %c0_i32_0 = arith.constant 0 : i32
    %c0_i32_1 = arith.constant 0 : i32
    return %c0_i32, %c0_i32_0 : i32, i32
  }
  func.func @transform_4(%arg0: i32) -> (i32, i32, i32) {
    %c0_i32 = arith.constant 0 : i32
    %c0_i32_0 = arith.constant 0 : i32
    %c0_i32_1 = arith.constant 0 : i32
    %c0_i32_2 = arith.constant 0 : i32
    return %c0_i32, %c0_i32_0, %c0_i32_1 : i32, i32, i32
  }
  func.func @transform_5(%arg0: i32) -> (i32, i32) {
    %c0_i32 = arith.constant 0 : i32
    %c0_i32_0 = arith.constant 0 : i32
    %c0_i32_1 = arith.constant 0 : i32
    return %c0_i32, %c0_i32_0 : i32, i32
  }
  func.func @transform_6(%arg0: i32) -> (i32, i32, i32) {
    %c0_i32 = arith.constant 0 : i32
    %c0_i32_0 = arith.constant 0 : i32
    %c0_i32_1 = arith.constant 0 : i32
    %c0_i32_2 = arith.constant 0 : i32
    return %c0_i32, %c0_i32_0, %c0_i32_1 : i32, i32, i32
  }
  func.func @transform_7(%arg0: i32) -> (i32, i32) {
    %c0_i32 = arith.constant 0 : i32
    %c0_i32_0 = arith.constant 0 : i32
    %c0_i32_1 = arith.constant 0 : i32
    return %c0_i32, %c0_i32_0 : i32, i32
  }
  func.func @transform_8(%arg0: i32) -> (i32, i32) {
    %c0_i32 = arith.constant 0 : i32
    %c0_i32_0 = arith.constant 0 : i32
    %c0_i32_1 = arith.constant 0 : i32
    return %c0_i32, %c0_i32_0 : i32, i32
  }
  func.func @transform_9(%arg0: i32) -> (i32, i32) {
    %c0_i32 = arith.constant 0 : i32
    %c0_i32_0 = arith.constant 0 : i32
    %c0_i32_1 = arith.constant 0 : i32
    return %c0_i32, %c0_i32_0 : i32, i32
  }
  func.func @transform_10(%arg0: i32) -> (i32, i32) {
    %c0_i32 = arith.constant 0 : i32
    %c0_i32_0 = arith.constant 0 : i32
    %c0_i32_1 = arith.constant 0 : i32
    return %c0_i32, %c0_i32_0 : i32, i32
  }
  func.func @transform_11(%arg0: i32) -> (i32, i32, i32) {
    %c0_i32 = arith.constant 0 : i32
    %c0_i32_0 = arith.constant 0 : i32
    %c0_i32_1 = arith.constant 0 : i32
    return %arg0, %c0_i32, %c0_i32_0 : i32, i32, i32
  }
  func.func @transform_12(%arg0: i32) -> (i32, i32, i32) {
    %c0_i32 = arith.constant 0 : i32
    %c0_i32_0 = arith.constant 0 : i32
    %c0_i32_1 = arith.constant 0 : i32
    return %arg0, %c0_i32, %c0_i32_0 : i32, i32, i32
  }
}

</mosaic_0001>

<llo_original>
// kernel: testnet_forward.1
$region0: #{testnet_forward.1}
  #allocation0 [shape = 'u32[]', space=smem, size = 0x4, offset = 0x4, fixed_abs, tag = 'smem constant byte address 0x4 - core index']
  #allocation1 [shape = 'u32[144,128]{1,0:T(1,128)}', space=vmem, size = 0x12000, scoped, tag = 'internal scratch']
  %s0 = inlined_call_operand.vmem [shape: f32[2,1,28,28], index: 0, kind: input, shape index: {}]
  %s1 = inlined_call_operand.hbm [shape: bf16[5,28,384], index: 1, kind: input, shape index: {}]
  %s2 = inlined_call_operand.hbm [shape: f32[1,384], index: 2, kind: input, shape index: {}]
  %s3 = inlined_call_operand.vmem [shape: f32[384,192], index: 3, kind: input, shape index: {}]
  %s4 = inlined_call_operand.hbm [shape: bf16[5,192,256], index: 4, kind: input, shape index: {}]
  %s5 = inlined_call_operand.hbm [shape: f32[1,256], index: 5, kind: input, shape index: {}]
  %s6 = inlined_call_operand.hbm [shape: f32[4,256,512], index: 6, kind: input, shape index: {}]
  %s7 = inlined_call_operand.hbm [shape: bf16[512,512], index: 7, kind: input, shape index: {}]
  %s8 = inlined_call_operand.hbm [shape: f32[1,512], index: 8, kind: input, shape index: {}]
  %s9 = inlined_call_operand.hbm [shape: bf16[512,128], index: 9, kind: input, shape index: {}]
  %s10 = inlined_call_operand.hbm [shape: f32[1,128], index: 10, kind: input, shape index: {}]
  %s11 = inlined_call_operand.vmem [shape: f32[2,1,512], index: 11, kind: output, shape index: {0}]
  %s12 = inlined_call_operand.hbm [shape: f32[2,1,128], index: 12, kind: output, shape index: {1}]
  %13 = xla_tuple %s11, %s12
  %s14 = sld [smem:[#allocation0]]
  $region121: #{testnet_forward.1} parent=0
    _
  %s16 = ssub.s32 1, %s14
  %s17 = scalar_select 0, %s16, %s14
  $region1: #{testnet_forward.1} parent=0
    #allocation2 [shape = 'u8[122880]{0}', space=vmem, size = 0x1e000, scoped, tag = 'input window, operand 1, single buffered']
    #allocation3 [shape = 's32[2]{0}', space=sflag, size = 0x8, scoped, tag = 'scoped memory for testnet_forward.1']
    #allocation4 [shape = 's32[2]{0}', space=sflag, size = 0x8, scoped, tag = 'scoped memory for testnet_forward.1']
    #allocation5 [shape = 'u8[1536]{0}', space=vmem, size = 0x800, scoped, tag = 'input window, operand 2, single buffered']
    #allocation6 [shape = 's32[1]{0}', space=sflag, size = 0x4, scoped, tag = 'scoped memory for testnet_forward.1']
    #allocation7 [shape = 'u8[491520]{0}', space=vmem, size = 0x78000, scoped, tag = 'input window, operand 4, single buffered']
    #allocation8 [shape = 'u8[1024]{0}', space=vmem, size = 0x400, scoped, tag = 'input window, operand 5, single buffered']
    #allocation9 [shape = 's32[1]{0}', space=sflag, size = 0x4, scoped, tag = 'scoped memory for testnet_forward.1']
    #allocation10 [shape = 'u8[2097152]{0}', space=vmem, size = 0x200000, scoped, tag = 'input window, operand 6, single buffered']
    #allocation11 [shape = 'u8[524288]{0}', space=vmem, size = 0x80000, scoped, tag = 'input window, operand 7, single buffered']
    #allocation12 [shape = 's32[1]{0}', space=sflag, size = 0x4, scoped, tag = 'scoped memory for testnet_forward.1']
    #allocation13 [shape = 'u8[2048]{0}', space=vmem, size = 0x800, scoped, tag = 'input window, operand 8, single buffered']
    #allocation14 [shape = 'u8[131072]{0}', space=vmem, size = 0x20000, scoped, tag = 'input window, operand 9, single buffered']
    #allocation15 [shape = 's32[1]{0}', space=sflag, size = 0x4, scoped, tag = 'scoped memory for testnet_forward.1']
    #allocation16 [shape = 'u8[512]{0}', space=vmem, size = 0x400, scoped, tag = 'input window, operand 10, single buffered']
    #allocation17 [shape = 'u8[1024]{0}', space=vmem, size = 0x400, scoped, tag = 'output window, operand 1']
    %18 = vsyncpa [#allocation3], 0
    %19 = vsyncpa [#allocation6], 0
    %20 = vsyncpa [#allocation9], 0
    %21 = vsyncpa [#allocation12], 0
    %22 = vsyncpa [#allocation15], 0
    %23 = vsyncpa [#allocation4], 0
    %s24 = scalar_lea.sflag [#allocation4], 1
    %25 = vsyncpa %s24, 0
    loop: start=0, step=1, limit=4
    $region2: #{testnet_forward.1} parent=1 // loop_pre_header
      _
    $region3: #{testnet_forward.1} parent=1 // loop_header
      %s27 = sphi 0, %s31
      %p28 = scmp.ge.s32.totalorder %s27, 4
      %s37 = sphi 0, %s39
      %s40 = sphi 0, %s37
      %s41 = sphi 0, %s40
      %s57 = sphi 0, %s41
      %s61 = sphi 0, %s61
      %s63 = sphi 0, %s61
      %s64 = sphi 0, %s63
      %s78 = sphi 0, %s64
      %s82 = sphi 0, %s82
      %s84 = sphi 0, %s82
      %s85 = sphi 0, %s84
      %s99 = sphi 0, %s85
      %s103 = sphi 0, %s103
      %s105 = sphi 0, %s103
      %s106 = sphi 0, %s105
      %s120 = sphi 0, %s106
      %s124 = sphi 0, %s124
      %s126 = sphi 0, %s124
      %s127 = sphi 0, %s126
      %s141 = sphi 0, %s127
      %s145 = sphi 0, %s145
      %s147 = sphi 0, %s145
      %s148 = sphi 0, %s147
      %s162 = sphi 0, %s148
      %s166 = sphi 0, %s166
      %s168 = sphi 0, %s166
      %s169 = sphi 0, %s168
      %s183 = sphi 0, %s169
      %s187 = sphi 0, %s187
      %s189 = sphi 0, %s187
      %s190 = sphi 0, %s189
      %s204 = sphi 0, %s190
      %s208 = sphi 0, %s208
      %s210 = sphi 0, %s208
      %s211 = sphi 0, %s210
      %s225 = sphi 0, %s211
      %s229 = sphi 0, %s229
      %s231 = sphi 0, %s229
      %s232 = sphi 0, %s231
      %s246 = sphi 0, %s232
      %s250 = sphi 0, %s250
      %s252 = sphi 0, %s250
      %s253 = sphi 0, %s252
      %s267 = sphi 0, %s253
      %s273 = sphi 0, %s275
      %s276 = sphi 0, %s273
      %s277 = sphi 0, %s276
      %s293 = sphi 0, %s277
      %s299 = sphi 0, %s301
      %s302 = sphi 0, %s299
      %s303 = sphi 0, %s302
      %s319 = sphi 0, %s303
    $region4: #{testnet_forward.1} parent=1 // loop_header_branch
      %30 = sbr.rel (%p28) target = $region8
    $region5: #{testnet_forward.1} parent=1 // loop_body
      %s32 = ssub.s32 %s27, 1
      %s33 = ssub.s32 %s27, 2
      %s34 = sadd.s32 %s27, 1
      %s35 = ssub.s32 %s27, %s34
      %p36 = scmp.eq.s32.totalorder %s35, 0
      %s38 = sadd.s32 %s37, 1
      %s39 = scalar_select %p36, %s37, %s38
      %p42 = pneg %p36
      %p43 = scmp.eq.s32.totalorder %s27, 1
      %p44 = por %p42, %p43
      %p45 = scmp.ne.s32.totalorder %s37, %s40
      %p46 = scmp.eq.s32.totalorder %s27, 0
      %p47 = por %p45, %p46
      %p48 = scmp.ne.s32.totalorder %s37, %s40
      %p49 = scmp.eq.s32.totalorder %s32, 1
      %p50 = por %p48, %p49
      %p51 = scmp.ne.s32.totalorder %s40, %s41
      %p52 = scmp.eq.s32.totalorder %s32, 0
      %p53 = por %p51, %p52
      %p54 = scmp.ne.s32.totalorder %s40, %s41
      %p55 = scmp.eq.s32.totalorder %s33, 1
      %p56 = por %p54, %p55
      %p58 = scmp.ne.s32.totalorder %s41, %s57
      %p59 = scmp.eq.s32.totalorder %s33, 0
      %p60 = por %p58, %p59
      %s62 = sadd.s32 %s61, 1
      %p65 = scmp.eq.s32.totalorder %s27, 1
      %p66 = scmp.ne.s32.totalorder %s61, %s63
      %p67 = scmp.eq.s32.totalorder %s27, 0
      %p68 = por %p66, %p67
      %p69 = scmp.ne.s32.totalorder %s61, %s63
      %p70 = scmp.eq.s32.totalorder %s32, 1
      %p71 = por %p69, %p70
      %p72 = scmp.ne.s32.totalorder %s63, %s64
      %p73 = scmp.eq.s32.totalorder %s32, 0
      %p74 = por %p72, %p73
      %p75 = scmp.ne.s32.totalorder %s63, %s64
      %p76 = scmp.eq.s32.totalorder %s33, 1
      %p77 = por %p75, %p76
      %p79 = scmp.ne.s32.totalorder %s64, %s78
      %p80 = scmp.eq.s32.totalorder %s33, 0
      %p81 = por %p79, %p80
      %s83 = sadd.s32 %s82, 1
      %p86 = scmp.eq.s32.totalorder %s27, 1
      %p87 = scmp.ne.s32.totalorder %s82, %s84
      %p88 = scmp.eq.s32.totalorder %s27, 0
      %p89 = por %p87, %p88
      %p90 = scmp.ne.s32.totalorder %s82, %s84
      %p91 = scmp.eq.s32.totalorder %s32, 1
      %p92 = por %p90, %p91
      %p93 = scmp.ne.s32.totalorder %s84, %s85
      %p94 = scmp.eq.s32.totalorder %s32, 0
      %p95 = por %p93, %p94
      %p96 = scmp.ne.s32.totalorder %s84, %s85
      %p97 = scmp.eq.s32.totalorder %s33, 1
      %p98 = por %p96, %p97
      %p100 = scmp.ne.s32.totalorder %s85, %s99
      %p101 = scmp.eq.s32.totalorder %s33, 0
      %p102 = por %p100, %p101
      %s104 = sadd.s32 %s103, 1
      %p107 = scmp.eq.s32.totalorder %s27, 1
      %p108 = scmp.ne.s32.totalorder %s103, %s105
      %p109 = scmp.eq.s32.totalorder %s27, 0
      %p110 = por %p108, %p109
      %p111 = scmp.ne.s32.totalorder %s103, %s105
      %p112 = scmp.eq.s32.totalorder %s32, 1
      %p113 = por %p111, %p112
      %p114 = scmp.ne.s32.totalorder %s105, %s106
      %p115 = scmp.eq.s32.totalorder %s32, 0
      %p116 = por %p114, %p115
      %p117 = scmp.ne.s32.totalorder %s105, %s106
      %p118 = scmp.eq.s32.totalorder %s33, 1
      %p119 = por %p117, %p118
      %p121 = scmp.ne.s32.totalorder %s106, %s120
      %p122 = scmp.eq.s32.totalorder %s33, 0
      %p123 = por %p121, %p122
      %s125 = sadd.s32 %s124, 1
      %p128 = scmp.eq.s32.totalorder %s27, 1
      %p129 = scmp.ne.s32.totalorder %s124, %s126
      %p130 = scmp.eq.s32.totalorder %s27, 0
      %p131 = por %p129, %p130
      %p132 = scmp.ne.s32.totalorder %s124, %s126
      %p133 = scmp.eq.s32.totalorder %s32, 1
      %p134 = por %p132, %p133
      %p135 = scmp.ne.s32.totalorder %s126, %s127
      %p136 = scmp.eq.s32.totalorder %s32, 0
      %p137 = por %p135, %p136
      %p138 = scmp.ne.s32.totalorder %s126, %s127
      %p139 = scmp.eq.s32.totalorder %s33, 1
      %p140 = por %p138, %p139
      %p142 = scmp.ne.s32.totalorder %s127, %s141
      %p143 = scmp.eq.s32.totalorder %s33, 0
      %p144 = por %p142, %p143
      %s146 = sadd.s32 %s145, 1
      %p149 = scmp.eq.s32.totalorder %s27, 1
      %p150 = scmp.ne.s32.totalorder %s145, %s147
      %p151 = scmp.eq.s32.totalorder %s27, 0
      %p152 = por %p150, %p151
      %p153 = scmp.ne.s32.totalorder %s145, %s147
      %p154 = scmp.eq.s32.totalorder %s32, 1
      %p155 = por %p153, %p154
      %p156 = scmp.ne.s32.totalorder %s147, %s148
      %p157 = scmp.eq.s32.totalorder %s32, 0
      %p158 = por %p156, %p157
      %p159 = scmp.ne.s32.totalorder %s147, %s148
      %p160 = scmp.eq.s32.totalorder %s33, 1
      %p161 = por %p159, %p160
      %p163 = scmp.ne.s32.totalorder %s148, %s162
      %p164 = scmp.eq.s32.totalorder %s33, 0
      %p165 = por %p163, %p164
      %s167 = sadd.s32 %s166, 1
      %p170 = scmp.eq.s32.totalorder %s27, 1
      %p171 = scmp.ne.s32.totalorder %s166, %s168
      %p172 = scmp.eq.s32.totalorder %s27, 0
      %p173 = por %p171, %p172
      %p174 = scmp.ne.s32.totalorder %s166, %s168
      %p175 = scmp.eq.s32.totalorder %s32, 1
      %p176 = por %p174, %p175
      %p177 = scmp.ne.s32.totalorder %s168, %s169
      %p178 = scmp.eq.s32.totalorder %s32, 0
      %p179 = por %p177, %p178
      %p180 = scmp.ne.s32.totalorder %s168, %s169
      %p181 = scmp.eq.s32.totalorder %s33, 1
      %p182 = por %p180, %p181
      %p184 = scmp.ne.s32.totalorder %s169, %s183
      %p185 = scmp.eq.s32.totalorder %s33, 0
      %p186 = por %p184, %p185
      %s188 = sadd.s32 %s187, 1
      %p191 = scmp.eq.s32.totalorder %s27, 1
      %p192 = scmp.ne.s32.totalorder %s187, %s189
      %p193 = scmp.eq.s32.totalorder %s27, 0
      %p194 = por %p192, %p193
      %p195 = scmp.ne.s32.totalorder %s187, %s189
      %p196 = scmp.eq.s32.totalorder %s32, 1
      %p197 = por %p195, %p196
      %p198 = scmp.ne.s32.totalorder %s189, %s190
      %p199 = scmp.eq.s32.totalorder %s32, 0
      %p200 = por %p198, %p199
      %p201 = scmp.ne.s32.totalorder %s189, %s190
      %p202 = scmp.eq.s32.totalorder %s33, 1
      %p203 = por %p201, %p202
      %p205 = scmp.ne.s32.totalorder %s190, %s204
      %p206 = scmp.eq.s32.totalorder %s33, 0
      %p207 = por %p205, %p206
      %s209 = sadd.s32 %s208, 1
      %p212 = scmp.eq.s32.totalorder %s27, 1
      %p213 = scmp.ne.s32.totalorder %s208, %s210
      %p214 = scmp.eq.s32.totalorder %s27, 0
      %p215 = por %p213, %p214
      %p216 = scmp.ne.s32.totalorder %s208, %s210
      %p217 = scmp.eq.s32.totalorder %s32, 1
      %p218 = por %p216, %p217
      %p219 = scmp.ne.s32.totalorder %s210, %s211
      %p220 = scmp.eq.s32.totalorder %s32, 0
      %p221 = por %p219, %p220
      %p222 = scmp.ne.s32.totalorder %s210, %s211
      %p223 = scmp.eq.s32.totalorder %s33, 1
      %p224 = por %p222, %p223
      %p226 = scmp.ne.s32.totalorder %s211, %s225
      %p227 = scmp.eq.s32.totalorder %s33, 0
      %p228 = por %p226, %p227
      %s230 = sadd.s32 %s229, 1
      %p233 = scmp.eq.s32.totalorder %s27, 1
      %p234 = scmp.ne.s32.totalorder %s229, %s231
      %p235 = scmp.eq.s32.totalorder %s27, 0
      %p236 = por %p234, %p235
      %p237 = scmp.ne.s32.totalorder %s229, %s231
      %p238 = scmp.eq.s32.totalorder %s32, 1
      %p239 = por %p237, %p238
      %p240 = scmp.ne.s32.totalorder %s231, %s232
      %p241 = scmp.eq.s32.totalorder %s32, 0
      %p242 = por %p240, %p241
      %p243 = scmp.ne.s32.totalorder %s231, %s232
      %p244 = scmp.eq.s32.totalorder %s33, 1
      %p245 = por %p243, %p244
      %p247 = scmp.ne.s32.totalorder %s232, %s246
      %p248 = scmp.eq.s32.totalorder %s33, 0
      %p249 = por %p247, %p248
      %s251 = sadd.s32 %s250, 1
      %p254 = scmp.eq.s32.totalorder %s27, 1
      %p255 = scmp.ne.s32.totalorder %s250, %s252
      %p256 = scmp.eq.s32.totalorder %s27, 0
      %p257 = por %p255, %p256
      %p258 = scmp.ne.s32.totalorder %s250, %s252
      %p259 = scmp.eq.s32.totalorder %s32, 1
      %p260 = por %p258, %p259
      %p261 = scmp.ne.s32.totalorder %s252, %s253
      %p262 = scmp.eq.s32.totalorder %s32, 0
      %p263 = por %p261, %p262
      %p264 = scmp.ne.s32.totalorder %s252, %s253
      %p265 = scmp.eq.s32.totalorder %s33, 1
      %p266 = por %p264, %p265
      %p268 = scmp.ne.s32.totalorder %s253, %s267
      %p269 = scmp.eq.s32.totalorder %s33, 0
      %p270 = por %p268, %p269
      %s271 = ssub.s32 %s27, %s34
      %p272 = scmp.eq.s32.totalorder %s271, 0
      %s274 = sadd.s32 %s273, 1
      %s275 = scalar_select %p272, %s273, %s274
      %p278 = pneg %p272
      %p279 = scmp.eq.s32.totalorder %s27, 1
      %p280 = por %p278, %p279
      %p281 = scmp.ne.s32.totalorder %s273, %s276
      %p282 = scmp.eq.s32.totalorder %s27, 0
      %p283 = por %p281, %p282
      %p284 = scmp.ne.s32.totalorder %s273, %s276
      %p285 = scmp.eq.s32.totalorder %s32, 1
      %p286 = por %p284, %p285
      %p287 = scmp.ne.s32.totalorder %s276, %s277
      %p288 = scmp.eq.s32.totalorder %s32, 0
      %p289 = por %p287, %p288
      %p290 = scmp.ne.s32.totalorder %s276, %s277
      %p291 = scmp.eq.s32.totalorder %s33, 1
      %p292 = por %p290, %p291
      %p294 = scmp.ne.s32.totalorder %s277, %s293
      %p295 = scmp.eq.s32.totalorder %s33, 0
      %p296 = por %p294, %p295
      %s297 = ssub.s32 %s27, %s34
      %p298 = scmp.eq.s32.totalorder %s297, 0
      %s300 = sadd.s32 %s299, 1
      %s301 = scalar_select %p298, %s299, %s300
      %p304 = pneg %p298
      %p305 = scmp.eq.s32.totalorder %s27, 1
      %p306 = por %p304, %p305
      %p307 = scmp.ne.s32.totalorder %s299, %s302
      %p308 = scmp.eq.s32.totalorder %s27, 0
      %p309 = por %p307, %p308
      %p310 = scmp.ne.s32.totalorder %s299, %s302
      %p311 = scmp.eq.s32.totalorder %s32, 1
      %p312 = por %p310, %p311
      %p313 = scmp.ne.s32.totalorder %s302, %s303
      %p314 = scmp.eq.s32.totalorder %s32, 0
      %p315 = por %p313, %p314
      %p316 = scmp.ne.s32.totalorder %s302, %s303
      %p317 = scmp.eq.s32.totalorder %s33, 1
      %p318 = por %p316, %p317
      %p320 = scmp.ne.s32.totalorder %s303, %s319
      %p321 = scmp.eq.s32.totalorder %s33, 0
      %p322 = por %p320, %p321
      %p323 = scmp.le.s32.totalorder 1, %s27
      %p324 = scmp.lt.s32.totalorder %s27, 3
      %p325 = pnand %p323, %p324
      %p326 = pneg %p325
      // Predicated region
      $region9: #{testnet_forward.1} parent=5 // pred_check
        _
      $region10: #{testnet_forward.1} parent=5 // pred_check_branch
        %328 = sbr.rel (%p325) target = $region12
      $region11: #{testnet_forward.1} parent=5 // pred_region
        %s329 = ssub.s32 %s27, 1
        // Predicated region
        $region13: #{testnet_forward.1} parent=11 // pred_check
          %p330 = pneg %p74
        $region14: #{testnet_forward.1} parent=11 // pred_check_branch
          %332 = sbr.rel (%p330) target = $region16
        $region15: #{testnet_forward.1} parent=11 // pred_region
          %s334 = ssub.s32 3840, 3840
          %335 = vsyncadd [#allocation3], %s334
          %s336 = sshll.u32 [#allocation2], 4
          %s337 = int_to_ptr.vmem [resolvable:$true] %s336
          %342 = dma.hbm_to_vmem [thread:$0]  %s1, 3840, %s337, [#allocation3], 192, 192, 12
        $region16: #{testnet_forward.1} parent=11 // pred_fallthru
          _
        // Predicated region
        $region17: #{testnet_forward.1} parent=11 // pred_check
          %p343 = pneg %p95
        $region18: #{testnet_forward.1} parent=11 // pred_check_branch
          %345 = sbr.rel (%p343) target = $region20
        $region19: #{testnet_forward.1} parent=11 // pred_region
          %s347 = ssub.s32 48, 48
          %348 = vsyncadd [#allocation6], %s347
          %s350 = sshll.u32 [#allocation5], 4
          %s351 = int_to_ptr.vmem [resolvable:$true] %s350
          %353 = dma.hbm_to_vmem [thread:$0]  %s2, 48, %s351, [#allocation6]
        $region20: #{testnet_forward.1} parent=11 // pred_fallthru
          _
        // Predicated region
        $region21: #{testnet_forward.1} parent=11 // pred_check
          %p354 = pneg %p116
        $region22: #{testnet_forward.1} parent=11 // pred_check_branch
          %356 = sbr.rel (%p354) target = $region24
        $region23: #{testnet_forward.1} parent=11 // pred_region
          _
        $region24: #{testnet_forward.1} parent=11 // pred_fallthru
          _
        // Predicated region
        $region25: #{testnet_forward.1} parent=11 // pred_check
          %p357 = pneg %p137
        $region26: #{testnet_forward.1} parent=11 // pred_check_branch
          %359 = sbr.rel (%p357) target = $region28
        $region27: #{testnet_forward.1} parent=11 // pred_region
          %s361 = ssub.s32 15360, 15360
          %362 = vsyncadd [#allocation6], %s361
          %s363 = sshll.u32 [#allocation7], 4
          %s364 = int_to_ptr.vmem [resolvable:$true] %s363
          %369 = dma.hbm_to_vmem [thread:$0]  %s4, 15360, %s364, [#allocation6], 128, 128, 8
        $region28: #{testnet_forward.1} parent=11 // pred_fallthru
          _
        // Predicated region
        $region29: #{testnet_forward.1} parent=11 // pred_check
          %p370 = pneg %p158
        $region30: #{testnet_forward.1} parent=11 // pred_check_branch
          %372 = sbr.rel (%p370) target = $region32
        $region31: #{testnet_forward.1} parent=11 // pred_region
          %s374 = ssub.s32 32, 32
          %375 = vsyncadd [#allocation9], %s374
          %s377 = sshll.u32 [#allocation8], 4
          %s378 = int_to_ptr.vmem [resolvable:$true] %s377
          %380 = dma.hbm_to_vmem [thread:$0]  %s5, 32, %s378, [#allocation9]
        $region32: #{testnet_forward.1} parent=11 // pred_fallthru
          _
        // Predicated region
        $region33: #{testnet_forward.1} parent=11 // pred_check
          %p381 = pneg %p179
        $region34: #{testnet_forward.1} parent=11 // pred_check_branch
          %383 = sbr.rel (%p381) target = $region36
        $region35: #{testnet_forward.1} parent=11 // pred_region
          %s385 = ssub.s32 65536, 65536
          %386 = vsyncadd [#allocation9], %s385
          %s387 = sshll.u32 [#allocation10], 4
          %s388 = int_to_ptr.vmem [resolvable:$true] %s387
          %393 = dma.hbm_to_vmem [thread:$0]  %s6, 65536, %s388, [#allocation9], 512, 512, 32
        $region36: #{testnet_forward.1} parent=11 // pred_fallthru
          _
        // Predicated region
        $region37: #{testnet_forward.1} parent=11 // pred_check
          %p394 = pneg %p200
        $region38: #{testnet_forward.1} parent=11 // pred_check_branch
          %396 = sbr.rel (%p394) target = $region40
        $region39: #{testnet_forward.1} parent=11 // pred_region
          %s398 = ssub.s32 16384, 16384
          %399 = vsyncadd [#allocation12], %s398
          %s400 = sshll.u32 [#allocation11], 4
          %s401 = int_to_ptr.vmem [resolvable:$true] %s400
          %406 = dma.hbm_to_vmem [thread:$0]  %s7, 16384, %s401, [#allocation12], 256, 256, 16
        $region40: #{testnet_forward.1} parent=11 // pred_fallthru
          _
        // Predicated region
        $region41: #{testnet_forward.1} parent=11 // pred_check
          %p407 = pneg %p221
        $region42: #{testnet_forward.1} parent=11 // pred_check_branch
          %409 = sbr.rel (%p407) target = $region44
        $region43: #{testnet_forward.1} parent=11 // pred_region
          %s411 = ssub.s32 64, 64
          %412 = vsyncadd [#allocation12], %s411
          %s414 = sshll.u32 [#allocation13], 4
          %s415 = int_to_ptr.vmem [resolvable:$true] %s414
          %417 = dma.hbm_to_vmem [thread:$0]  %s8, 64, %s415, [#allocation12]
        $region44: #{testnet_forward.1} parent=11 // pred_fallthru
          _
        // Predicated region
        $region45: #{testnet_forward.1} parent=11 // pred_check
          %p418 = pneg %p242
        $region46: #{testnet_forward.1} parent=11 // pred_check_branch
          %420 = sbr.rel (%p418) target = $region48
        $region47: #{testnet_forward.1} parent=11 // pred_region
          %s422 = ssub.s32 4096, 4096
          %423 = vsyncadd [#allocation15], %s422
          %s424 = sshll.u32 [#allocation14], 4
          %s425 = int_to_ptr.vmem [resolvable:$true] %s424
          %430 = dma.hbm_to_vmem [thread:$0]  %s9, 4096, %s425, [#allocation15], 64, 64, 4
        $region48: #{testnet_forward.1} parent=11 // pred_fallthru
          _
        // Predicated region
        $region49: #{testnet_forward.1} parent=11 // pred_check
          %p431 = pneg %p263
        $region50: #{testnet_forward.1} parent=11 // pred_check_branch
          %433 = sbr.rel (%p431) target = $region52
        $region51: #{testnet_forward.1} parent=11 // pred_region
          %s435 = ssub.s32 16, 16
          %436 = vsyncadd [#allocation15], %s435
          %s438 = sshll.u32 [#allocation16], 4
          %s439 = int_to_ptr.vmem [resolvable:$true] %s438
          %441 = dma.hbm_to_vmem [thread:$0]  %s10, 16, %s439, [#allocation15]
        $region52: #{testnet_forward.1} parent=11 // pred_fallthru
          _
      $region12: #{testnet_forward.1} parent=5 // pred_fallthru
        _
      %p442 = scmp.lt.s32.totalorder %s27, 2
      // Predicated region
      $region53: #{testnet_forward.1} parent=5 // pred_check
        %p443 = pneg %p442
      $region54: #{testnet_forward.1} parent=5 // pred_check_branch
        %445 = sbr.rel (%p443) target = $region56
      $region55: #{testnet_forward.1} parent=5 // pred_region
        // Predicated region
        $region57: #{testnet_forward.1} parent=55 // pred_check
          %p446 = pneg %p47
        $region58: #{testnet_forward.1} parent=55 // pred_check_branch
          %448 = sbr.rel (%p446) target = $region60
        $region59: #{testnet_forward.1} parent=55 // pred_region
          %p449 = scmp.lt.s32.totalorder %s27, 1
          %s450 = scalar_select %p449, %s27, 1
          %s451 = smul.addr %s450, 4
          %s452 = smul.addr %s451, 8
          %s453 = scalar_lea.vmem %s0, %s452
        $region60: #{testnet_forward.1} parent=55 // pred_fallthru
          _
      $region56: #{testnet_forward.1} parent=5 // pred_fallthru
        _
      %p454 = scmp.le.s32.totalorder 1, %s27
      %p455 = scmp.lt.s32.totalorder %s27, 3
      %p456 = pnand %p454, %p455
      %p457 = pneg %p456
      // Predicated region
      $region61: #{testnet_forward.1} parent=5 // pred_check
        _
      $region62: #{testnet_forward.1} parent=5 // pred_check_branch
        %459 = sbr.rel (%p456) target = $region64
      $region63: #{testnet_forward.1} parent=5 // pred_region
        %s460 = ssub.s32 %s27, 1
        // Predicated region
        $region65: #{testnet_forward.1} parent=63 // pred_check
          %p461 = pneg %p74
        $region66: #{testnet_forward.1} parent=63 // pred_check_branch
          %463 = sbr.rel (%p461) target = $region68
        $region67: #{testnet_forward.1} parent=63 // pred_region
          %464 = dma.done [#allocation3], 3840
        $region68: #{testnet_forward.1} parent=63 // pred_fallthru
          _
        // Predicated region
        $region69: #{testnet_forward.1} parent=63 // pred_check
          %p465 = pneg %p95
        $region70: #{testnet_forward.1} parent=63 // pred_check_branch
          %467 = sbr.rel (%p465) target = $region72
        $region71: #{testnet_forward.1} parent=63 // pred_region
          %468 = dma.done [#allocation6], 48
        $region72: #{testnet_forward.1} parent=63 // pred_fallthru
          _
        // Predicated region
        $region73: #{testnet_forward.1} parent=63 // pred_check
          %p469 = pneg %p137
        $region74: #{testnet_forward.1} parent=63 // pred_check_branch
          %471 = sbr.rel (%p469) target = $region76
        $region75: #{testnet_forward.1} parent=63 // pred_region
          %472 = dma.done [#allocation6], 15360
        $region76: #{testnet_forward.1} parent=63 // pred_fallthru
          _
        // Predicated region
        $region77: #{testnet_forward.1} parent=63 // pred_check
          %p473 = pneg %p158
        $region78: #{testnet_forward.1} parent=63 // pred_check_branch
          %475 = sbr.rel (%p473) target = $region80
        $region79: #{testnet_forward.1} parent=63 // pred_region
          %476 = dma.done [#allocation9], 32
        $region80: #{testnet_forward.1} parent=63 // pred_fallthru
          _
        // Predicated region
        $region81: #{testnet_forward.1} parent=63 // pred_check
          %p477 = pneg %p179
        $region82: #{testnet_forward.1} parent=63 // pred_check_branch
          %479 = sbr.rel (%p477) target = $region84
        $region83: #{testnet_forward.1} parent=63 // pred_region
          %480 = dma.done [#allocation9], 65536
        $region84: #{testnet_forward.1} parent=63 // pred_fallthru
          _
        // Predicated region
        $region85: #{testnet_forward.1} parent=63 // pred_check
          %p481 = pneg %p200
        $region86: #{testnet_forward.1} parent=63 // pred_check_branch
          %483 = sbr.rel (%p481) target = $region88
        $region87: #{testnet_forward.1} parent=63 // pred_region
          %484 = dma.done [#allocation12], 16384
        $region88: #{testnet_forward.1} parent=63 // pred_fallthru
          _
        // Predicated region
        $region89: #{testnet_forward.1} parent=63 // pred_check
          %p485 = pneg %p221
        $region90: #{testnet_forward.1} parent=63 // pred_check_branch
          %487 = sbr.rel (%p485) target = $region92
        $region91: #{testnet_forward.1} parent=63 // pred_region
          %488 = dma.done [#allocation12], 64
        $region92: #{testnet_forward.1} parent=63 // pred_fallthru
          _
        // Predicated region
        $region93: #{testnet_forward.1} parent=63 // pred_check
          %p489 = pneg %p242
        $region94: #{testnet_forward.1} parent=63 // pred_check_branch
          %491 = sbr.rel (%p489) target = $region96
        $region95: #{testnet_forward.1} parent=63 // pred_region
          %492 = dma.done [#allocation15], 4096
        $region96: #{testnet_forward.1} parent=63 // pred_fallthru
          _
        // Predicated region
        $region97: #{testnet_forward.1} parent=63 // pred_check
          %p493 = pneg %p263
        $region98: #{testnet_forward.1} parent=63 // pred_check_branch
          %495 = sbr.rel (%p493) target = $region100
        $region99: #{testnet_forward.1} parent=63 // pred_region
          %496 = dma.done [#allocation15], 16
        $region100: #{testnet_forward.1} parent=63 // pred_fallthru
          _
        %p497 = scmp.lt.s32.totalorder %s32, 1
        %s498 = scalar_select %p497, %s32, 1
        %s499 = smul.addr %s498, 4
        %s500 = smul.addr %s499, 8
        %s501 = scalar_lea.vmem %s0, %s500
        %p502 = pneg %p53
        %p503 = pneg %p50
        %p504 = pneg %p74
        %p505 = pneg %p71
        %p506 = pneg %p95
        %p507 = pneg %p92
        %p508 = pneg %p116
        %p509 = pneg %p113
        %p510 = pneg %p137
        %p511 = pneg %p134
        %p512 = pneg %p158
        %p513 = pneg %p155
        %p514 = pneg %p179
        %p515 = pneg %p176
        %p516 = pneg %p200
        %p517 = pneg %p197
        %p518 = pneg %p221
        %p519 = pneg %p218
        %p520 = pneg %p242
        %p521 = pneg %p239
        %p522 = pneg %p263
        %p523 = pneg %p260
        %p524 = pneg %p289
        %p525 = pneg %p286
        %p526 = scmp.lt.s32.totalorder %s32, 1
        %s527 = scalar_select %p526, %s32, 1
        %s528 = smul.addr %s527, 4
        %s529 = scalar_lea.vmem %s11, %s528
        %p530 = pneg %p315
        %p531 = pneg %p312
        %s532 = sand.u32 %s302, 1
        %s533 = scalar_lea.sflag [#allocation4], %s532
        %s534 = sand.u32 %s302, 1
        %s535 = scalar_lea.vmem [#allocation17], %s534
        %p536 = scmp.lt.s32.totalorder %s32, 1
        %s537 = scalar_select %p536, %s32, 1
        %s538 = smul.addr %s537, 4
        %s539 = smul.addr %s538, 8
        %s540 = scalar_lea.vmem %s0, %s539
        %p541 = scmp.lt.s32.totalorder %s32, 1
        %s542 = scalar_select %p541, %s32, 1
        %s543 = smul.addr %s542, 4
        %s544 = scalar_lea.vmem %s11, %s543
        %v546 = vld [vmem:[%s540] sm:$0xff]
        %v547 = vld [vmem:[%s540 + $0x8] sm:$0xff]
        %v548 = vld [vmem:[%s540 + $0x10] sm:$0xff]
        %v549 = vld [vmem:[%s540 + $0x18] sm:$0xf]
        %v550 = vpack.c.bf16 %v547, %v546
        %v551 = vpack.c.bf16 %v549, %v548
        %v552 = vld [vmem:[#allocation2] sm:$0xff]
        %v553 = vld [vmem:[#allocation2 + $0x8] sm:$0xf]
        %v554 = vld [vmem:[#allocation2 + $0xc] sm:$0xff]
        %v555 = vld [vmem:[#allocation2 + $0x14] sm:$0xf]
        %v556 = vld [vmem:[#allocation2 + $0x18] sm:$0xff]
        %v557 = vld [vmem:[#allocation2 + $0x20] sm:$0xf]
        %v558 = vld [vmem:[#allocation2 + $0x24] sm:$0x33]
        %v559 = vld [vmem:[#allocation2 + $0x2c] sm:$0x3]
        %s560 = scalar_lea.vmem [#allocation2], 48
        %v561 = vld [vmem:[%s560] sm:$0xff]
        %v562 = vld [vmem:[%s560 + $0x8] sm:$0xf]
        %v563 = vld [vmem:[%s560 + $0xc] sm:$0xff]
        %v564 = vld [vmem:[%s560 + $0x14] sm:$0xf]
        %v565 = vld [vmem:[%s560 + $0x18] sm:$0xff]
        %v566 = vld [vmem:[%s560 + $0x20] sm:$0xf]
        %v567 = vld [vmem:[%s560 + $0x24] sm:$0x33]
        %v568 = vld [vmem:[%s560 + $0x2c] sm:$0x3]
        %vm569 = vsmask.f32 7424
        %v571 = vshrl.u32 %v550, 16
        %v573 = vshll.u32 %v550, 16
        %v575 = vrot.slane %v573, 1
        %v576 = vor.u32 %v571, %v575
        %v578 = vshll.u32 %v551, 16
        %v580 = vrot.slane %v578, 1
        %v581 = vsel %vm569, %v576, %v580
        %v582 = vshrl.u32 %v551, 16
        %v584 = vor.u32 %v582, %v580
        %v593 = vunpack.c.l.b16 %v561
        %v594 = vunpack.c.h.b16 %v561
        %v595 = vunpack.c.l.b16 %v562
        %v596 = vunpack.c.l.b16 %v563
        %v597 = vunpack.c.h.b16 %v563
        %v598 = vunpack.c.l.b16 %v564
        %v599 = vunpack.c.l.b16 %v565
        %v600 = vunpack.c.h.b16 %v565
        %v601 = vunpack.c.l.b16 %v566
        %v602 = vunpack.c.l.b16 %v567
        %v603 = vunpack.c.h.b16 %v567
        %v604 = vunpack.c.l.b16 %v568
        %v605 = vpack.c.b16 %v596, %v593
        %v606 = vpack.c.b16 %v597, %v594
        %v607 = vpack.c.b16 %v598, %v595
        %v608 = vpack.c.b16 %v602, %v599
        %v609 = vpack.c.b16 %v603, %v600
        %v610 = vpack.c.b16 %v604, %v601
        %vm614 = vcmask 228352
        %v616 = vsel %vm614, %v581, 0
        %v619 = vsel %vm614, %v584, 0
        %vm621 = vcmask 1045504
        %v623 = vsel %vm621, %v608, 0
        %v626 = vsel %vm621, %v609, 0
        %v629 = vsel %vm621, %v610, 0
        %631 = vmatprep.subr.bf16.mxu0 0
        %632 = vmatpush1.bf16.msra.mxu0 0
        %633 = vmatprep.subr.bf16.mxu0 0
        %634 = vmatpush1.bf16.msra.mxu0 0
        %635 = vmatprep.subr.bf16.mxu0 0
        %636 = vmatpush1.bf16.msra.mxu0 0
        %637 = vmatprep.subr.bf16.mxu0 0
        %638 = vmatpush1.bf16.msra.mxu0 0
        %639 = vmatprep.subr.bf16.mxu0 0
        %640 = vmatpush1.bf16.msra.mxu0 0
        %641 = vmatprep.subr.bf16.mxu0 0
        %642 = vmatpush1.bf16.msra.mxu0 0
        %643 = vmatprep.subr.bf16.mxu0 %v626
        %644 = vmatpush1.bf16.msra.mxu0 %v623
        %645 = vmatprep.subr.bf16.mxu0 %v606
        %646 = vmatpush1.bf16.msra.mxu0 %v605
        %647 = vmatprep.subr.bf16.mxu0 0
        %648 = vmatpush2.bf16.msra.mxu0 0
        %649 = vmatprep.subr.bf16.mxu0 0
        %650 = vmatpush2.bf16.msra.mxu0 0
        %651 = vmatprep.subr.bf16.mxu0 0
        %652 = vmatpush2.bf16.msra.mxu0 0
        %653 = vmatprep.subr.bf16.mxu0 0
        %654 = vmatpush2.bf16.msra.mxu0 0
        %655 = vmatprep.subr.bf16.mxu0 0
        %656 = vmatpush2.bf16.msra.mxu0 0
        %657 = vmatprep.subr.bf16.mxu0 0
        %658 = vmatpush2.bf16.msra.mxu0 0
        %659 = vmatprep.subr.bf16.mxu0 0
        %660 = vmatpush2.bf16.msra.mxu0 0
        %661 = vmatprep.subr.bf16.mxu0 0
        %662 = vmatpush2.bf16.msra.mxu0 0
        %663 = vmatprep.mubr.bf16.mxu0 0
        %664 = vmatmul.mubr.bf16.gmra.mxu0 %v616
        %v665 = vpop.f32.mrf.mxu0
        %v666 = vadd.f32 0.0, %v665
        %v667 = vpop.f32.mrf.mxu0
        %v668 = vadd.f32 0.0, %v667
        %v669 = vpop.f32.mrf.mxu0
        %v670 = vadd.f32 0.0, %v669
        %v671 = vpop.f32.mrf.mxu0
        %v672 = vadd.f32 0.0, %v671
        %673 = vmatprep.mubr.bf16.mxu0 0
        %674 = vmatmul.mubr.bf16.gmra.mxu0 %v619
        %v675 = vpop.f32.mrf.mxu0
        %v676 = vadd.f32 0.0, %v675
        %v677 = vpop.f32.mrf.mxu0
        %v678 = vadd.f32 0.0, %v677
        %v679 = vpop.f32.mrf.mxu0
        %v680 = vpop.f32.mrf.mxu0
        %681 = vdwg.mxu0
        %682 = vmatprep.subr.bf16.mxu0 0
        %683 = vmatpush1.bf16.msra.mxu0 0
        %684 = vmatprep.subr.bf16.mxu0 0
        %685 = vmatpush1.bf16.msra.mxu0 0
        %686 = vmatprep.subr.bf16.mxu0 0
        %687 = vmatpush1.bf16.msra.mxu0 0
        %688 = vmatprep.subr.bf16.mxu0 0
        %689 = vmatpush1.bf16.msra.mxu0 0
        %690 = vmatprep.subr.bf16.mxu0 0
        %691 = vmatpush1.bf16.msra.mxu0 0
        %692 = vmatprep.subr.bf16.mxu0 0
        %693 = vmatpush1.bf16.msra.mxu0 0
        %694 = vmatprep.subr.bf16.mxu0 0
        %695 = vmatpush1.bf16.msra.mxu0 %v629
        %696 = vmatprep.subr.bf16.mxu0 0
        %697 = vmatpush1.bf16.msra.mxu0 %v607
        %698 = vmatprep.subr.bf16.mxu0 0
        %699 = vmatpush2.bf16.msra.mxu0 0
        %700 = vmatprep.subr.bf16.mxu0 0
        %701 = vmatpush2.bf16.msra.mxu0 0
        %702 = vmatprep.subr.bf16.mxu0 0
        %703 = vmatpush2.bf16.msra.mxu0 0
        %704 = vmatprep.subr.bf16.mxu0 0
        %705 = vmatpush2.bf16.msra.mxu0 0
        %706 = vmatprep.subr.bf16.mxu0 0
        %707 = vmatpush2.bf16.msra.mxu0 0
        %708 = vmatprep.subr.bf16.mxu0 0
        %709 = vmatpush2.bf16.msra.mxu0 0
        %710 = vmatprep.subr.bf16.mxu0 0
        %711 = vmatpush2.bf16.msra.mxu0 0
        %712 = vmatprep.subr.bf16.mxu0 0
        %713 = vmatpush2.bf16.msra.mxu0 0
        %714 = vmatprep.mubr.bf16.mxu0 0
        %715 = vmatmul.mubr.bf16.gmra.mxu0 %v616
        %v716 = vpop.f32.mrf.mxu0
        %v717 = vadd.f32 0.0, %v716
        %v718 = vpop.f32.mrf.mxu0
        %v719 = vpop.f32.mrf.mxu0
        %v720 = vadd.f32 0.0, %v719
        %v721 = vpop.f32.mrf.mxu0
        %722 = vmatprep.mubr.bf16.mxu0 0
        %723 = vmatmul.mubr.bf16.gmra.mxu0 %v619
        %v724 = vpop.f32.mrf.mxu0
        %v725 = vadd.f32 0.0, %v724
        %v726 = vpop.f32.mrf.mxu0
        %v727 = vpop.f32.mrf.mxu0
        %v728 = vpop.f32.mrf.mxu0
        %729 = vdwg.mxu0
        %v738 = vunpack.c.l.b16 %v552
        %v739 = vunpack.c.h.b16 %v552
        %v740 = vunpack.c.l.b16 %v553
        %v741 = vunpack.c.l.b16 %v554
        %v742 = vunpack.c.h.b16 %v554
        %v743 = vunpack.c.l.b16 %v555
        %v744 = vunpack.c.l.b16 %v556
        %v745 = vunpack.c.h.b16 %v556
        %v746 = vunpack.c.l.b16 %v557
        %v747 = vunpack.c.l.b16 %v558
        %v748 = vunpack.c.h.b16 %v558
        %v749 = vunpack.c.l.b16 %v559
        %v750 = vpack.c.b16 %v741, %v738
        %v751 = vpack.c.b16 %v742, %v739
        %v752 = vpack.c.b16 %v743, %v740
        %v753 = vpack.c.b16 %v747, %v744
        %v754 = vpack.c.b16 %v748, %v745
        %v755 = vpack.c.b16 %v749, %v746
        %v759 = vsel %vm614, %v550, 0
        %v761 = vsel %vm614, %v551, 0
        %v764 = vsel %vm621, %v753, 0
        %v767 = vsel %vm621, %v754, 0
        %v770 = vsel %vm621, %v755, 0
        %772 = vmatprep.subr.bf16.mxu0 0
        %773 = vmatpush1.bf16.msra.mxu0 0
        %774 = vmatprep.subr.bf16.mxu0 0
        %775 = vmatpush1.bf16.msra.mxu0 0
        %776 = vmatprep.subr.bf16.mxu0 0
        %777 = vmatpush1.bf16.msra.mxu0 0
        %778 = vmatprep.subr.bf16.mxu0 0
        %779 = vmatpush1.bf16.msra.mxu0 0
        %780 = vmatprep.subr.bf16.mxu0 0
        %781 = vmatpush1.bf16.msra.mxu0 0
        %782 = vmatprep.subr.bf16.mxu0 0
        %783 = vmatpush1.bf16.msra.mxu0 0
        %784 = vmatprep.subr.bf16.mxu0 %v767
        %785 = vmatpush1.bf16.msra.mxu0 %v764
        %786 = vmatprep.subr.bf16.mxu0 %v751
        %787 = vmatpush1.bf16.msra.mxu0 %v750
        %788 = vmatprep.subr.bf16.mxu0 0
        %789 = vmatpush2.bf16.msra.mxu0 0
        %790 = vmatprep.subr.bf16.mxu0 0
        %791 = vmatpush2.bf16.msra.mxu0 0
        %792 = vmatprep.subr.bf16.mxu0 0
        %793 = vmatpush2.bf16.msra.mxu0 0
        %794 = vmatprep.subr.bf16.mxu0 0
        %795 = vmatpush2.bf16.msra.mxu0 0
        %796 = vmatprep.subr.bf16.mxu0 0
        %797 = vmatpush2.bf16.msra.mxu0 0
        %798 = vmatprep.subr.bf16.mxu0 0
        %799 = vmatpush2.bf16.msra.mxu0 0
        %800 = vmatprep.subr.bf16.mxu0 0
        %801 = vmatpush2.bf16.msra.mxu0 0
        %802 = vmatprep.subr.bf16.mxu0 0
        %803 = vmatpush2.bf16.msra.mxu0 0
        %804 = vmatprep.mubr.bf16.mxu0 0
        %805 = vmatmul.mubr.bf16.gmra.mxu0 %v759
        %v806 = vpop.f32.mrf.mxu0
        %v807 = vadd.f32 %v666, %v806
        %v808 = vpop.f32.mrf.mxu0
        %v809 = vadd.f32 %v668, %v808
        %v810 = vpop.f32.mrf.mxu0
        %v811 = vadd.f32 %v670, %v810
        %v812 = vpop.f32.mrf.mxu0
        %v813 = vadd.f32 %v672, %v812
        %814 = vmatprep.mubr.bf16.mxu0 0
        %815 = vmatmul.mubr.bf16.gmra.mxu0 %v761
        %v816 = vpop.f32.mrf.mxu0
        %v817 = vadd.f32 %v676, %v816
        %v818 = vpop.f32.mrf.mxu0
        %v819 = vadd.f32 %v678, %v818
        %v820 = vpop.f32.mrf.mxu0
        %v821 = vpop.f32.mrf.mxu0
        %822 = vdwg.mxu0
        %823 = vmatprep.subr.bf16.mxu0 0
        %824 = vmatpush1.bf16.msra.mxu0 0
        %825 = vmatprep.subr.bf16.mxu0 0
        %826 = vmatpush1.bf16.msra.mxu0 0
        %827 = vmatprep.subr.bf16.mxu0 0
        %828 = vmatpush1.bf16.msra.mxu0 0
        %829 = vmatprep.subr.bf16.mxu0 0
        %830 = vmatpush1.bf16.msra.mxu0 0
        %831 = vmatprep.subr.bf16.mxu0 0
        %832 = vmatpush1.bf16.msra.mxu0 0
        %833 = vmatprep.subr.bf16.mxu0 0
        %834 = vmatpush1.bf16.msra.mxu0 0
        %835 = vmatprep.subr.bf16.mxu0 0
        %836 = vmatpush1.bf16.msra.mxu0 %v770
        %837 = vmatprep.subr.bf16.mxu0 0
        %838 = vmatpush1.bf16.msra.mxu0 %v752
        %839 = vmatprep.subr.bf16.mxu0 0
        %840 = vmatpush2.bf16.msra.mxu0 0
        %841 = vmatprep.subr.bf16.mxu0 0
        %842 = vmatpush2.bf16.msra.mxu0 0
        %843 = vmatprep.subr.bf16.mxu0 0
        %844 = vmatpush2.bf16.msra.mxu0 0
        %845 = vmatprep.subr.bf16.mxu0 0
        %846 = vmatpush2.bf16.msra.mxu0 0
        %847 = vmatprep.subr.bf16.mxu0 0
        %848 = vmatpush2.bf16.msra.mxu0 0
        %849 = vmatprep.subr.bf16.mxu0 0
        %850 = vmatpush2.bf16.msra.mxu0 0
        %851 = vmatprep.subr.bf16.mxu0 0
        %852 = vmatpush2.bf16.msra.mxu0 0
        %853 = vmatprep.subr.bf16.mxu0 0
        %854 = vmatpush2.bf16.msra.mxu0 0
        %855 = vmatprep.mubr.bf16.mxu0 0
        %856 = vmatmul.mubr.bf16.gmra.mxu0 %v759
        %v857 = vpop.f32.mrf.mxu0
        %v858 = vadd.f32 %v717, %v857
        %v859 = vpop.f32.mrf.mxu0
        %v860 = vpop.f32.mrf.mxu0
        %v861 = vadd.f32 %v720, %v860
        %v862 = vpop.f32.mrf.mxu0
        %863 = vmatprep.mubr.bf16.mxu0 0
        %864 = vmatmul.mubr.bf16.gmra.mxu0 %v761
        %v865 = vpop.f32.mrf.mxu0
        %v866 = vadd.f32 %v725, %v865
        %v867 = vpop.f32.mrf.mxu0
        %v868 = vpop.f32.mrf.mxu0
        %v869 = vpop.f32.mrf.mxu0
        %870 = vdwg.mxu0
        %s871 = scalar_lea.vmem [#allocation2], 96
        %v872 = vld [vmem:[%s871] sm:$0xff]
        %v873 = vld [vmem:[%s871 + $0x8] sm:$0xf]
        %v874 = vld [vmem:[%s871 + $0xc] sm:$0xff]
        %v875 = vld [vmem:[%s871 + $0x14] sm:$0xf]
        %v876 = vld [vmem:[%s871 + $0x18] sm:$0xff]
        %v877 = vld [vmem:[%s871 + $0x20] sm:$0xf]
        %v878 = vld [vmem:[%s871 + $0x24] sm:$0x33]
        %v879 = vld [vmem:[%s871 + $0x2c] sm:$0x3]
        %vm882 = vcmask 1046528
        %v883 = vrot.slane %v550, 1
        %v884 = vrot.slane %v551, 1
        %v885 = vsel %vm882, %v883, %v884
        %v894 = vunpack.c.l.b16 %v872
        %v895 = vunpack.c.h.b16 %v872
        %v896 = vunpack.c.l.b16 %v873
        %v897 = vunpack.c.l.b16 %v874
        %v898 = vunpack.c.h.b16 %v874
        %v899 = vunpack.c.l.b16 %v875
        %v900 = vunpack.c.l.b16 %v876
        %v901 = vunpack.c.h.b16 %v876
        %v902 = vunpack.c.l.b16 %v877
        %v903 = vunpack.c.l.b16 %v878
        %v904 = vunpack.c.h.b16 %v878
        %v905 = vunpack.c.l.b16 %v879
        %v906 = vpack.c.b16 %v897, %v894
        %v907 = vpack.c.b16 %v898, %v895
        %v908 = vpack.c.b16 %v899, %v896
        %v909 = vpack.c.b16 %v903, %v900
        %v910 = vpack.c.b16 %v904, %v901
        %v911 = vpack.c.b16 %v905, %v902
        %v916 = vsel %vm614, %v885, 0
        %v919 = vsel %vm614, %v884, 0
        %v922 = vsel %vm621, %v909, 0
        %v925 = vsel %vm621, %v910, 0
        %v928 = vsel %vm621, %v911, 0
        %930 = vmatprep.subr.bf16.mxu0 0
        %931 = vmatpush1.bf16.msra.mxu0 0
        %932 = vmatprep.subr.bf16.mxu0 0
        %933 = vmatpush1.bf16.msra.mxu0 0
        %934 = vmatprep.subr.bf16.mxu0 0
        %935 = vmatpush1.bf16.msra.mxu0 0
        %936 = vmatprep.subr.bf16.mxu0 0
        %937 = vmatpush1.bf16.msra.mxu0 0
        %938 = vmatprep.subr.bf16.mxu0 0
        %939 = vmatpush1.bf16.msra.mxu0 0
        %940 = vmatprep.subr.bf16.mxu0 0
        %941 = vmatpush1.bf16.msra.mxu0 0
        %942 = vmatprep.subr.bf16.mxu0 %v925
        %943 = vmatpush1.bf16.msra.mxu0 %v922
        %944 = vmatprep.subr.bf16.mxu0 %v907
        %945 = vmatpush1.bf16.msra.mxu0 %v906
        %946 = vmatprep.subr.bf16.mxu0 0
        %947 = vmatpush2.bf16.msra.mxu0 0
        %948 = vmatprep.subr.bf16.mxu0 0
        %949 = vmatpush2.bf16.msra.mxu0 0
        %950 = vmatprep.subr.bf16.mxu0 0
        %951 = vmatpush2.bf16.msra.mxu0 0
        %952 = vmatprep.subr.bf16.mxu0 0
        %953 = vmatpush2.bf16.msra.mxu0 0
        %954 = vmatprep.subr.bf16.mxu0 0
        %955 = vmatpush2.bf16.msra.mxu0 0
        %956 = vmatprep.subr.bf16.mxu0 0
        %957 = vmatpush2.bf16.msra.mxu0 0
        %958 = vmatprep.subr.bf16.mxu0 0
        %959 = vmatpush2.bf16.msra.mxu0 0
        %960 = vmatprep.subr.bf16.mxu0 0
        %961 = vmatpush2.bf16.msra.mxu0 0
        %962 = vmatprep.mubr.bf16.mxu0 0
        %963 = vmatmul.mubr.bf16.gmra.mxu0 %v916
        %v964 = vpop.f32.mrf.mxu0
        %v965 = vadd.f32 0.0, %v964
        %v966 = vpop.f32.mrf.mxu0
        %v967 = vadd.f32 0.0, %v966
        %v968 = vpop.f32.mrf.mxu0
        %v969 = vadd.f32 0.0, %v968
        %v970 = vpop.f32.mrf.mxu0
        %v971 = vadd.f32 0.0, %v970
        %972 = vmatprep.mubr.bf16.mxu0 0
        %973 = vmatmul.mubr.bf16.gmra.mxu0 %v919
        %v974 = vpop.f32.mrf.mxu0
        %v975 = vadd.f32 0.0, %v974
        %v976 = vpop.f32.mrf.mxu0
        %v977 = vadd.f32 0.0, %v976
        %v978 = vpop.f32.mrf.mxu0
        %v979 = vpop.f32.mrf.mxu0
        %980 = vdwg.mxu0
        %981 = vmatprep.subr.bf16.mxu0 0
        %982 = vmatpush1.bf16.msra.mxu0 0
        %983 = vmatprep.subr.bf16.mxu0 0
        %984 = vmatpush1.bf16.msra.mxu0 0
        %985 = vmatprep.subr.bf16.mxu0 0
        %986 = vmatpush1.bf16.msra.mxu0 0
        %987 = vmatprep.subr.bf16.mxu0 0
        %988 = vmatpush1.bf16.msra.mxu0 0
        %989 = vmatprep.subr.bf16.mxu0 0
        %990 = vmatpush1.bf16.msra.mxu0 0
        %991 = vmatprep.subr.bf16.mxu0 0
        %992 = vmatpush1.bf16.msra.mxu0 0
        %993 = vmatprep.subr.bf16.mxu0 0
        %994 = vmatpush1.bf16.msra.mxu0 %v928
        %995 = vmatprep.subr.bf16.mxu0 0
        %996 = vmatpush1.bf16.msra.mxu0 %v908
        %997 = vmatprep.subr.bf16.mxu0 0
        %998 = vmatpush2.bf16.msra.mxu0 0
        %999 = vmatprep.subr.bf16.mxu0 0
        %1000 = vmatpush2.bf16.msra.mxu0 0
        %1001 = vmatprep.subr.bf16.mxu0 0
        %1002 = vmatpush2.bf16.msra.mxu0 0
        %1003 = vmatprep.subr.bf16.mxu0 0
        %1004 = vmatpush2.bf16.msra.mxu0 0
        %1005 = vmatprep.subr.bf16.mxu0 0
        %1006 = vmatpush2.bf16.msra.mxu0 0
        %1007 = vmatprep.subr.bf16.mxu0 0
        %1008 = vmatpush2.bf16.msra.mxu0 0
        %1009 = vmatprep.subr.bf16.mxu0 0
        %1010 = vmatpush2.bf16.msra.mxu0 0
        %1011 = vmatprep.subr.bf16.mxu0 0
        %1012 = vmatpush2.bf16.msra.mxu0 0
        %1013 = vmatprep.mubr.bf16.mxu0 0
        %1014 = vmatmul.mubr.bf16.gmra.mxu0 %v916
        %v1015 = vpop.f32.mrf.mxu0
        %v1016 = vadd.f32 0.0, %v1015
        %v1017 = vpop.f32.mrf.mxu0
        %v1018 = vpop.f32.mrf.mxu0
        %v1019 = vadd.f32 0.0, %v1018
        %v1020 = vpop.f32.mrf.mxu0
        %1021 = vmatprep.mubr.bf16.mxu0 0
        %1022 = vmatmul.mubr.bf16.gmra.mxu0 %v919
        %v1023 = vpop.f32.mrf.mxu0
        %v1024 = vadd.f32 0.0, %v1023
        %v1025 = vpop.f32.mrf.mxu0
        %v1026 = vpop.f32.mrf.mxu0
        %v1027 = vpop.f32.mrf.mxu0
        %1028 = vdwg.mxu0
        %v1029 = vadd.f32 %v807, %v965
        %v1030 = vadd.f32 %v809, %v967
        %v1031 = vadd.f32 %v858, %v1016
        %v1032 = vadd.f32 %v811, %v969
        %v1033 = vadd.f32 %v813, %v971
        %v1034 = vadd.f32 %v861, %v1019
        %v1035 = vadd.f32 %v817, %v975
        %v1036 = vadd.f32 %v819, %v977
        %v1037 = vadd.f32 %v866, %v1024
        %s1038 = scalar_lea.vmem [#allocation2], 144
        %v1039 = vld [vmem:[%s1038] sm:$0xff]
        %v1040 = vld [vmem:[%s1038 + $0x8] sm:$0xf]
        %v1041 = vld [vmem:[%s1038 + $0xc] sm:$0xff]
        %v1042 = vld [vmem:[%s1038 + $0x14] sm:$0xf]
        %v1043 = vld [vmem:[%s1038 + $0x18] sm:$0xff]
        %v1044 = vld [vmem:[%s1038 + $0x20] sm:$0xf]
        %v1045 = vld [vmem:[%s1038 + $0x24] sm:$0x33]
        %v1046 = vld [vmem:[%s1038 + $0x2c] sm:$0x3]
        %vm1047 = vsmask.f32 6400
        %v1048 = vrot.slane %v571, 1
        %v1049 = vrot.slane %v573, 2
        %v1050 = vor.u32 %v1048, %v1049
        %v1051 = vrot.slane %v582, 1
        %v1052 = vrot.slane %v578, 2
        %v1053 = vor.u32 %v1051, %v1052
        %v1054 = vsel %vm1047, %v1050, %v1053
        %v1063 = vunpack.c.l.b16 %v1039
        %v1064 = vunpack.c.h.b16 %v1039
        %v1065 = vunpack.c.l.b16 %v1040
        %v1066 = vunpack.c.l.b16 %v1041
        %v1067 = vunpack.c.h.b16 %v1041
        %v1068 = vunpack.c.l.b16 %v1042
        %v1069 = vunpack.c.l.b16 %v1043
        %v1070 = vunpack.c.h.b16 %v1043
        %v1071 = vunpack.c.l.b16 %v1044
        %v1072 = vunpack.c.l.b16 %v1045
        %v1073 = vunpack.c.h.b16 %v1045
        %v1074 = vunpack.c.l.b16 %v1046
        %v1075 = vpack.c.b16 %v1066, %v1063
        %v1076 = vpack.c.b16 %v1067, %v1064
        %v1077 = vpack.c.b16 %v1068, %v1065
        %v1078 = vpack.c.b16 %v1072, %v1069
        %v1079 = vpack.c.b16 %v1073, %v1070
        %v1080 = vpack.c.b16 %v1074, %v1071
        %v1085 = vsel %vm614, %v1054, 0
        %v1088 = vsel %vm614, %v1053, 0
        %v1091 = vsel %vm621, %v1078, 0
        %v1094 = vsel %vm621, %v1079, 0
        %v1097 = vsel %vm621, %v1080, 0
        %1099 = vmatprep.subr.bf16.mxu0 0
        %1100 = vmatpush1.bf16.msra.mxu0 0
        %1101 = vmatprep.subr.bf16.mxu0 0
        %1102 = vmatpush1.bf16.msra.mxu0 0
        %1103 = vmatprep.subr.bf16.mxu0 0
        %1104 = vmatpush1.bf16.msra.mxu0 0
        %1105 = vmatprep.subr.bf16.mxu0 0
        %1106 = vmatpush1.bf16.msra.mxu0 0
        %1107 = vmatprep.subr.bf16.mxu0 0
        %1108 = vmatpush1.bf16.msra.mxu0 0
        %1109 = vmatprep.subr.bf16.mxu0 0
        %1110 = vmatpush1.bf16.msra.mxu0 0
        %1111 = vmatprep.subr.bf16.mxu0 %v1094
        %1112 = vmatpush1.bf16.msra.mxu0 %v1091
        %1113 = vmatprep.subr.bf16.mxu0 %v1076
        %1114 = vmatpush1.bf16.msra.mxu0 %v1075
        %1115 = vmatprep.subr.bf16.mxu0 0
        %1116 = vmatpush2.bf16.msra.mxu0 0
        %1117 = vmatprep.subr.bf16.mxu0 0
        %1118 = vmatpush2.bf16.msra.mxu0 0
        %1119 = vmatprep.subr.bf16.mxu0 0
        %1120 = vmatpush2.bf16.msra.mxu0 0
        %1121 = vmatprep.subr.bf16.mxu0 0
        %1122 = vmatpush2.bf16.msra.mxu0 0
        %1123 = vmatprep.subr.bf16.mxu0 0
        %1124 = vmatpush2.bf16.msra.mxu0 0
        %1125 = vmatprep.subr.bf16.mxu0 0
        %1126 = vmatpush2.bf16.msra.mxu0 0
        %1127 = vmatprep.subr.bf16.mxu0 0
        %1128 = vmatpush2.bf16.msra.mxu0 0
        %1129 = vmatprep.subr.bf16.mxu0 0
        %1130 = vmatpush2.bf16.msra.mxu0 0
        %1131 = vmatprep.mubr.bf16.mxu0 0
        %1132 = vmatmul.mubr.bf16.gmra.mxu0 %v1085
        %v1133 = vpop.f32.mrf.mxu0
        %v1134 = vadd.f32 0.0, %v1133
        %v1135 = vpop.f32.mrf.mxu0
        %v1136 = vadd.f32 0.0, %v1135
        %v1137 = vpop.f32.mrf.mxu0
        %v1138 = vadd.f32 0.0, %v1137
        %v1139 = vpop.f32.mrf.mxu0
        %v1140 = vadd.f32 0.0, %v1139
        %1141 = vmatprep.mubr.bf16.mxu0 0
        %1142 = vmatmul.mubr.bf16.gmra.mxu0 %v1088
        %v1143 = vpop.f32.mrf.mxu0
        %v1144 = vadd.f32 0.0, %v1143
        %v1145 = vpop.f32.mrf.mxu0
        %v1146 = vadd.f32 0.0, %v1145
        %v1147 = vpop.f32.mrf.mxu0
        %v1148 = vpop.f32.mrf.mxu0
        %1149 = vdwg.mxu0
        %1150 = vmatprep.subr.bf16.mxu0 0
        %1151 = vmatpush1.bf16.msra.mxu0 0
        %1152 = vmatprep.subr.bf16.mxu0 0
        %1153 = vmatpush1.bf16.msra.mxu0 0
        %1154 = vmatprep.subr.bf16.mxu0 0
        %1155 = vmatpush1.bf16.msra.mxu0 0
        %1156 = vmatprep.subr.bf16.mxu0 0
        %1157 = vmatpush1.bf16.msra.mxu0 0
        %1158 = vmatprep.subr.bf16.mxu0 0
        %1159 = vmatpush1.bf16.msra.mxu0 0
        %1160 = vmatprep.subr.bf16.mxu0 0
        %1161 = vmatpush1.bf16.msra.mxu0 0
        %1162 = vmatprep.subr.bf16.mxu0 0
        %1163 = vmatpush1.bf16.msra.mxu0 %v1097
        %1164 = vmatprep.subr.bf16.mxu0 0
        %1165 = vmatpush1.bf16.msra.mxu0 %v1077
        %1166 = vmatprep.subr.bf16.mxu0 0
        %1167 = vmatpush2.bf16.msra.mxu0 0
        %1168 = vmatprep.subr.bf16.mxu0 0
        %1169 = vmatpush2.bf16.msra.mxu0 0
        %1170 = vmatprep.subr.bf16.mxu0 0
        %1171 = vmatpush2.bf16.msra.mxu0 0
        %1172 = vmatprep.subr.bf16.mxu0 0
        %1173 = vmatpush2.bf16.msra.mxu0 0
        %1174 = vmatprep.subr.bf16.mxu0 0
        %1175 = vmatpush2.bf16.msra.mxu0 0
        %1176 = vmatprep.subr.bf16.mxu0 0
        %1177 = vmatpush2.bf16.msra.mxu0 0
        %1178 = vmatprep.subr.bf16.mxu0 0
        %1179 = vmatpush2.bf16.msra.mxu0 0
        %1180 = vmatprep.subr.bf16.mxu0 0
        %1181 = vmatpush2.bf16.msra.mxu0 0
        %1182 = vmatprep.mubr.bf16.mxu0 0
        %1183 = vmatmul.mubr.bf16.gmra.mxu0 %v1085
        %v1184 = vpop.f32.mrf.mxu0
        %v1185 = vadd.f32 0.0, %v1184
        %v1186 = vpop.f32.mrf.mxu0
        %v1187 = vpop.f32.mrf.mxu0
        %v1188 = vadd.f32 0.0, %v1187
        %v1189 = vpop.f32.mrf.mxu0
        %1190 = vmatprep.mubr.bf16.mxu0 0
        %1191 = vmatmul.mubr.bf16.gmra.mxu0 %v1088
        %v1192 = vpop.f32.mrf.mxu0
        %v1193 = vadd.f32 0.0, %v1192
        %v1194 = vpop.f32.mrf.mxu0
        %v1195 = vpop.f32.mrf.mxu0
        %v1196 = vpop.f32.mrf.mxu0
        %1197 = vdwg.mxu0
        %v1198 = vadd.f32 %v1029, %v1134
        %v1199 = vadd.f32 %v1030, %v1136
        %v1200 = vadd.f32 %v1031, %v1185
        %v1201 = vadd.f32 %v1032, %v1138
        %v1202 = vadd.f32 %v1033, %v1140
        %v1203 = vadd.f32 %v1034, %v1188
        %v1204 = vadd.f32 %v1035, %v1144
        %v1205 = vadd.f32 %v1036, %v1146
        %v1206 = vadd.f32 %v1037, %v1193
        %s1207 = scalar_lea.vmem [#allocation2], 192
        %v1208 = vld [vmem:[%s1207] sm:$0xff]
        %v1209 = vld [vmem:[%s1207 + $0x8] sm:$0xf]
        %v1210 = vld [vmem:[%s1207 + $0xc] sm:$0xff]
        %v1211 = vld [vmem:[%s1207 + $0x14] sm:$0xf]
        %v1212 = vld [vmem:[%s1207 + $0x18] sm:$0xff]
        %v1213 = vld [vmem:[%s1207 + $0x20] sm:$0xf]
        %v1214 = vld [vmem:[%s1207 + $0x24] sm:$0x33]
        %v1215 = vld [vmem:[%s1207 + $0x2c] sm:$0x3]
        %vm1216 = vcmask 1045504
        %v1217 = vrot.slane %v550, 2
        %v1218 = vrot.slane %v551, 2
        %v1219 = vsel %vm1216, %v1217, %v1218
        %v1228 = vunpack.c.l.b16 %v1208
        %v1229 = vunpack.c.h.b16 %v1208
        %v1230 = vunpack.c.l.b16 %v1209
        %v1231 = vunpack.c.l.b16 %v1210
        %v1232 = vunpack.c.h.b16 %v1210
        %v1233 = vunpack.c.l.b16 %v1211
        %v1234 = vunpack.c.l.b16 %v1212
        %v1235 = vunpack.c.h.b16 %v1212
        %v1236 = vunpack.c.l.b16 %v1213
        %v1237 = vunpack.c.l.b16 %v1214
        %v1238 = vunpack.c.h.b16 %v1214
        %v1239 = vunpack.c.l.b16 %v1215
        %v1240 = vpack.c.b16 %v1231, %v1228
        %v1241 = vpack.c.b16 %v1232, %v1229
        %v1242 = vpack.c.b16 %v1233, %v1230
        %v1243 = vpack.c.b16 %v1237, %v1234
        %v1244 = vpack.c.b16 %v1238, %v1235
        %v1245 = vpack.c.b16 %v1239, %v1236
        %v1250 = vsel %vm614, %v1219, 0
        %v1253 = vsel %vm614, %v1218, 0
        %v1256 = vsel %vm621, %v1243, 0
        %v1259 = vsel %vm621, %v1244, 0
        %v1262 = vsel %vm621, %v1245, 0
        %1264 = vmatprep.subr.bf16.mxu0 0
        %1265 = vmatpush1.bf16.msra.mxu0 0
        %1266 = vmatprep.subr.bf16.mxu0 0
        %1267 = vmatpush1.bf16.msra.mxu0 0
        %1268 = vmatprep.subr.bf16.mxu0 0
        %1269 = vmatpush1.bf16.msra.mxu0 0
        %1270 = vmatprep.subr.bf16.mxu0 0
        %1271 = vmatpush1.bf16.msra.mxu0 0
        %1272 = vmatprep.subr.bf16.mxu0 0
        %1273 = vmatpush1.bf16.msra.mxu0 0
        %1274 = vmatprep.subr.bf16.mxu0 0
        %1275 = vmatpush1.bf16.msra.mxu0 0
        %1276 = vmatprep.subr.bf16.mxu0 %v1259
        %1277 = vmatpush1.bf16.msra.mxu0 %v1256
        %1278 = vmatprep.subr.bf16.mxu0 %v1241
        %1279 = vmatpush1.bf16.msra.mxu0 %v1240
        %1280 = vmatprep.subr.bf16.mxu0 0
        %1281 = vmatpush2.bf16.msra.mxu0 0
        %1282 = vmatprep.subr.bf16.mxu0 0
        %1283 = vmatpush2.bf16.msra.mxu0 0
        %1284 = vmatprep.subr.bf16.mxu0 0
        %1285 = vmatpush2.bf16.msra.mxu0 0
        %1286 = vmatprep.subr.bf16.mxu0 0
        %1287 = vmatpush2.bf16.msra.mxu0 0
        %1288 = vmatprep.subr.bf16.mxu0 0
        %1289 = vmatpush2.bf16.msra.mxu0 0
        %1290 = vmatprep.subr.bf16.mxu0 0
        %1291 = vmatpush2.bf16.msra.mxu0 0
        %1292 = vmatprep.subr.bf16.mxu0 0
        %1293 = vmatpush2.bf16.msra.mxu0 0
        %1294 = vmatprep.subr.bf16.mxu0 0
        %1295 = vmatpush2.bf16.msra.mxu0 0
        %1296 = vmatprep.mubr.bf16.mxu0 0
        %1297 = vmatmul.mubr.bf16.gmra.mxu0 %v1250
        %v1298 = vpop.f32.mrf.mxu0
        %v1299 = vadd.f32 0.0, %v1298
        %v1300 = vpop.f32.mrf.mxu0
        %v1301 = vadd.f32 0.0, %v1300
        %v1302 = vpop.f32.mrf.mxu0
        %v1303 = vadd.f32 0.0, %v1302
        %v1304 = vpop.f32.mrf.mxu0
        %v1305 = vadd.f32 0.0, %v1304
        %1306 = vmatprep.mubr.bf16.mxu0 0
        %1307 = vmatmul.mubr.bf16.gmra.mxu0 %v1253
        %v1308 = vpop.f32.mrf.mxu0
        %v1309 = vadd.f32 0.0, %v1308
        %v1310 = vpop.f32.mrf.mxu0
        %v1311 = vadd.f32 0.0, %v1310
        %v1312 = vpop.f32.mrf.mxu0
        %v1313 = vpop.f32.mrf.mxu0
        %1314 = vdwg.mxu0
        %1315 = vmatprep.subr.bf16.mxu0 0
        %1316 = vmatpush1.bf16.msra.mxu0 0
        %1317 = vmatprep.subr.bf16.mxu0 0
        %1318 = vmatpush1.bf16.msra.mxu0 0
        %1319 = vmatprep.subr.bf16.mxu0 0
        %1320 = vmatpush1.bf16.msra.mxu0 0
        %1321 = vmatprep.subr.bf16.mxu0 0
        %1322 = vmatpush1.bf16.msra.mxu0 0
        %1323 = vmatprep.subr.bf16.mxu0 0
        %1324 = vmatpush1.bf16.msra.mxu0 0
        %1325 = vmatprep.subr.bf16.mxu0 0
        %1326 = vmatpush1.bf16.msra.mxu0 0
        %1327 = vmatprep.subr.bf16.mxu0 0
        %1328 = vmatpush1.bf16.msra.mxu0 %v1262
        %1329 = vmatprep.subr.bf16.mxu0 0
        %1330 = vmatpush1.bf16.msra.mxu0 %v1242
        %1331 = vmatprep.subr.bf16.mxu0 0
        %1332 = vmatpush2.bf16.msra.mxu0 0
        %1333 = vmatprep.subr.bf16.mxu0 0
        %1334 = vmatpush2.bf16.msra.mxu0 0
        %1335 = vmatprep.subr.bf16.mxu0 0
        %1336 = vmatpush2.bf16.msra.mxu0 0
        %1337 = vmatprep.subr.bf16.mxu0 0
        %1338 = vmatpush2.bf16.msra.mxu0 0
        %1339 = vmatprep.subr.bf16.mxu0 0
        %1340 = vmatpush2.bf16.msra.mxu0 0
        %1341 = vmatprep.subr.bf16.mxu0 0
        %1342 = vmatpush2.bf16.msra.mxu0 0
        %1343 = vmatprep.subr.bf16.mxu0 0
        %1344 = vmatpush2.bf16.msra.mxu0 0
        %1345 = vmatprep.subr.bf16.mxu0 0
        %1346 = vmatpush2.bf16.msra.mxu0 0
        %1347 = vmatprep.mubr.bf16.mxu0 0
        %1348 = vmatmul.mubr.bf16.gmra.mxu0 %v1250
        %v1349 = vpop.f32.mrf.mxu0
        %v1350 = vadd.f32 0.0, %v1349
        %v1351 = vpop.f32.mrf.mxu0
        %v1352 = vpop.f32.mrf.mxu0
        %v1353 = vadd.f32 0.0, %v1352
        %v1354 = vpop.f32.mrf.mxu0
        %1355 = vmatprep.mubr.bf16.mxu0 0
        %1356 = vmatmul.mubr.bf16.gmra.mxu0 %v1253
        %v1357 = vpop.f32.mrf.mxu0
        %v1358 = vadd.f32 0.0, %v1357
        %v1359 = vpop.f32.mrf.mxu0
        %v1360 = vpop.f32.mrf.mxu0
        %v1361 = vpop.f32.mrf.mxu0
        %1362 = vdwg.mxu0
        %v1363 = vadd.f32 %v1198, %v1299
        %v1364 = vadd.f32 %v1199, %v1301
        %v1365 = vadd.f32 %v1200, %v1350
        %v1366 = vadd.f32 %v1201, %v1303
        %v1367 = vadd.f32 %v1202, %v1305
        %v1368 = vadd.f32 %v1203, %v1353
        %v1369 = vadd.f32 %v1204, %v1309
        %v1370 = vadd.f32 %v1205, %v1311
        %v1371 = vadd.f32 %v1206, %v1358
        %v1372 = vld [vmem:[#allocation5] sm:$0x7]
        %v1374 = vlaneseq
        %v1375 = vshrl.u32 %v1374, 7
        %v1376 = vsub.s32 0, %v1375
        %v1377 = vrot.slane %v1372, %v1376
        %v1378 = vlaneseq
        %v1379 = vshrl.u32 %v1378, 7
        %v1380 = vsub.s32 1, %v1379
        %v1381 = vrot.slane %v1372, %v1380
        %v1382 = vlaneseq
        %v1383 = vshrl.u32 %v1382, 7
        %v1384 = vsub.s32 2, %v1383
        %v1385 = vrot.slane %v1372, %v1384
        %v1389 = vadd.f32 %v1363, %v1377
        %v1390 = vadd.f32 %v1364, %v1381
        %v1391 = vadd.f32 %v1365, %v1385
        %v1392 = vadd.f32 %v1366, %v1377
        %v1393 = vadd.f32 %v1367, %v1381
        %v1394 = vadd.f32 %v1368, %v1385
        %v1395 = vadd.f32 %v1369, %v1377
        %v1396 = vadd.f32 %v1370, %v1381
        %v1397 = vadd.f32 %v1371, %v1385
        %v1398 = vmax.f32 %v1389, 0.0
        %v1399 = vmax.f32 %v1390, 0.0
        %v1400 = vmax.f32 %v1391, 0.0
        %v1401 = vmax.f32 %v1392, 0.0
        %v1402 = vmax.f32 %v1393, 0.0
        %v1403 = vmax.f32 %v1394, 0.0
        %v1404 = vmax.f32 %v1395, 0.0
        %v1405 = vmax.f32 %v1396, 0.0
        %v1406 = vmax.f32 %v1397, 0.0
        %v1416 = vcombine.low %v1398, %v1399
        %v1417 = vcombine.high %v1398, %v1399
        %v1418 = vcombine.high %v1400, %v1400
        %v1420 = vunpack.c.l.s4 1983009808
        %v1421 = vunpack.c.0.s8 %v1420
        %v1422 = vlaneseq
        %v1423 = vshrl.u32 %v1422, 7
        %v1424 = vsub.s32 %v1421, %v1423
        %v1425 = vrot.slane %v1416, %v1424
        %v1427 = vunpack.c.l.s4 1983009808
        %v1428 = vunpack.c.0.s8 %v1427
        %v1429 = vlaneseq
        %v1430 = vshrl.u32 %v1429, 7
        %v1431 = vsub.s32 %v1428, %v1430
        %v1432 = vrot.slane %v1417, %v1431
        %v1434 = vunpack.c.l.s4 1983009808
        %v1435 = vunpack.c.0.s8 %v1434
        %v1436 = vlaneseq
        %v1437 = vshrl.u32 %v1436, 7
        %v1438 = vsub.s32 %v1435, %v1437
        %v1439 = vrot.slane %v1400, %v1438
        %v1441 = vunpack.c.l.s4 1983009808
        %v1442 = vunpack.c.0.s8 %v1441
        %v1443 = vlaneseq
        %v1444 = vshrl.u32 %v1443, 7
        %v1445 = vsub.s32 %v1442, %v1444
        %v1446 = vrot.slane %v1418, %v1445
        %v1447 = vcombine.low %v1425, %v1439
        %v1448 = vcombine.high %v1425, %v1439
        %v1449 = vcombine.low %v1432, %v1446
        %v1450 = vcombine.high %v1432, %v1446
        %v1451 = vcombine.low %v1401, %v1402
        %v1452 = vcombine.high %v1401, %v1402
        %v1453 = vcombine.high %v1403, %v1403
        %v1455 = vunpack.c.l.s4 1983009808
        %v1456 = vunpack.c.0.s8 %v1455
        %v1457 = vlaneseq
        %v1458 = vshrl.u32 %v1457, 7
        %v1459 = vsub.s32 %v1456, %v1458
        %v1460 = vrot.slane %v1451, %v1459
        %v1462 = vunpack.c.l.s4 1983009808
        %v1463 = vunpack.c.0.s8 %v1462
        %v1464 = vlaneseq
        %v1465 = vshrl.u32 %v1464, 7
        %v1466 = vsub.s32 %v1463, %v1465
        %v1467 = vrot.slane %v1452, %v1466
        %v1469 = vunpack.c.l.s4 1983009808
        %v1470 = vunpack.c.0.s8 %v1469
        %v1471 = vlaneseq
        %v1472 = vshrl.u32 %v1471, 7
        %v1473 = vsub.s32 %v1470, %v1472
        %v1474 = vrot.slane %v1403, %v1473
        %v1476 = vunpack.c.l.s4 1983009808
        %v1477 = vunpack.c.0.s8 %v1476
        %v1478 = vlaneseq
        %v1479 = vshrl.u32 %v1478, 7
        %v1480 = vsub.s32 %v1477, %v1479
        %v1481 = vrot.slane %v1453, %v1480
        %v1482 = vcombine.low %v1460, %v1474
        %v1483 = vcombine.high %v1460, %v1474
        %v1484 = vcombine.low %v1467, %v1481
        %v1485 = vcombine.high %v1467, %v1481
        %v1486 = vcombine.low %v1404, %v1405
        %v1487 = vcombine.high %v1404, %v1405
        %v1488 = vcombine.high %v1406, %v1406
        %v1490 = vunpack.c.l.s4 1983009808
        %v1491 = vunpack.c.0.s8 %v1490
        %v1492 = vlaneseq
        %v1493 = vshrl.u32 %v1492, 7
        %v1494 = vsub.s32 %v1491, %v1493
        %v1495 = vrot.slane %v1486, %v1494
        %v1497 = vunpack.c.l.s4 1983009808
        %v1498 = vunpack.c.0.s8 %v1497
        %v1499 = vlaneseq
        %v1500 = vshrl.u32 %v1499, 7
        %v1501 = vsub.s32 %v1498, %v1500
        %v1502 = vrot.slane %v1487, %v1501
        %v1504 = vunpack.c.l.s4 1983009808
        %v1505 = vunpack.c.0.s8 %v1504
        %v1506 = vlaneseq
        %v1507 = vshrl.u32 %v1506, 7
        %v1508 = vsub.s32 %v1505, %v1507
        %v1509 = vrot.slane %v1406, %v1508
        %v1511 = vunpack.c.l.s4 1983009808
        %v1512 = vunpack.c.0.s8 %v1511
        %v1513 = vlaneseq
        %v1514 = vshrl.u32 %v1513, 7
        %v1515 = vsub.s32 %v1512, %v1514
        %v1516 = vrot.slane %v1488, %v1515
        %v1517 = vcombine.low %v1495, %v1509
        %v1518 = vcombine.high %v1495, %v1509
        %v1519 = vcombine.low %v1502, %v1516
        %v1520 = vcombine.high %v1502, %v1516
        %v1533 = vrot.slane %v1447, 7
        %v1534 = vrot.slane %v1533, 2
        %v1535 = vrot.slane %v1448, 7
        %v1536 = vrot.slane %v1535, 2
        %v1537 = vrot.slane %v1449, 7
        %v1538 = vrot.slane %v1537, 2
        %v1539 = vrot.slane %v1450, 7
        %v1540 = vrot.slane %v1539, 2
        %v1541 = vrot.slane %v1482, 7
        %v1542 = vrot.slane %v1541, 2
        %v1543 = vrot.slane %v1483, 7
        %v1544 = vrot.slane %v1543, 2
        %v1545 = vrot.slane %v1484, 7
        %v1546 = vrot.slane %v1545, 2
        %v1547 = vrot.slane %v1485, 7
        %v1548 = vrot.slane %v1547, 2
        %v1549 = vrot.slane %v1517, 7
        %v1550 = vrot.slane %v1549, 2
        %v1551 = vrot.slane %v1518, 7
        %v1552 = vrot.slane %v1551, 2
        %v1553 = vrot.slane %v1519, 7
        %v1554 = vrot.slane %v1553, 2
        %v1555 = vrot.slane %v1520, 7
        %v1556 = vrot.slane %v1555, 2
        %v1569 = vadd.f32 %v1447, %v1534
        %v1570 = vadd.f32 %v1448, %v1536
        %v1571 = vadd.f32 %v1449, %v1538
        %v1572 = vadd.f32 %v1450, %v1540
        %v1573 = vadd.f32 %v1482, %v1542
        %v1574 = vadd.f32 %v1483, %v1544
        %v1575 = vadd.f32 %v1484, %v1546
        %v1576 = vadd.f32 %v1485, %v1548
        %v1577 = vadd.f32 %v1517, %v1550
        %v1578 = vadd.f32 %v1518, %v1552
        %v1579 = vadd.f32 %v1519, %v1554
        %v1580 = vadd.f32 %v1520, %v1556
        %v1581 = vld [vmem:[%s3] sm:$0xff]
        %v1582 = vld [vmem:[%s3 + $0x8] sm:$0xff]
        %v1583 = vld [vmem:[%s3 + $0x10] sm:$0xff]
        %v1584 = vld [vmem:[%s3 + $0x18] sm:$0xff]
        %v1585 = vld [vmem:[%s3 + $0x20] sm:$0xff]
        %v1586 = vld [vmem:[%s3 + $0x28] sm:$0xff]
        %v1587 = vld [vmem:[%s3 + $0x30] sm:$0xff]
        %v1588 = vld [vmem:[%s3 + $0x38] sm:$0xff]
        %v1589 = vld [vmem:[%s3 + $0x40] sm:$0xff]
        %v1590 = vld [vmem:[%s3 + $0x48] sm:$0xff]
        %v1591 = vld [vmem:[%s3 + $0x50] sm:$0xff]
        %v1592 = vld [vmem:[%s3 + $0x58] sm:$0xff]
        %v1593 = vld [vmem:[%s3 + $0x60] sm:$0xff]
        %v1594 = vld [vmem:[%s3 + $0x68] sm:$0xff]
        %v1595 = vld [vmem:[%s3 + $0x70] sm:$0xff]
        %v1596 = vld [vmem:[%s3 + $0x78] sm:$0xff]
        %v1597 = vld [vmem:[%s3 + $0x80] sm:$0xff]
        %v1598 = vld [vmem:[%s3 + $0x88] sm:$0xff]
        %v1599 = vld [vmem:[%s3 + $0x90] sm:$0xff]
        %v1600 = vld [vmem:[%s3 + $0x98] sm:$0xff]
        %v1601 = vld [vmem:[%s3 + $0xa0] sm:$0xff]
        %v1602 = vld [vmem:[%s3 + $0xa8] sm:$0xff]
        %v1603 = vld [vmem:[%s3 + $0xb0] sm:$0xff]
        %v1604 = vld [vmem:[%s3 + $0xb8] sm:$0xff]
        %v1605 = vld [vmem:[%s3 + $0xc0] sm:$0xff]
        %v1606 = vld [vmem:[%s3 + $0xc8] sm:$0xff]
        %v1607 = vld [vmem:[%s3 + $0xd0] sm:$0xff]
        %v1608 = vld [vmem:[%s3 + $0xd8] sm:$0xff]
        %v1609 = vld [vmem:[%s3 + $0xe0] sm:$0xff]
        %v1610 = vld [vmem:[%s3 + $0xe8] sm:$0xff]
        %v1611 = vld [vmem:[%s3 + $0xf0] sm:$0xff]
        %v1612 = vld [vmem:[%s3 + $0xf8] sm:$0xff]
        %v1613 = vld [vmem:[%s3 + $0x100] sm:$0xff]
        %v1614 = vld [vmem:[%s3 + $0x108] sm:$0xff]
        %v1615 = vld [vmem:[%s3 + $0x110] sm:$0xff]
        %v1616 = vld [vmem:[%s3 + $0x118] sm:$0xff]
        %v1617 = vld [vmem:[%s3 + $0x120] sm:$0xff]
        %v1618 = vld [vmem:[%s3 + $0x128] sm:$0xff]
        %v1619 = vld [vmem:[%s3 + $0x130] sm:$0xff]
        %v1620 = vld [vmem:[%s3 + $0x138] sm:$0xff]
        %v1621 = vld [vmem:[%s3 + $0x140] sm:$0xff]
        %v1622 = vld [vmem:[%s3 + $0x148] sm:$0xff]
        %v1623 = vld [vmem:[%s3 + $0x150] sm:$0xff]
        %v1624 = vld [vmem:[%s3 + $0x158] sm:$0xff]
        %v1625 = vld [vmem:[%s3 + $0x160] sm:$0xff]
        %v1626 = vld [vmem:[%s3 + $0x168] sm:$0xff]
        %v1627 = vld [vmem:[%s3 + $0x170] sm:$0xff]
        %v1628 = vld [vmem:[%s3 + $0x178] sm:$0xff]
        %v1629 = vld [vmem:[%s3 + $0x180] sm:$0xff]
        %v1630 = vld [vmem:[%s3 + $0x188] sm:$0xff]
        %v1631 = vld [vmem:[%s3 + $0x190] sm:$0xff]
        %v1632 = vld [vmem:[%s3 + $0x198] sm:$0xff]
        %v1633 = vld [vmem:[%s3 + $0x1a0] sm:$0xff]
        %v1634 = vld [vmem:[%s3 + $0x1a8] sm:$0xff]
        %v1635 = vld [vmem:[%s3 + $0x1b0] sm:$0xff]
        %v1636 = vld [vmem:[%s3 + $0x1b8] sm:$0xff]
        %v1637 = vld [vmem:[%s3 + $0x1c0] sm:$0xff]
        %v1638 = vld [vmem:[%s3 + $0x1c8] sm:$0xff]
        %v1639 = vld [vmem:[%s3 + $0x1d0] sm:$0xff]
        %v1640 = vld [vmem:[%s3 + $0x1d8] sm:$0xff]
        %v1641 = vld [vmem:[%s3 + $0x1e0] sm:$0xff]
        %v1642 = vld [vmem:[%s3 + $0x1e8] sm:$0xff]
        %v1643 = vld [vmem:[%s3 + $0x1f0] sm:$0xff]
        %v1644 = vld [vmem:[%s3 + $0x1f8] sm:$0xff]
        %v1645 = vld [vmem:[%s3 + $0x200] sm:$0xff]
        %v1646 = vld [vmem:[%s3 + $0x208] sm:$0xff]
        %v1647 = vld [vmem:[%s3 + $0x210] sm:$0xff]
        %v1648 = vld [vmem:[%s3 + $0x218] sm:$0xff]
        %v1649 = vld [vmem:[%s3 + $0x220] sm:$0xff]
        %v1650 = vld [vmem:[%s3 + $0x228] sm:$0xff]
        %v1651 = vld [vmem:[%s3 + $0x230] sm:$0xff]
        %v1652 = vld [vmem:[%s3 + $0x238] sm:$0xff]
        %v1653 = vld [vmem:[%s3 + $0x240] sm:$0xff]
        %v1654 = vld [vmem:[%s3 + $0x248] sm:$0xff]
        %v1655 = vld [vmem:[%s3 + $0x250] sm:$0xff]
        %v1656 = vld [vmem:[%s3 + $0x258] sm:$0xff]
        %v1657 = vld [vmem:[%s3 + $0x260] sm:$0xff]
        %v1658 = vld [vmem:[%s3 + $0x268] sm:$0xff]
        %v1659 = vld [vmem:[%s3 + $0x270] sm:$0xff]
        %v1660 = vld [vmem:[%s3 + $0x278] sm:$0xff]
        %v1661 = vld [vmem:[%s3 + $0x280] sm:$0xff]
        %v1662 = vld [vmem:[%s3 + $0x288] sm:$0xff]
        %v1663 = vld [vmem:[%s3 + $0x290] sm:$0xff]
        %v1664 = vld [vmem:[%s3 + $0x298] sm:$0xff]
        %v1665 = vld [vmem:[%s3 + $0x2a0] sm:$0xff]
        %v1666 = vld [vmem:[%s3 + $0x2a8] sm:$0xff]
        %v1667 = vld [vmem:[%s3 + $0x2b0] sm:$0xff]
        %v1668 = vld [vmem:[%s3 + $0x2b8] sm:$0xff]
        %v1669 = vld [vmem:[%s3 + $0x2c0] sm:$0xff]
        %v1670 = vld [vmem:[%s3 + $0x2c8] sm:$0xff]
        %v1671 = vld [vmem:[%s3 + $0x2d0] sm:$0xff]
        %v1672 = vld [vmem:[%s3 + $0x2d8] sm:$0xff]
        %v1673 = vld [vmem:[%s3 + $0x2e0] sm:$0xff]
        %v1674 = vld [vmem:[%s3 + $0x2e8] sm:$0xff]
        %v1675 = vld [vmem:[%s3 + $0x2f0] sm:$0xff]
        %v1676 = vld [vmem:[%s3 + $0x2f8] sm:$0xff]
        %v1689 = vlaneseq
        %v1690 = vshrl.u32 %v1689, 7
        %v1691 = vsub.s32 0, %v1690
        %v1692 = vrot.slane %v1569, %v1691
        %v1693 = vlaneseq
        %v1694 = vshrl.u32 %v1693, 7
        %v1695 = vsub.s32 2, %v1694
        %v1696 = vrot.slane %v1569, %v1695
        %v1697 = vlaneseq
        %v1698 = vshrl.u32 %v1697, 7
        %v1699 = vsub.s32 4, %v1698
        %v1700 = vrot.slane %v1569, %v1699
        %v1701 = vlaneseq
        %v1702 = vshrl.u32 %v1701, 7
        %v1703 = vsub.s32 0, %v1702
        %v1704 = vrot.slane %v1570, %v1703
        %v1705 = vlaneseq
        %v1706 = vshrl.u32 %v1705, 7
        %v1707 = vsub.s32 2, %v1706
        %v1708 = vrot.slane %v1570, %v1707
        %v1709 = vlaneseq
        %v1710 = vshrl.u32 %v1709, 7
        %v1711 = vsub.s32 4, %v1710
        %v1712 = vrot.slane %v1570, %v1711
        %v1713 = vlaneseq
        %v1714 = vshrl.u32 %v1713, 7
        %v1715 = vsub.s32 0, %v1714
        %v1716 = vrot.slane %v1571, %v1715
        %v1717 = vlaneseq
        %v1718 = vshrl.u32 %v1717, 7
        %v1719 = vsub.s32 2, %v1718
        %v1720 = vrot.slane %v1571, %v1719
        %v1721 = vlaneseq
        %v1722 = vshrl.u32 %v1721, 7
        %v1723 = vsub.s32 4, %v1722
        %v1724 = vrot.slane %v1571, %v1723
        %v1725 = vlaneseq
        %v1726 = vshrl.u32 %v1725, 7
        %v1727 = vsub.s32 0, %v1726
        %v1728 = vrot.slane %v1572, %v1727
        %v1729 = vlaneseq
        %v1730 = vshrl.u32 %v1729, 7
        %v1731 = vsub.s32 2, %v1730
        %v1732 = vrot.slane %v1572, %v1731
        %v1733 = vlaneseq
        %v1734 = vshrl.u32 %v1733, 7
        %v1735 = vsub.s32 4, %v1734
        %v1736 = vrot.slane %v1572, %v1735
        %v1737 = vlaneseq
        %v1738 = vshrl.u32 %v1737, 7
        %v1739 = vsub.s32 0, %v1738
        %v1740 = vrot.slane %v1573, %v1739
        %v1741 = vlaneseq
        %v1742 = vshrl.u32 %v1741, 7
        %v1743 = vsub.s32 2, %v1742
        %v1744 = vrot.slane %v1573, %v1743
        %v1745 = vlaneseq
        %v1746 = vshrl.u32 %v1745, 7
        %v1747 = vsub.s32 4, %v1746
        %v1748 = vrot.slane %v1573, %v1747
        %v1749 = vlaneseq
        %v1750 = vshrl.u32 %v1749, 7
        %v1751 = vsub.s32 0, %v1750
        %v1752 = vrot.slane %v1574, %v1751
        %v1753 = vlaneseq
        %v1754 = vshrl.u32 %v1753, 7
        %v1755 = vsub.s32 2, %v1754
        %v1756 = vrot.slane %v1574, %v1755
        %v1757 = vlaneseq
        %v1758 = vshrl.u32 %v1757, 7
        %v1759 = vsub.s32 4, %v1758
        %v1760 = vrot.slane %v1574, %v1759
        %v1761 = vlaneseq
        %v1762 = vshrl.u32 %v1761, 7
        %v1763 = vsub.s32 0, %v1762
        %v1764 = vrot.slane %v1575, %v1763
        %v1765 = vlaneseq
        %v1766 = vshrl.u32 %v1765, 7
        %v1767 = vsub.s32 2, %v1766
        %v1768 = vrot.slane %v1575, %v1767
        %v1769 = vlaneseq
        %v1770 = vshrl.u32 %v1769, 7
        %v1771 = vsub.s32 4, %v1770
        %v1772 = vrot.slane %v1575, %v1771
        %v1773 = vlaneseq
        %v1774 = vshrl.u32 %v1773, 7
        %v1775 = vsub.s32 0, %v1774
        %v1776 = vrot.slane %v1576, %v1775
        %v1777 = vlaneseq
        %v1778 = vshrl.u32 %v1777, 7
        %v1779 = vsub.s32 2, %v1778
        %v1780 = vrot.slane %v1576, %v1779
        %v1781 = vlaneseq
        %v1782 = vshrl.u32 %v1781, 7
        %v1783 = vsub.s32 4, %v1782
        %v1784 = vrot.slane %v1576, %v1783
        %v1785 = vlaneseq
        %v1786 = vshrl.u32 %v1785, 7
        %v1787 = vsub.s32 0, %v1786
        %v1788 = vrot.slane %v1577, %v1787
        %v1789 = vlaneseq
        %v1790 = vshrl.u32 %v1789, 7
        %v1791 = vsub.s32 2, %v1790
        %v1792 = vrot.slane %v1577, %v1791
        %v1793 = vlaneseq
        %v1794 = vshrl.u32 %v1793, 7
        %v1795 = vsub.s32 4, %v1794
        %v1796 = vrot.slane %v1577, %v1795
        %v1797 = vlaneseq
        %v1798 = vshrl.u32 %v1797, 7
        %v1799 = vsub.s32 0, %v1798
        %v1800 = vrot.slane %v1578, %v1799
        %v1801 = vlaneseq
        %v1802 = vshrl.u32 %v1801, 7
        %v1803 = vsub.s32 2, %v1802
        %v1804 = vrot.slane %v1578, %v1803
        %v1805 = vlaneseq
        %v1806 = vshrl.u32 %v1805, 7
        %v1807 = vsub.s32 4, %v1806
        %v1808 = vrot.slane %v1578, %v1807
        %v1809 = vlaneseq
        %v1810 = vshrl.u32 %v1809, 7
        %v1811 = vsub.s32 0, %v1810
        %v1812 = vrot.slane %v1579, %v1811
        %v1813 = vlaneseq
        %v1814 = vshrl.u32 %v1813, 7
        %v1815 = vsub.s32 2, %v1814
        %v1816 = vrot.slane %v1579, %v1815
        %v1817 = vlaneseq
        %v1818 = vshrl.u32 %v1817, 7
        %v1819 = vsub.s32 4, %v1818
        %v1820 = vrot.slane %v1579, %v1819
        %v1821 = vlaneseq
        %v1822 = vshrl.u32 %v1821, 7
        %v1823 = vsub.s32 0, %v1822
        %v1824 = vrot.slane %v1580, %v1823
        %v1825 = vlaneseq
        %v1826 = vshrl.u32 %v1825, 7
        %v1827 = vsub.s32 2, %v1826
        %v1828 = vrot.slane %v1580, %v1827
        %v1829 = vlaneseq
        %v1830 = vshrl.u32 %v1829, 7
        %v1831 = vsub.s32 4, %v1830
        %v1832 = vrot.slane %v1580, %v1831
        %vm1833 = vcmask 1041409
        %v1834 = vsel %vm1833, %v1704, %v1692
        %vm1835 = vcmask 1042434
        %v1836 = vsel %vm1835, %v1716, %v1834
        %vm1837 = vcmask 1043459
        %v1838 = vsel %vm1837, %v1728, %v1836
        %vm1839 = vcmask 1044484
        %v1840 = vsel %vm1839, %v1740, %v1838
        %vm1841 = vcmask 1045509
        %v1842 = vsel %vm1841, %v1752, %v1840
        %vm1843 = vcmask 1046534
        %v1844 = vsel %vm1843, %v1764, %v1842
        %vm1845 = vcmask 1047559
        %v1846 = vsel %vm1845, %v1776, %v1844
        %v1847 = vsel %vm1833, %v1708, %v1696
        %v1848 = vsel %vm1835, %v1720, %v1847
        %v1849 = vsel %vm1837, %v1732, %v1848
        %v1850 = vsel %vm1839, %v1744, %v1849
        %v1851 = vsel %vm1841, %v1756, %v1850
        %v1852 = vsel %vm1843, %v1768, %v1851
        %v1853 = vsel %vm1845, %v1780, %v1852
        %v1854 = vsel %vm1833, %v1712, %v1700
        %v1855 = vsel %vm1835, %v1724, %v1854
        %v1856 = vsel %vm1837, %v1736, %v1855
        %v1857 = vsel %vm1839, %v1748, %v1856
        %v1858 = vsel %vm1841, %v1760, %v1857
        %v1859 = vsel %vm1843, %v1772, %v1858
        %v1860 = vsel %vm1845, %v1784, %v1859
        %v1861 = vsel %vm1833, %v1800, %v1788
        %v1862 = vsel %vm1835, %v1812, %v1861
        %v1863 = vsel %vm1837, %v1824, %v1862
        %v1864 = vsel %vm1833, %v1804, %v1792
        %v1865 = vsel %vm1835, %v1816, %v1864
        %v1866 = vsel %vm1837, %v1828, %v1865
        %v1867 = vsel %vm1833, %v1808, %v1796
        %v1868 = vsel %vm1835, %v1820, %v1867
        %v1869 = vsel %vm1837, %v1832, %v1868
        %1876 = vmatprep.subr.mxu0 %v1612
        %1877 = vmatpush1.msra.mxu0 %v1611
        %1878 = vmatprep.subr.mxu0 %v1610
        %1879 = vmatpush1.msra.mxu0 %v1609
        %1880 = vmatprep.subr.mxu0 %v1608
        %1881 = vmatpush1.msra.mxu0 %v1607
        %1882 = vmatprep.subr.mxu0 %v1606
        %1883 = vmatpush1.msra.mxu0 %v1605
        %1884 = vmatprep.subr.mxu0 %v1604
        %1885 = vmatpush1.msra.mxu0 %v1603
        %1886 = vmatprep.subr.mxu0 %v1602
        %1887 = vmatpush1.msra.mxu0 %v1601
        %1888 = vmatprep.subr.mxu0 %v1600
        %1889 = vmatpush1.msra.mxu0 %v1599
        %1890 = vmatprep.subr.mxu0 %v1598
        %1891 = vmatpush1.msra.mxu0 %v1597
        %1892 = vmatprep.subr.mxu0 %v1596
        %1893 = vmatpush1.msra.mxu0 %v1595
        %1894 = vmatprep.subr.mxu0 %v1594
        %1895 = vmatpush1.msra.mxu0 %v1593
        %1896 = vmatprep.subr.mxu0 %v1592
        %1897 = vmatpush1.msra.mxu0 %v1591
        %1898 = vmatprep.subr.mxu0 %v1590
        %1899 = vmatpush1.msra.mxu0 %v1589
        %1900 = vmatprep.subr.mxu0 %v1588
        %1901 = vmatpush1.msra.mxu0 %v1587
        %1902 = vmatprep.subr.mxu0 %v1586
        %1903 = vmatpush1.msra.mxu0 %v1585
        %1904 = vmatprep.subr.mxu0 %v1584
        %1905 = vmatpush1.msra.mxu0 %v1583
        %1906 = vmatprep.subr.mxu0 %v1582
        %1907 = vmatpush1.msra.mxu0 %v1581
        %1908 = vmatprep.subr.mxu0 %v1644
        %1909 = vmatpush2.msra.mxu0 %v1643
        %1910 = vmatprep.subr.mxu0 %v1642
        %1911 = vmatpush2.msra.mxu0 %v1641
        %1912 = vmatprep.subr.mxu0 %v1640
        %1913 = vmatpush2.msra.mxu0 %v1639
        %1914 = vmatprep.subr.mxu0 %v1638
        %1915 = vmatpush2.msra.mxu0 %v1637
        %1916 = vmatprep.subr.mxu0 %v1636
        %1917 = vmatpush2.msra.mxu0 %v1635
        %1918 = vmatprep.subr.mxu0 %v1634
        %1919 = vmatpush2.msra.mxu0 %v1633
        %1920 = vmatprep.subr.mxu0 %v1632
        %1921 = vmatpush2.msra.mxu0 %v1631
        %1922 = vmatprep.subr.mxu0 %v1630
        %1923 = vmatpush2.msra.mxu0 %v1629
        %1924 = vmatprep.subr.mxu0 %v1628
        %1925 = vmatpush2.msra.mxu0 %v1627
        %1926 = vmatprep.subr.mxu0 %v1626
        %1927 = vmatpush2.msra.mxu0 %v1625
        %1928 = vmatprep.subr.mxu0 %v1624
        %1929 = vmatpush2.msra.mxu0 %v1623
        %1930 = vmatprep.subr.mxu0 %v1622
        %1931 = vmatpush2.msra.mxu0 %v1621
        %1932 = vmatprep.subr.mxu0 %v1620
        %1933 = vmatpush2.msra.mxu0 %v1619
        %1934 = vmatprep.subr.mxu0 %v1618
        %1935 = vmatpush2.msra.mxu0 %v1617
        %1936 = vmatprep.subr.mxu0 %v1616
        %1937 = vmatpush2.msra.mxu0 %v1615
        %1938 = vmatprep.subr.mxu0 %v1614
        %1939 = vmatpush2.msra.mxu0 %v1613
        %1940 = vmatprep.mubr.f32.mxu0 %v1853
        %1941 = vmatmul.mubr.f32.gmra.mxu0 %v1846
        %v1942 = vpop.f32.mrf.mxu0
        %v1943 = vadd.f32 0.0, %v1942
        %v1944 = vpop.f32.mrf.mxu0
        %v1945 = vadd.f32 0.0, %v1944
        %1946 = vmatprep.mubr.f32.mxu0 %v1866
        %1947 = vmatmul.mubr.f32.gmra.mxu0 %v1863
        %v1948 = vpop.f32.mrf.mxu0
        %v1949 = vadd.f32 0.0, %v1948
        %v1950 = vpop.f32.mrf.mxu0
        %v1951 = vadd.f32 0.0, %v1950
        %1952 = vdwg.mxu0
        %1953 = vmatprep.subr.mxu0 %v1676
        %1954 = vmatpush1.msra.mxu0 %v1675
        %1955 = vmatprep.subr.mxu0 %v1674
        %1956 = vmatpush1.msra.mxu0 %v1673
        %1957 = vmatprep.subr.mxu0 %v1672
        %1958 = vmatpush1.msra.mxu0 %v1671
        %1959 = vmatprep.subr.mxu0 %v1670
        %1960 = vmatpush1.msra.mxu0 %v1669
        %1961 = vmatprep.subr.mxu0 %v1668
        %1962 = vmatpush1.msra.mxu0 %v1667
        %1963 = vmatprep.subr.mxu0 %v1666
        %1964 = vmatpush1.msra.mxu0 %v1665
        %1965 = vmatprep.subr.mxu0 %v1664
        %1966 = vmatpush1.msra.mxu0 %v1663
        %1967 = vmatprep.subr.mxu0 %v1662
        %1968 = vmatpush1.msra.mxu0 %v1661
        %1969 = vmatprep.subr.mxu0 %v1660
        %1970 = vmatpush1.msra.mxu0 %v1659
        %1971 = vmatprep.subr.mxu0 %v1658
        %1972 = vmatpush1.msra.mxu0 %v1657
        %1973 = vmatprep.subr.mxu0 %v1656
        %1974 = vmatpush1.msra.mxu0 %v1655
        %1975 = vmatprep.subr.mxu0 %v1654
        %1976 = vmatpush1.msra.mxu0 %v1653
        %1977 = vmatprep.subr.mxu0 %v1652
        %1978 = vmatpush1.msra.mxu0 %v1651
        %1979 = vmatprep.subr.mxu0 %v1650
        %1980 = vmatpush1.msra.mxu0 %v1649
        %1981 = vmatprep.subr.mxu0 %v1648
        %1982 = vmatpush1.msra.mxu0 %v1647
        %1983 = vmatprep.subr.mxu0 %v1646
        %1984 = vmatpush1.msra.mxu0 %v1645
        %1985 = vmatprep.subr.mxu0 0.0
        %1986 = vmatpush2.msra.mxu0 0.0
        %1987 = vmatprep.subr.mxu0 0.0
        %1988 = vmatpush2.msra.mxu0 0.0
        %1989 = vmatprep.subr.mxu0 0.0
        %1990 = vmatpush2.msra.mxu0 0.0
        %1991 = vmatprep.subr.mxu0 0.0
        %1992 = vmatpush2.msra.mxu0 0.0
        %1993 = vmatprep.subr.mxu0 0.0
        %1994 = vmatpush2.msra.mxu0 0.0
        %1995 = vmatprep.subr.mxu0 0.0
        %1996 = vmatpush2.msra.mxu0 0.0
        %1997 = vmatprep.subr.mxu0 0.0
        %1998 = vmatpush2.msra.mxu0 0.0
        %1999 = vmatprep.subr.mxu0 0.0
        %2000 = vmatpush2.msra.mxu0 0.0
        %2001 = vmatprep.subr.mxu0 0.0
        %2002 = vmatpush2.msra.mxu0 0.0
        %2003 = vmatprep.subr.mxu0 0.0
        %2004 = vmatpush2.msra.mxu0 0.0
        %2005 = vmatprep.subr.mxu0 0.0
        %2006 = vmatpush2.msra.mxu0 0.0
        %2007 = vmatprep.subr.mxu0 0.0
        %2008 = vmatpush2.msra.mxu0 0.0
        %2009 = vmatprep.subr.mxu0 0.0
        %2010 = vmatpush2.msra.mxu0 0.0
        %2011 = vmatprep.subr.mxu0 0.0
        %2012 = vmatpush2.msra.mxu0 0.0
        %2013 = vmatprep.subr.mxu0 0.0
        %2014 = vmatpush2.msra.mxu0 0.0
        %2015 = vmatprep.subr.mxu0 0.0
        %2016 = vmatpush2.msra.mxu0 0.0
        %2017 = vmatprep.mubr.f32.mxu0 0.0
        %2018 = vmatmul.mubr.f32.gmra.mxu0 %v1860
        %v2019 = vpop.f32.mrf.mxu0
        %v2020 = vadd.f32 %v1943, %v2019
        %v2021 = vpop.f32.mrf.mxu0
        %v2022 = vadd.f32 %v1945, %v2021
        %2023 = vmatprep.mubr.f32.mxu0 0.0
        %2024 = vmatmul.mubr.f32.gmra.mxu0 %v1869
        %v2025 = vpop.f32.mrf.mxu0
        %v2026 = vadd.f32 %v1949, %v2025
        %v2027 = vpop.f32.mrf.mxu0
        %v2028 = vadd.f32 %v1951, %v2027
        %2029 = vdwg.mxu0
        %v2030 = vpack.c.bf16 %v2026, %v2020
        %v2031 = vpack.c.bf16 %v2028, %v2022
        %v2032 = vld [vmem:[#allocation7] sm:$0xff]
        %v2033 = vld [vmem:[#allocation7 + $0x8] sm:$0xff]
        %v2034 = vld [vmem:[#allocation7 + $0x10] sm:$0xff]
        %v2035 = vld [vmem:[#allocation7 + $0x18] sm:$0xff]
        %v2036 = vld [vmem:[#allocation7 + $0x20] sm:$0xff]
        %v2037 = vld [vmem:[#allocation7 + $0x28] sm:$0xff]
        %v2038 = vld [vmem:[#allocation7 + $0x30] sm:$0xff]
        %v2039 = vld [vmem:[#allocation7 + $0x38] sm:$0xff]
        %v2040 = vld [vmem:[#allocation7 + $0x40] sm:$0xff]
        %v2041 = vld [vmem:[#allocation7 + $0x48] sm:$0xff]
        %v2042 = vld [vmem:[#allocation7 + $0x50] sm:$0xff]
        %v2043 = vld [vmem:[#allocation7 + $0x58] sm:$0xff]
        %v2044 = vld [vmem:[#allocation7 + $0x60] sm:$0xff]
        %v2045 = vld [vmem:[#allocation7 + $0x68] sm:$0xff]
        %v2046 = vld [vmem:[#allocation7 + $0x70] sm:$0xff]
        %v2047 = vld [vmem:[#allocation7 + $0x78] sm:$0xff]
        %v2048 = vld [vmem:[#allocation7 + $0x80] sm:$0xff]
        %v2049 = vld [vmem:[#allocation7 + $0x88] sm:$0xff]
        %v2050 = vld [vmem:[#allocation7 + $0x90] sm:$0xff]
        %v2051 = vld [vmem:[#allocation7 + $0x98] sm:$0xff]
        %v2052 = vld [vmem:[#allocation7 + $0xa0] sm:$0xff]
        %v2053 = vld [vmem:[#allocation7 + $0xa8] sm:$0xff]
        %v2054 = vld [vmem:[#allocation7 + $0xb0] sm:$0xff]
        %v2055 = vld [vmem:[#allocation7 + $0xb8] sm:$0xff]
        %s2056 = scalar_lea.vmem [#allocation7], 192
        %v2057 = vld [vmem:[%s2056] sm:$0xff]
        %v2058 = vld [vmem:[%s2056 + $0x8] sm:$0xff]
        %v2059 = vld [vmem:[%s2056 + $0x10] sm:$0xff]
        %v2060 = vld [vmem:[%s2056 + $0x18] sm:$0xff]
        %v2061 = vld [vmem:[%s2056 + $0x20] sm:$0xff]
        %v2062 = vld [vmem:[%s2056 + $0x28] sm:$0xff]
        %v2063 = vld [vmem:[%s2056 + $0x30] sm:$0xff]
        %v2064 = vld [vmem:[%s2056 + $0x38] sm:$0xff]
        %v2065 = vld [vmem:[%s2056 + $0x40] sm:$0xff]
        %v2066 = vld [vmem:[%s2056 + $0x48] sm:$0xff]
        %v2067 = vld [vmem:[%s2056 + $0x50] sm:$0xff]
        %v2068 = vld [vmem:[%s2056 + $0x58] sm:$0xff]
        %v2069 = vld [vmem:[%s2056 + $0x60] sm:$0xff]
        %v2070 = vld [vmem:[%s2056 + $0x68] sm:$0xff]
        %v2071 = vld [vmem:[%s2056 + $0x70] sm:$0xff]
        %v2072 = vld [vmem:[%s2056 + $0x78] sm:$0xff]
        %v2073 = vld [vmem:[%s2056 + $0x80] sm:$0xff]
        %v2074 = vld [vmem:[%s2056 + $0x88] sm:$0xff]
        %v2075 = vld [vmem:[%s2056 + $0x90] sm:$0xff]
        %v2076 = vld [vmem:[%s2056 + $0x98] sm:$0xff]
        %v2077 = vld [vmem:[%s2056 + $0xa0] sm:$0xff]
        %v2078 = vld [vmem:[%s2056 + $0xa8] sm:$0xff]
        %v2079 = vld [vmem:[%s2056 + $0xb0] sm:$0xff]
        %v2080 = vld [vmem:[%s2056 + $0xb8] sm:$0xff]
        %v2082 = vshrl.u32 %v2030, 16
        %v2084 = vshll.u32 %v2030, 16
        %v2086 = vrot.slane %v2084, 1
        %v2087 = vor.u32 %v2082, %v2086
        %v2089 = vshrl.u32 %v2031, 16
        %v2091 = vshll.u32 %v2031, 16
        %v2093 = vrot.slane %v2091, 1
        %v2094 = vor.u32 %v2089, %v2093
        %v2120 = vunpack.c.l.b16 %v2057
        %v2121 = vunpack.c.h.b16 %v2057
        %v2122 = vunpack.c.l.b16 %v2058
        %v2123 = vunpack.c.h.b16 %v2058
        %v2124 = vunpack.c.l.b16 %v2059
        %v2125 = vunpack.c.h.b16 %v2059
        %v2126 = vunpack.c.l.b16 %v2060
        %v2127 = vunpack.c.h.b16 %v2060
        %v2128 = vunpack.c.l.b16 %v2061
        %v2129 = vunpack.c.h.b16 %v2061
        %v2130 = vunpack.c.l.b16 %v2062
        %v2131 = vunpack.c.h.b16 %v2062
        %v2132 = vunpack.c.l.b16 %v2063
        %v2133 = vunpack.c.h.b16 %v2063
        %v2134 = vunpack.c.l.b16 %v2064
        %v2135 = vunpack.c.h.b16 %v2064
        %v2136 = vunpack.c.l.b16 %v2065
        %v2137 = vunpack.c.h.b16 %v2065
        %v2138 = vunpack.c.l.b16 %v2066
        %v2139 = vunpack.c.h.b16 %v2066
        %v2140 = vunpack.c.l.b16 %v2067
        %v2141 = vunpack.c.h.b16 %v2067
        %v2142 = vunpack.c.l.b16 %v2068
        %v2143 = vunpack.c.h.b16 %v2068
        %v2144 = vunpack.c.l.b16 %v2069
        %v2145 = vunpack.c.h.b16 %v2069
        %v2146 = vunpack.c.l.b16 %v2070
        %v2147 = vunpack.c.h.b16 %v2070
        %v2148 = vunpack.c.l.b16 %v2071
        %v2149 = vunpack.c.h.b16 %v2071
        %v2150 = vunpack.c.l.b16 %v2072
        %v2151 = vunpack.c.h.b16 %v2072
        %v2152 = vunpack.c.l.b16 %v2073
        %v2153 = vunpack.c.h.b16 %v2073
        %v2154 = vunpack.c.l.b16 %v2074
        %v2155 = vunpack.c.h.b16 %v2074
        %v2156 = vunpack.c.l.b16 %v2075
        %v2157 = vunpack.c.h.b16 %v2075
        %v2158 = vunpack.c.l.b16 %v2076
        %v2159 = vunpack.c.h.b16 %v2076
        %v2160 = vunpack.c.l.b16 %v2077
        %v2161 = vunpack.c.h.b16 %v2077
        %v2162 = vunpack.c.l.b16 %v2078
        %v2163 = vunpack.c.h.b16 %v2078
        %v2164 = vunpack.c.l.b16 %v2079
        %v2165 = vunpack.c.h.b16 %v2079
        %v2166 = vunpack.c.l.b16 %v2080
        %v2167 = vunpack.c.h.b16 %v2080
        %v2168 = vpack.c.b16 %v2122, %v2120
        %v2169 = vpack.c.b16 %v2123, %v2121
        %v2170 = vpack.c.b16 %v2126, %v2124
        %v2171 = vpack.c.b16 %v2127, %v2125
        %v2172 = vpack.c.b16 %v2130, %v2128
        %v2173 = vpack.c.b16 %v2131, %v2129
        %v2174 = vpack.c.b16 %v2134, %v2132
        %v2175 = vpack.c.b16 %v2135, %v2133
        %v2176 = vpack.c.b16 %v2138, %v2136
        %v2177 = vpack.c.b16 %v2139, %v2137
        %v2178 = vpack.c.b16 %v2142, %v2140
        %v2179 = vpack.c.b16 %v2143, %v2141
        %v2180 = vpack.c.b16 %v2146, %v2144
        %v2181 = vpack.c.b16 %v2147, %v2145
        %v2182 = vpack.c.b16 %v2150, %v2148
        %v2183 = vpack.c.b16 %v2151, %v2149
        %v2184 = vpack.c.b16 %v2154, %v2152
        %v2185 = vpack.c.b16 %v2155, %v2153
        %v2186 = vpack.c.b16 %v2158, %v2156
        %v2187 = vpack.c.b16 %v2159, %v2157
        %v2188 = vpack.c.b16 %v2162, %v2160
        %v2189 = vpack.c.b16 %v2163, %v2161
        %v2190 = vpack.c.b16 %v2166, %v2164
        %v2191 = vpack.c.b16 %v2167, %v2165
        %vm2216 = vcmask 523264
        %v2218 = vsel %vm2216, %v2094, 0
        %2220 = vmatprep.subr.bf16.mxu0 %v2183
        %2221 = vmatpush1.bf16.msra.mxu0 %v2182
        %2222 = vmatprep.subr.bf16.mxu0 %v2181
        %2223 = vmatpush1.bf16.msra.mxu0 %v2180
        %2224 = vmatprep.subr.bf16.mxu0 %v2179
        %2225 = vmatpush1.bf16.msra.mxu0 %v2178
        %2226 = vmatprep.subr.bf16.mxu0 %v2177
        %2227 = vmatpush1.bf16.msra.mxu0 %v2176
        %2228 = vmatprep.subr.bf16.mxu0 %v2175
        %2229 = vmatpush1.bf16.msra.mxu0 %v2174
        %2230 = vmatprep.subr.bf16.mxu0 %v2173
        %2231 = vmatpush1.bf16.msra.mxu0 %v2172
        %2232 = vmatprep.subr.bf16.mxu0 %v2171
        %2233 = vmatpush1.bf16.msra.mxu0 %v2170
        %2234 = vmatprep.subr.bf16.mxu0 %v2169
        %2235 = vmatpush1.bf16.msra.mxu0 %v2168
        %2236 = vmatprep.subr.bf16.mxu0 0
        %2237 = vmatpush2.bf16.msra.mxu0 0
        %2238 = vmatprep.subr.bf16.mxu0 0
        %2239 = vmatpush2.bf16.msra.mxu0 0
        %2240 = vmatprep.subr.bf16.mxu0 0
        %2241 = vmatpush2.bf16.msra.mxu0 0
        %2242 = vmatprep.subr.bf16.mxu0 0
        %2243 = vmatpush2.bf16.msra.mxu0 0
        %2244 = vmatprep.subr.bf16.mxu0 %v2191
        %2245 = vmatpush2.bf16.msra.mxu0 %v2190
        %2246 = vmatprep.subr.bf16.mxu0 %v2189
        %2247 = vmatpush2.bf16.msra.mxu0 %v2188
        %2248 = vmatprep.subr.bf16.mxu0 %v2187
        %2249 = vmatpush2.bf16.msra.mxu0 %v2186
        %2250 = vmatprep.subr.bf16.mxu0 %v2185
        %2251 = vmatpush2.bf16.msra.mxu0 %v2184
        %2252 = vmatprep.mubr.bf16.mxu0 %v2218
        %2253 = vmatmul.mubr.bf16.gmra.mxu0 %v2087
        %v2254 = vpop.f32.mrf.mxu0
        %v2255 = vadd.f32 0.0, %v2254
        %v2256 = vpop.f32.mrf.mxu0
        %v2257 = vadd.f32 0.0, %v2256
        %v2258 = vpop.f32.mrf.mxu0
        %v2259 = vpop.f32.mrf.mxu0
        %2260 = vdwg.mxu0
        %v2285 = vunpack.c.l.b16 %v2032
        %v2286 = vunpack.c.h.b16 %v2032
        %v2287 = vunpack.c.l.b16 %v2033
        %v2288 = vunpack.c.h.b16 %v2033
        %v2289 = vunpack.c.l.b16 %v2034
        %v2290 = vunpack.c.h.b16 %v2034
        %v2291 = vunpack.c.l.b16 %v2035
        %v2292 = vunpack.c.h.b16 %v2035
        %v2293 = vunpack.c.l.b16 %v2036
        %v2294 = vunpack.c.h.b16 %v2036
        %v2295 = vunpack.c.l.b16 %v2037
        %v2296 = vunpack.c.h.b16 %v2037
        %v2297 = vunpack.c.l.b16 %v2038
        %v2298 = vunpack.c.h.b16 %v2038
        %v2299 = vunpack.c.l.b16 %v2039
        %v2300 = vunpack.c.h.b16 %v2039
        %v2301 = vunpack.c.l.b16 %v2040
        %v2302 = vunpack.c.h.b16 %v2040
        %v2303 = vunpack.c.l.b16 %v2041
        %v2304 = vunpack.c.h.b16 %v2041
        %v2305 = vunpack.c.l.b16 %v2042
        %v2306 = vunpack.c.h.b16 %v2042
        %v2307 = vunpack.c.l.b16 %v2043
        %v2308 = vunpack.c.h.b16 %v2043
        %v2309 = vunpack.c.l.b16 %v2044
        %v2310 = vunpack.c.h.b16 %v2044
        %v2311 = vunpack.c.l.b16 %v2045
        %v2312 = vunpack.c.h.b16 %v2045
        %v2313 = vunpack.c.l.b16 %v2046
        %v2314 = vunpack.c.h.b16 %v2046
        %v2315 = vunpack.c.l.b16 %v2047
        %v2316 = vunpack.c.h.b16 %v2047
        %v2317 = vunpack.c.l.b16 %v2048
        %v2318 = vunpack.c.h.b16 %v2048
        %v2319 = vunpack.c.l.b16 %v2049
        %v2320 = vunpack.c.h.b16 %v2049
        %v2321 = vunpack.c.l.b16 %v2050
        %v2322 = vunpack.c.h.b16 %v2050
        %v2323 = vunpack.c.l.b16 %v2051
        %v2324 = vunpack.c.h.b16 %v2051
        %v2325 = vunpack.c.l.b16 %v2052
        %v2326 = vunpack.c.h.b16 %v2052
        %v2327 = vunpack.c.l.b16 %v2053
        %v2328 = vunpack.c.h.b16 %v2053
        %v2329 = vunpack.c.l.b16 %v2054
        %v2330 = vunpack.c.h.b16 %v2054
        %v2331 = vunpack.c.l.b16 %v2055
        %v2332 = vunpack.c.h.b16 %v2055
        %v2333 = vpack.c.b16 %v2287, %v2285
        %v2334 = vpack.c.b16 %v2288, %v2286
        %v2335 = vpack.c.b16 %v2291, %v2289
        %v2336 = vpack.c.b16 %v2292, %v2290
        %v2337 = vpack.c.b16 %v2295, %v2293
        %v2338 = vpack.c.b16 %v2296, %v2294
        %v2339 = vpack.c.b16 %v2299, %v2297
        %v2340 = vpack.c.b16 %v2300, %v2298
        %v2341 = vpack.c.b16 %v2303, %v2301
        %v2342 = vpack.c.b16 %v2304, %v2302
        %v2343 = vpack.c.b16 %v2307, %v2305
        %v2344 = vpack.c.b16 %v2308, %v2306
        %v2345 = vpack.c.b16 %v2311, %v2309
        %v2346 = vpack.c.b16 %v2312, %v2310
        %v2347 = vpack.c.b16 %v2315, %v2313
        %v2348 = vpack.c.b16 %v2316, %v2314
        %v2349 = vpack.c.b16 %v2319, %v2317
        %v2350 = vpack.c.b16 %v2320, %v2318
        %v2351 = vpack.c.b16 %v2323, %v2321
        %v2352 = vpack.c.b16 %v2324, %v2322
        %v2353 = vpack.c.b16 %v2327, %v2325
        %v2354 = vpack.c.b16 %v2328, %v2326
        %v2355 = vpack.c.b16 %v2331, %v2329
        %v2356 = vpack.c.b16 %v2332, %v2330
        %v2381 = vsel %vm2216, %v2031, 0
        %2383 = vmatprep.subr.bf16.mxu0 %v2348
        %2384 = vmatpush1.bf16.msra.mxu0 %v2347
        %2385 = vmatprep.subr.bf16.mxu0 %v2346
        %2386 = vmatpush1.bf16.msra.mxu0 %v2345
        %2387 = vmatprep.subr.bf16.mxu0 %v2344
        %2388 = vmatpush1.bf16.msra.mxu0 %v2343
        %2389 = vmatprep.subr.bf16.mxu0 %v2342
        %2390 = vmatpush1.bf16.msra.mxu0 %v2341
        %2391 = vmatprep.subr.bf16.mxu0 %v2340
        %2392 = vmatpush1.bf16.msra.mxu0 %v2339
        %2393 = vmatprep.subr.bf16.mxu0 %v2338
        %2394 = vmatpush1.bf16.msra.mxu0 %v2337
        %2395 = vmatprep.subr.bf16.mxu0 %v2336
        %2396 = vmatpush1.bf16.msra.mxu0 %v2335
        %2397 = vmatprep.subr.bf16.mxu0 %v2334
        %2398 = vmatpush1.bf16.msra.mxu0 %v2333
        %2399 = vmatprep.subr.bf16.mxu0 0
        %2400 = vmatpush2.bf16.msra.mxu0 0
        %2401 = vmatprep.subr.bf16.mxu0 0
        %2402 = vmatpush2.bf16.msra.mxu0 0
        %2403 = vmatprep.subr.bf16.mxu0 0
        %2404 = vmatpush2.bf16.msra.mxu0 0
        %2405 = vmatprep.subr.bf16.mxu0 0
        %2406 = vmatpush2.bf16.msra.mxu0 0
        %2407 = vmatprep.subr.bf16.mxu0 %v2356
        %2408 = vmatpush2.bf16.msra.mxu0 %v2355
        %2409 = vmatprep.subr.bf16.mxu0 %v2354
        %2410 = vmatpush2.bf16.msra.mxu0 %v2353
        %2411 = vmatprep.subr.bf16.mxu0 %v2352
        %2412 = vmatpush2.bf16.msra.mxu0 %v2351
        %2413 = vmatprep.subr.bf16.mxu0 %v2350
        %2414 = vmatpush2.bf16.msra.mxu0 %v2349
        %2415 = vmatprep.mubr.bf16.mxu0 %v2381
        %2416 = vmatmul.mubr.bf16.gmra.mxu0 %v2030
        %v2417 = vpop.f32.mrf.mxu0
        %v2418 = vadd.f32 %v2255, %v2417
        %v2419 = vpop.f32.mrf.mxu0
        %v2420 = vadd.f32 %v2257, %v2419
        %v2421 = vpop.f32.mrf.mxu0
        %v2422 = vpop.f32.mrf.mxu0
        %2423 = vdwg.mxu0
        %s2424 = scalar_lea.vmem [#allocation7], 384
        %v2425 = vld [vmem:[%s2424] sm:$0xff]
        %v2426 = vld [vmem:[%s2424 + $0x8] sm:$0xff]
        %v2427 = vld [vmem:[%s2424 + $0x10] sm:$0xff]
        %v2428 = vld [vmem:[%s2424 + $0x18] sm:$0xff]
        %v2429 = vld [vmem:[%s2424 + $0x20] sm:$0xff]
        %v2430 = vld [vmem:[%s2424 + $0x28] sm:$0xff]
        %v2431 = vld [vmem:[%s2424 + $0x30] sm:$0xff]
        %v2432 = vld [vmem:[%s2424 + $0x38] sm:$0xff]
        %v2433 = vld [vmem:[%s2424 + $0x40] sm:$0xff]
        %v2434 = vld [vmem:[%s2424 + $0x48] sm:$0xff]
        %v2435 = vld [vmem:[%s2424 + $0x50] sm:$0xff]
        %v2436 = vld [vmem:[%s2424 + $0x58] sm:$0xff]
        %v2437 = vld [vmem:[%s2424 + $0x60] sm:$0xff]
        %v2438 = vld [vmem:[%s2424 + $0x68] sm:$0xff]
        %v2439 = vld [vmem:[%s2424 + $0x70] sm:$0xff]
        %v2440 = vld [vmem:[%s2424 + $0x78] sm:$0xff]
        %v2441 = vld [vmem:[%s2424 + $0x80] sm:$0xff]
        %v2442 = vld [vmem:[%s2424 + $0x88] sm:$0xff]
        %v2443 = vld [vmem:[%s2424 + $0x90] sm:$0xff]
        %v2444 = vld [vmem:[%s2424 + $0x98] sm:$0xff]
        %v2445 = vld [vmem:[%s2424 + $0xa0] sm:$0xff]
        %v2446 = vld [vmem:[%s2424 + $0xa8] sm:$0xff]
        %v2447 = vld [vmem:[%s2424 + $0xb0] sm:$0xff]
        %v2448 = vld [vmem:[%s2424 + $0xb8] sm:$0xff]
        %v2451 = vrot.slane %v2030, 1
        %v2452 = vrot.slane %v2031, 1
        %v2478 = vunpack.c.l.b16 %v2425
        %v2479 = vunpack.c.h.b16 %v2425
        %v2480 = vunpack.c.l.b16 %v2426
        %v2481 = vunpack.c.h.b16 %v2426
        %v2482 = vunpack.c.l.b16 %v2427
        %v2483 = vunpack.c.h.b16 %v2427
        %v2484 = vunpack.c.l.b16 %v2428
        %v2485 = vunpack.c.h.b16 %v2428
        %v2486 = vunpack.c.l.b16 %v2429
        %v2487 = vunpack.c.h.b16 %v2429
        %v2488 = vunpack.c.l.b16 %v2430
        %v2489 = vunpack.c.h.b16 %v2430
        %v2490 = vunpack.c.l.b16 %v2431
        %v2491 = vunpack.c.h.b16 %v2431
        %v2492 = vunpack.c.l.b16 %v2432
        %v2493 = vunpack.c.h.b16 %v2432
        %v2494 = vunpack.c.l.b16 %v2433
        %v2495 = vunpack.c.h.b16 %v2433
        %v2496 = vunpack.c.l.b16 %v2434
        %v2497 = vunpack.c.h.b16 %v2434
        %v2498 = vunpack.c.l.b16 %v2435
        %v2499 = vunpack.c.h.b16 %v2435
        %v2500 = vunpack.c.l.b16 %v2436
        %v2501 = vunpack.c.h.b16 %v2436
        %v2502 = vunpack.c.l.b16 %v2437
        %v2503 = vunpack.c.h.b16 %v2437
        %v2504 = vunpack.c.l.b16 %v2438
        %v2505 = vunpack.c.h.b16 %v2438
        %v2506 = vunpack.c.l.b16 %v2439
        %v2507 = vunpack.c.h.b16 %v2439
        %v2508 = vunpack.c.l.b16 %v2440
        %v2509 = vunpack.c.h.b16 %v2440
        %v2510 = vunpack.c.l.b16 %v2441
        %v2511 = vunpack.c.h.b16 %v2441
        %v2512 = vunpack.c.l.b16 %v2442
        %v2513 = vunpack.c.h.b16 %v2442
        %v2514 = vunpack.c.l.b16 %v2443
        %v2515 = vunpack.c.h.b16 %v2443
        %v2516 = vunpack.c.l.b16 %v2444
        %v2517 = vunpack.c.h.b16 %v2444
        %v2518 = vunpack.c.l.b16 %v2445
        %v2519 = vunpack.c.h.b16 %v2445
        %v2520 = vunpack.c.l.b16 %v2446
        %v2521 = vunpack.c.h.b16 %v2446
        %v2522 = vunpack.c.l.b16 %v2447
        %v2523 = vunpack.c.h.b16 %v2447
        %v2524 = vunpack.c.l.b16 %v2448
        %v2525 = vunpack.c.h.b16 %v2448
        %v2526 = vpack.c.b16 %v2480, %v2478
        %v2527 = vpack.c.b16 %v2481, %v2479
        %v2528 = vpack.c.b16 %v2484, %v2482
        %v2529 = vpack.c.b16 %v2485, %v2483
        %v2530 = vpack.c.b16 %v2488, %v2486
        %v2531 = vpack.c.b16 %v2489, %v2487
        %v2532 = vpack.c.b16 %v2492, %v2490
        %v2533 = vpack.c.b16 %v2493, %v2491
        %v2534 = vpack.c.b16 %v2496, %v2494
        %v2535 = vpack.c.b16 %v2497, %v2495
        %v2536 = vpack.c.b16 %v2500, %v2498
        %v2537 = vpack.c.b16 %v2501, %v2499
        %v2538 = vpack.c.b16 %v2504, %v2502
        %v2539 = vpack.c.b16 %v2505, %v2503
        %v2540 = vpack.c.b16 %v2508, %v2506
        %v2541 = vpack.c.b16 %v2509, %v2507
        %v2542 = vpack.c.b16 %v2512, %v2510
        %v2543 = vpack.c.b16 %v2513, %v2511
        %v2544 = vpack.c.b16 %v2516, %v2514
        %v2545 = vpack.c.b16 %v2517, %v2515
        %v2546 = vpack.c.b16 %v2520, %v2518
        %v2547 = vpack.c.b16 %v2521, %v2519
        %v2548 = vpack.c.b16 %v2524, %v2522
        %v2549 = vpack.c.b16 %v2525, %v2523
        %v2575 = vsel %vm2216, %v2452, 0
        %2577 = vmatprep.subr.bf16.mxu0 %v2541
        %2578 = vmatpush1.bf16.msra.mxu0 %v2540
        %2579 = vmatprep.subr.bf16.mxu0 %v2539
        %2580 = vmatpush1.bf16.msra.mxu0 %v2538
        %2581 = vmatprep.subr.bf16.mxu0 %v2537
        %2582 = vmatpush1.bf16.msra.mxu0 %v2536
        %2583 = vmatprep.subr.bf16.mxu0 %v2535
        %2584 = vmatpush1.bf16.msra.mxu0 %v2534
        %2585 = vmatprep.subr.bf16.mxu0 %v2533
        %2586 = vmatpush1.bf16.msra.mxu0 %v2532
        %2587 = vmatprep.subr.bf16.mxu0 %v2531
        %2588 = vmatpush1.bf16.msra.mxu0 %v2530
        %2589 = vmatprep.subr.bf16.mxu0 %v2529
        %2590 = vmatpush1.bf16.msra.mxu0 %v2528
        %2591 = vmatprep.subr.bf16.mxu0 %v2527
        %2592 = vmatpush1.bf16.msra.mxu0 %v2526
        %2593 = vmatprep.subr.bf16.mxu0 0
        %2594 = vmatpush2.bf16.msra.mxu0 0
        %2595 = vmatprep.subr.bf16.mxu0 0
        %2596 = vmatpush2.bf16.msra.mxu0 0
        %2597 = vmatprep.subr.bf16.mxu0 0
        %2598 = vmatpush2.bf16.msra.mxu0 0
        %2599 = vmatprep.subr.bf16.mxu0 0
        %2600 = vmatpush2.bf16.msra.mxu0 0
        %2601 = vmatprep.subr.bf16.mxu0 %v2549
        %2602 = vmatpush2.bf16.msra.mxu0 %v2548
        %2603 = vmatprep.subr.bf16.mxu0 %v2547
        %2604 = vmatpush2.bf16.msra.mxu0 %v2546
        %2605 = vmatprep.subr.bf16.mxu0 %v2545
        %2606 = vmatpush2.bf16.msra.mxu0 %v2544
        %2607 = vmatprep.subr.bf16.mxu0 %v2543
        %2608 = vmatpush2.bf16.msra.mxu0 %v2542
        %2609 = vmatprep.mubr.bf16.mxu0 %v2575
        %2610 = vmatmul.mubr.bf16.gmra.mxu0 %v2451
        %v2611 = vpop.f32.mrf.mxu0
        %v2612 = vadd.f32 0.0, %v2611
        %v2613 = vpop.f32.mrf.mxu0
        %v2614 = vadd.f32 0.0, %v2613
        %v2615 = vpop.f32.mrf.mxu0
        %v2616 = vpop.f32.mrf.mxu0
        %2617 = vdwg.mxu0
        %v2618 = vadd.f32 %v2418, %v2612
        %v2619 = vadd.f32 %v2420, %v2614
        %s2620 = scalar_lea.vmem [#allocation7], 576
        %v2621 = vld [vmem:[%s2620] sm:$0xff]
        %v2622 = vld [vmem:[%s2620 + $0x8] sm:$0xff]
        %v2623 = vld [vmem:[%s2620 + $0x10] sm:$0xff]
        %v2624 = vld [vmem:[%s2620 + $0x18] sm:$0xff]
        %v2625 = vld [vmem:[%s2620 + $0x20] sm:$0xff]
        %v2626 = vld [vmem:[%s2620 + $0x28] sm:$0xff]
        %v2627 = vld [vmem:[%s2620 + $0x30] sm:$0xff]
        %v2628 = vld [vmem:[%s2620 + $0x38] sm:$0xff]
        %v2629 = vld [vmem:[%s2620 + $0x40] sm:$0xff]
        %v2630 = vld [vmem:[%s2620 + $0x48] sm:$0xff]
        %v2631 = vld [vmem:[%s2620 + $0x50] sm:$0xff]
        %v2632 = vld [vmem:[%s2620 + $0x58] sm:$0xff]
        %v2633 = vld [vmem:[%s2620 + $0x60] sm:$0xff]
        %v2634 = vld [vmem:[%s2620 + $0x68] sm:$0xff]
        %v2635 = vld [vmem:[%s2620 + $0x70] sm:$0xff]
        %v2636 = vld [vmem:[%s2620 + $0x78] sm:$0xff]
        %v2637 = vld [vmem:[%s2620 + $0x80] sm:$0xff]
        %v2638 = vld [vmem:[%s2620 + $0x88] sm:$0xff]
        %v2639 = vld [vmem:[%s2620 + $0x90] sm:$0xff]
        %v2640 = vld [vmem:[%s2620 + $0x98] sm:$0xff]
        %v2641 = vld [vmem:[%s2620 + $0xa0] sm:$0xff]
        %v2642 = vld [vmem:[%s2620 + $0xa8] sm:$0xff]
        %v2643 = vld [vmem:[%s2620 + $0xb0] sm:$0xff]
        %v2644 = vld [vmem:[%s2620 + $0xb8] sm:$0xff]
        %v2645 = vrot.slane %v2082, 1
        %v2646 = vrot.slane %v2084, 2
        %v2647 = vor.u32 %v2645, %v2646
        %v2648 = vrot.slane %v2089, 1
        %v2649 = vrot.slane %v2091, 2
        %v2650 = vor.u32 %v2648, %v2649
        %v2676 = vunpack.c.l.b16 %v2621
        %v2677 = vunpack.c.h.b16 %v2621
        %v2678 = vunpack.c.l.b16 %v2622
        %v2679 = vunpack.c.h.b16 %v2622
        %v2680 = vunpack.c.l.b16 %v2623
        %v2681 = vunpack.c.h.b16 %v2623
        %v2682 = vunpack.c.l.b16 %v2624
        %v2683 = vunpack.c.h.b16 %v2624
        %v2684 = vunpack.c.l.b16 %v2625
        %v2685 = vunpack.c.h.b16 %v2625
        %v2686 = vunpack.c.l.b16 %v2626
        %v2687 = vunpack.c.h.b16 %v2626
        %v2688 = vunpack.c.l.b16 %v2627
        %v2689 = vunpack.c.h.b16 %v2627
        %v2690 = vunpack.c.l.b16 %v2628
        %v2691 = vunpack.c.h.b16 %v2628
        %v2692 = vunpack.c.l.b16 %v2629
        %v2693 = vunpack.c.h.b16 %v2629
        %v2694 = vunpack.c.l.b16 %v2630
        %v2695 = vunpack.c.h.b16 %v2630
        %v2696 = vunpack.c.l.b16 %v2631
        %v2697 = vunpack.c.h.b16 %v2631
        %v2698 = vunpack.c.l.b16 %v2632
        %v2699 = vunpack.c.h.b16 %v2632
        %v2700 = vunpack.c.l.b16 %v2633
        %v2701 = vunpack.c.h.b16 %v2633
        %v2702 = vunpack.c.l.b16 %v2634
        %v2703 = vunpack.c.h.b16 %v2634
        %v2704 = vunpack.c.l.b16 %v2635
        %v2705 = vunpack.c.h.b16 %v2635
        %v2706 = vunpack.c.l.b16 %v2636
        %v2707 = vunpack.c.h.b16 %v2636
        %v2708 = vunpack.c.l.b16 %v2637
        %v2709 = vunpack.c.h.b16 %v2637
        %v2710 = vunpack.c.l.b16 %v2638
        %v2711 = vunpack.c.h.b16 %v2638
        %v2712 = vunpack.c.l.b16 %v2639
        %v2713 = vunpack.c.h.b16 %v2639
        %v2714 = vunpack.c.l.b16 %v2640
        %v2715 = vunpack.c.h.b16 %v2640
        %v2716 = vunpack.c.l.b16 %v2641
        %v2717 = vunpack.c.h.b16 %v2641
        %v2718 = vunpack.c.l.b16 %v2642
        %v2719 = vunpack.c.h.b16 %v2642
        %v2720 = vunpack.c.l.b16 %v2643
        %v2721 = vunpack.c.h.b16 %v2643
        %v2722 = vunpack.c.l.b16 %v2644
        %v2723 = vunpack.c.h.b16 %v2644
        %v2724 = vpack.c.b16 %v2678, %v2676
        %v2725 = vpack.c.b16 %v2679, %v2677
        %v2726 = vpack.c.b16 %v2682, %v2680
        %v2727 = vpack.c.b16 %v2683, %v2681
        %v2728 = vpack.c.b16 %v2686, %v2684
        %v2729 = vpack.c.b16 %v2687, %v2685
        %v2730 = vpack.c.b16 %v2690, %v2688
        %v2731 = vpack.c.b16 %v2691, %v2689
        %v2732 = vpack.c.b16 %v2694, %v2692
        %v2733 = vpack.c.b16 %v2695, %v2693
        %v2734 = vpack.c.b16 %v2698, %v2696
        %v2735 = vpack.c.b16 %v2699, %v2697
        %v2736 = vpack.c.b16 %v2702, %v2700
        %v2737 = vpack.c.b16 %v2703, %v2701
        %v2738 = vpack.c.b16 %v2706, %v2704
        %v2739 = vpack.c.b16 %v2707, %v2705
        %v2740 = vpack.c.b16 %v2710, %v2708
        %v2741 = vpack.c.b16 %v2711, %v2709
        %v2742 = vpack.c.b16 %v2714, %v2712
        %v2743 = vpack.c.b16 %v2715, %v2713
        %v2744 = vpack.c.b16 %v2718, %v2716
        %v2745 = vpack.c.b16 %v2719, %v2717
        %v2746 = vpack.c.b16 %v2722, %v2720
        %v2747 = vpack.c.b16 %v2723, %v2721
        %v2773 = vsel %vm2216, %v2650, 0
        %2775 = vmatprep.subr.bf16.mxu0 %v2739
        %2776 = vmatpush1.bf16.msra.mxu0 %v2738
        %2777 = vmatprep.subr.bf16.mxu0 %v2737
        %2778 = vmatpush1.bf16.msra.mxu0 %v2736
        %2779 = vmatprep.subr.bf16.mxu0 %v2735
        %2780 = vmatpush1.bf16.msra.mxu0 %v2734
        %2781 = vmatprep.subr.bf16.mxu0 %v2733
        %2782 = vmatpush1.bf16.msra.mxu0 %v2732
        %2783 = vmatprep.subr.bf16.mxu0 %v2731
        %2784 = vmatpush1.bf16.msra.mxu0 %v2730
        %2785 = vmatprep.subr.bf16.mxu0 %v2729
        %2786 = vmatpush1.bf16.msra.mxu0 %v2728
        %2787 = vmatprep.subr.bf16.mxu0 %v2727
        %2788 = vmatpush1.bf16.msra.mxu0 %v2726
        %2789 = vmatprep.subr.bf16.mxu0 %v2725
        %2790 = vmatpush1.bf16.msra.mxu0 %v2724
        %2791 = vmatprep.subr.bf16.mxu0 0
        %2792 = vmatpush2.bf16.msra.mxu0 0
        %2793 = vmatprep.subr.bf16.mxu0 0
        %2794 = vmatpush2.bf16.msra.mxu0 0
        %2795 = vmatprep.subr.bf16.mxu0 0
        %2796 = vmatpush2.bf16.msra.mxu0 0
        %2797 = vmatprep.subr.bf16.mxu0 0
        %2798 = vmatpush2.bf16.msra.mxu0 0
        %2799 = vmatprep.subr.bf16.mxu0 %v2747
        %2800 = vmatpush2.bf16.msra.mxu0 %v2746
        %2801 = vmatprep.subr.bf16.mxu0 %v2745
        %2802 = vmatpush2.bf16.msra.mxu0 %v2744
        %2803 = vmatprep.subr.bf16.mxu0 %v2743
        %2804 = vmatpush2.bf16.msra.mxu0 %v2742
        %2805 = vmatprep.subr.bf16.mxu0 %v2741
        %2806 = vmatpush2.bf16.msra.mxu0 %v2740
        %2807 = vmatprep.mubr.bf16.mxu0 %v2773
        %2808 = vmatmul.mubr.bf16.gmra.mxu0 %v2647
        %v2809 = vpop.f32.mrf.mxu0
        %v2810 = vadd.f32 0.0, %v2809
        %v2811 = vpop.f32.mrf.mxu0
        %v2812 = vadd.f32 0.0, %v2811
        %v2813 = vpop.f32.mrf.mxu0
        %v2814 = vpop.f32.mrf.mxu0
        %2815 = vdwg.mxu0
        %v2816 = vadd.f32 %v2618, %v2810
        %v2817 = vadd.f32 %v2619, %v2812
        %s2818 = scalar_lea.vmem [#allocation7], 768
        %v2819 = vld [vmem:[%s2818] sm:$0xff]
        %v2820 = vld [vmem:[%s2818 + $0x8] sm:$0xff]
        %v2821 = vld [vmem:[%s2818 + $0x10] sm:$0xff]
        %v2822 = vld [vmem:[%s2818 + $0x18] sm:$0xff]
        %v2823 = vld [vmem:[%s2818 + $0x20] sm:$0xff]
        %v2824 = vld [vmem:[%s2818 + $0x28] sm:$0xff]
        %v2825 = vld [vmem:[%s2818 + $0x30] sm:$0xff]
        %v2826 = vld [vmem:[%s2818 + $0x38] sm:$0xff]
        %v2827 = vld [vmem:[%s2818 + $0x40] sm:$0xff]
        %v2828 = vld [vmem:[%s2818 + $0x48] sm:$0xff]
        %v2829 = vld [vmem:[%s2818 + $0x50] sm:$0xff]
        %v2830 = vld [vmem:[%s2818 + $0x58] sm:$0xff]
        %v2831 = vld [vmem:[%s2818 + $0x60] sm:$0xff]
        %v2832 = vld [vmem:[%s2818 + $0x68] sm:$0xff]
        %v2833 = vld [vmem:[%s2818 + $0x70] sm:$0xff]
        %v2834 = vld [vmem:[%s2818 + $0x78] sm:$0xff]
        %v2835 = vld [vmem:[%s2818 + $0x80] sm:$0xff]
        %v2836 = vld [vmem:[%s2818 + $0x88] sm:$0xff]
        %v2837 = vld [vmem:[%s2818 + $0x90] sm:$0xff]
        %v2838 = vld [vmem:[%s2818 + $0x98] sm:$0xff]
        %v2839 = vld [vmem:[%s2818 + $0xa0] sm:$0xff]
        %v2840 = vld [vmem:[%s2818 + $0xa8] sm:$0xff]
        %v2841 = vld [vmem:[%s2818 + $0xb0] sm:$0xff]
        %v2842 = vld [vmem:[%s2818 + $0xb8] sm:$0xff]
        %v2843 = vrot.slane %v2030, 2
        %v2844 = vrot.slane %v2031, 2
        %v2870 = vunpack.c.l.b16 %v2819
        %v2871 = vunpack.c.h.b16 %v2819
        %v2872 = vunpack.c.l.b16 %v2820
        %v2873 = vunpack.c.h.b16 %v2820
        %v2874 = vunpack.c.l.b16 %v2821
        %v2875 = vunpack.c.h.b16 %v2821
        %v2876 = vunpack.c.l.b16 %v2822
        %v2877 = vunpack.c.h.b16 %v2822
        %v2878 = vunpack.c.l.b16 %v2823
        %v2879 = vunpack.c.h.b16 %v2823
        %v2880 = vunpack.c.l.b16 %v2824
        %v2881 = vunpack.c.h.b16 %v2824
        %v2882 = vunpack.c.l.b16 %v2825
        %v2883 = vunpack.c.h.b16 %v2825
        %v2884 = vunpack.c.l.b16 %v2826
        %v2885 = vunpack.c.h.b16 %v2826
        %v2886 = vunpack.c.l.b16 %v2827
        %v2887 = vunpack.c.h.b16 %v2827
        %v2888 = vunpack.c.l.b16 %v2828
        %v2889 = vunpack.c.h.b16 %v2828
        %v2890 = vunpack.c.l.b16 %v2829
        %v2891 = vunpack.c.h.b16 %v2829
        %v2892 = vunpack.c.l.b16 %v2830
        %v2893 = vunpack.c.h.b16 %v2830
        %v2894 = vunpack.c.l.b16 %v2831
        %v2895 = vunpack.c.h.b16 %v2831
        %v2896 = vunpack.c.l.b16 %v2832
        %v2897 = vunpack.c.h.b16 %v2832
        %v2898 = vunpack.c.l.b16 %v2833
        %v2899 = vunpack.c.h.b16 %v2833
        %v2900 = vunpack.c.l.b16 %v2834
        %v2901 = vunpack.c.h.b16 %v2834
        %v2902 = vunpack.c.l.b16 %v2835
        %v2903 = vunpack.c.h.b16 %v2835
        %v2904 = vunpack.c.l.b16 %v2836
        %v2905 = vunpack.c.h.b16 %v2836
        %v2906 = vunpack.c.l.b16 %v2837
        %v2907 = vunpack.c.h.b16 %v2837
        %v2908 = vunpack.c.l.b16 %v2838
        %v2909 = vunpack.c.h.b16 %v2838
        %v2910 = vunpack.c.l.b16 %v2839
        %v2911 = vunpack.c.h.b16 %v2839
        %v2912 = vunpack.c.l.b16 %v2840
        %v2913 = vunpack.c.h.b16 %v2840
        %v2914 = vunpack.c.l.b16 %v2841
        %v2915 = vunpack.c.h.b16 %v2841
        %v2916 = vunpack.c.l.b16 %v2842
        %v2917 = vunpack.c.h.b16 %v2842
        %v2918 = vpack.c.b16 %v2872, %v2870
        %v2919 = vpack.c.b16 %v2873, %v2871
        %v2920 = vpack.c.b16 %v2876, %v2874
        %v2921 = vpack.c.b16 %v2877, %v2875
        %v2922 = vpack.c.b16 %v2880, %v2878
        %v2923 = vpack.c.b16 %v2881, %v2879
        %v2924 = vpack.c.b16 %v2884, %v2882
        %v2925 = vpack.c.b16 %v2885, %v2883
        %v2926 = vpack.c.b16 %v2888, %v2886
        %v2927 = vpack.c.b16 %v2889, %v2887
        %v2928 = vpack.c.b16 %v2892, %v2890
        %v2929 = vpack.c.b16 %v2893, %v2891
        %v2930 = vpack.c.b16 %v2896, %v2894
        %v2931 = vpack.c.b16 %v2897, %v2895
        %v2932 = vpack.c.b16 %v2900, %v2898
        %v2933 = vpack.c.b16 %v2901, %v2899
        %v2934 = vpack.c.b16 %v2904, %v2902
        %v2935 = vpack.c.b16 %v2905, %v2903
        %v2936 = vpack.c.b16 %v2908, %v2906
        %v2937 = vpack.c.b16 %v2909, %v2907
        %v2938 = vpack.c.b16 %v2912, %v2910
        %v2939 = vpack.c.b16 %v2913, %v2911
        %v2940 = vpack.c.b16 %v2916, %v2914
        %v2941 = vpack.c.b16 %v2917, %v2915
        %v2967 = vsel %vm2216, %v2844, 0
        %2969 = vmatprep.subr.bf16.mxu0 %v2933
        %2970 = vmatpush1.bf16.msra.mxu0 %v2932
        %2971 = vmatprep.subr.bf16.mxu0 %v2931
        %2972 = vmatpush1.bf16.msra.mxu0 %v2930
        %2973 = vmatprep.subr.bf16.mxu0 %v2929
        %2974 = vmatpush1.bf16.msra.mxu0 %v2928
        %2975 = vmatprep.subr.bf16.mxu0 %v2927
        %2976 = vmatpush1.bf16.msra.mxu0 %v2926
        %2977 = vmatprep.subr.bf16.mxu0 %v2925
        %2978 = vmatpush1.bf16.msra.mxu0 %v2924
        %2979 = vmatprep.subr.bf16.mxu0 %v2923
        %2980 = vmatpush1.bf16.msra.mxu0 %v2922
        %2981 = vmatprep.subr.bf16.mxu0 %v2921
        %2982 = vmatpush1.bf16.msra.mxu0 %v2920
        %2983 = vmatprep.subr.bf16.mxu0 %v2919
        %2984 = vmatpush1.bf16.msra.mxu0 %v2918
        %2985 = vmatprep.subr.bf16.mxu0 0
        %2986 = vmatpush2.bf16.msra.mxu0 0
        %2987 = vmatprep.subr.bf16.mxu0 0
        %2988 = vmatpush2.bf16.msra.mxu0 0
        %2989 = vmatprep.subr.bf16.mxu0 0
        %2990 = vmatpush2.bf16.msra.mxu0 0
        %2991 = vmatprep.subr.bf16.mxu0 0
        %2992 = vmatpush2.bf16.msra.mxu0 0
        %2993 = vmatprep.subr.bf16.mxu0 %v2941
        %2994 = vmatpush2.bf16.msra.mxu0 %v2940
        %2995 = vmatprep.subr.bf16.mxu0 %v2939
        %2996 = vmatpush2.bf16.msra.mxu0 %v2938
        %2997 = vmatprep.subr.bf16.mxu0 %v2937
        %2998 = vmatpush2.bf16.msra.mxu0 %v2936
        %2999 = vmatprep.subr.bf16.mxu0 %v2935
        %3000 = vmatpush2.bf16.msra.mxu0 %v2934
        %3001 = vmatprep.mubr.bf16.mxu0 %v2967
        %3002 = vmatmul.mubr.bf16.gmra.mxu0 %v2843
        %v3003 = vpop.f32.mrf.mxu0
        %v3004 = vadd.f32 0.0, %v3003
        %v3005 = vpop.f32.mrf.mxu0
        %v3006 = vadd.f32 0.0, %v3005
        %v3007 = vpop.f32.mrf.mxu0
        %v3008 = vpop.f32.mrf.mxu0
        %3009 = vdwg.mxu0
        %v3010 = vadd.f32 %v2816, %v3004
        %v3011 = vadd.f32 %v2817, %v3006
        %v3012 = vld [vmem:[#allocation8] sm:$0x3]
        %v3014 = vlaneseq
        %v3015 = vshrl.u32 %v3014, 7
        %v3016 = vsub.s32 0, %v3015
        %v3017 = vrot.slane %v3012, %v3016
        %v3018 = vlaneseq
        %v3019 = vshrl.u32 %v3018, 7
        %v3020 = vsub.s32 1, %v3019
        %v3021 = vrot.slane %v3012, %v3020
        %v3024 = vadd.f32 %v3010, %v3017
        %v3025 = vadd.f32 %v3011, %v3021
        %v3026 = vmax.f32 %v3024, 0.0
        %v3027 = vmax.f32 %v3025, 0.0
        %v3030 = vcombine.low %v3026, %v3027
        %v3031 = vcombine.high %v3026, %v3027
        %v3033 = vunpack.c.l.s4 1983009808
        %v3034 = vunpack.c.0.s8 %v3033
        %v3035 = vlaneseq
        %v3036 = vshrl.u32 %v3035, 7
        %v3037 = vsub.s32 %v3034, %v3036
        %v3038 = vrot.slane %v3030, %v3037
        %v3040 = vunpack.c.l.s4 1983009808
        %v3041 = vunpack.c.0.s8 %v3040
        %v3042 = vlaneseq
        %v3043 = vshrl.u32 %v3042, 7
        %v3044 = vsub.s32 %v3041, %v3043
        %v3045 = vrot.slane %v3031, %v3044
        %v3046 = vcombine.high %v3038, %v3038
        %v3047 = vcombine.high %v3045, %v3045
        %v3052 = vrot.slane %v3038, 7
        %v3053 = vrot.slane %v3052, 2
        %v3054 = vrot.slane %v3046, 7
        %v3055 = vrot.slane %v3054, 2
        %v3056 = vrot.slane %v3045, 7
        %v3057 = vrot.slane %v3056, 2
        %v3058 = vrot.slane %v3047, 7
        %v3059 = vrot.slane %v3058, 2
        %v3064 = vadd.f32 %v3038, %v3053
        %v3065 = vadd.f32 %v3046, %v3055
        %v3066 = vadd.f32 %v3045, %v3057
        %v3067 = vadd.f32 %v3047, %v3059
        %v3068 = vld [vmem:[#allocation10] sm:$0xff]
        %v3069 = vld [vmem:[#allocation10 + $0x8] sm:$0xff]
        %v3070 = vld [vmem:[#allocation10 + $0x10] sm:$0xff]
        %v3071 = vld [vmem:[#allocation10 + $0x18] sm:$0xff]
        %v3072 = vld [vmem:[#allocation10 + $0x20] sm:$0xff]
        %v3073 = vld [vmem:[#allocation10 + $0x28] sm:$0xff]
        %v3074 = vld [vmem:[#allocation10 + $0x30] sm:$0xff]
        %v3075 = vld [vmem:[#allocation10 + $0x38] sm:$0xff]
        %v3076 = vld [vmem:[#allocation10 + $0x40] sm:$0xff]
        %v3077 = vld [vmem:[#allocation10 + $0x48] sm:$0xff]
        %v3078 = vld [vmem:[#allocation10 + $0x50] sm:$0xff]
        %v3079 = vld [vmem:[#allocation10 + $0x58] sm:$0xff]
        %v3080 = vld [vmem:[#allocation10 + $0x60] sm:$0xff]
        %v3081 = vld [vmem:[#allocation10 + $0x68] sm:$0xff]
        %v3082 = vld [vmem:[#allocation10 + $0x70] sm:$0xff]
        %v3083 = vld [vmem:[#allocation10 + $0x78] sm:$0xff]
        %v3084 = vld [vmem:[#allocation10 + $0x80] sm:$0xff]
        %v3085 = vld [vmem:[#allocation10 + $0x88] sm:$0xff]
        %v3086 = vld [vmem:[#allocation10 + $0x90] sm:$0xff]
        %v3087 = vld [vmem:[#allocation10 + $0x98] sm:$0xff]
        %v3088 = vld [vmem:[#allocation10 + $0xa0] sm:$0xff]
        %v3089 = vld [vmem:[#allocation10 + $0xa8] sm:$0xff]
        %v3090 = vld [vmem:[#allocation10 + $0xb0] sm:$0xff]
        %v3091 = vld [vmem:[#allocation10 + $0xb8] sm:$0xff]
        %v3092 = vld [vmem:[#allocation10 + $0xc0] sm:$0xff]
        %v3093 = vld [vmem:[#allocation10 + $0xc8] sm:$0xff]
        %v3094 = vld [vmem:[#allocation10 + $0xd0] sm:$0xff]
        %v3095 = vld [vmem:[#allocation10 + $0xd8] sm:$0xff]
        %v3096 = vld [vmem:[#allocation10 + $0xe0] sm:$0xff]
        %v3097 = vld [vmem:[#allocation10 + $0xe8] sm:$0xff]
        %v3098 = vld [vmem:[#allocation10 + $0xf0] sm:$0xff]
        %v3099 = vld [vmem:[#allocation10 + $0xf8] sm:$0xff]
        %v3100 = vld [vmem:[#allocation10 + $0x100] sm:$0xff]
        %v3101 = vld [vmem:[#allocation10 + $0x108] sm:$0xff]
        %v3102 = vld [vmem:[#allocation10 + $0x110] sm:$0xff]
        %v3103 = vld [vmem:[#allocation10 + $0x118] sm:$0xff]
        %v3104 = vld [vmem:[#allocation10 + $0x120] sm:$0xff]
        %v3105 = vld [vmem:[#allocation10 + $0x128] sm:$0xff]
        %v3106 = vld [vmem:[#allocation10 + $0x130] sm:$0xff]
        %v3107 = vld [vmem:[#allocation10 + $0x138] sm:$0xff]
        %v3108 = vld [vmem:[#allocation10 + $0x140] sm:$0xff]
        %v3109 = vld [vmem:[#allocation10 + $0x148] sm:$0xff]
        %v3110 = vld [vmem:[#allocation10 + $0x150] sm:$0xff]
        %v3111 = vld [vmem:[#allocation10 + $0x158] sm:$0xff]
        %v3112 = vld [vmem:[#allocation10 + $0x160] sm:$0xff]
        %v3113 = vld [vmem:[#allocation10 + $0x168] sm:$0xff]
        %v3114 = vld [vmem:[#allocation10 + $0x170] sm:$0xff]
        %v3115 = vld [vmem:[#allocation10 + $0x178] sm:$0xff]
        %v3116 = vld [vmem:[#allocation10 + $0x180] sm:$0xff]
        %v3117 = vld [vmem:[#allocation10 + $0x188] sm:$0xff]
        %v3118 = vld [vmem:[#allocation10 + $0x190] sm:$0xff]
        %v3119 = vld [vmem:[#allocation10 + $0x198] sm:$0xff]
        %v3120 = vld [vmem:[#allocation10 + $0x1a0] sm:$0xff]
        %v3121 = vld [vmem:[#allocation10 + $0x1a8] sm:$0xff]
        %v3122 = vld [vmem:[#allocation10 + $0x1b0] sm:$0xff]
        %v3123 = vld [vmem:[#allocation10 + $0x1b8] sm:$0xff]
        %v3124 = vld [vmem:[#allocation10 + $0x1c0] sm:$0xff]
        %v3125 = vld [vmem:[#allocation10 + $0x1c8] sm:$0xff]
        %v3126 = vld [vmem:[#allocation10 + $0x1d0] sm:$0xff]
        %v3127 = vld [vmem:[#allocation10 + $0x1d8] sm:$0xff]
        %v3128 = vld [vmem:[#allocation10 + $0x1e0] sm:$0xff]
        %v3129 = vld [vmem:[#allocation10 + $0x1e8] sm:$0xff]
        %v3130 = vld [vmem:[#allocation10 + $0x1f0] sm:$0xff]
        %v3131 = vld [vmem:[#allocation10 + $0x1f8] sm:$0xff]
        %v3132 = vld [vmem:[#allocation10 + $0x200] sm:$0xff]
        %v3133 = vld [vmem:[#allocation10 + $0x208] sm:$0xff]
        %v3134 = vld [vmem:[#allocation10 + $0x210] sm:$0xff]
        %v3135 = vld [vmem:[#allocation10 + $0x218] sm:$0xff]
        %v3136 = vld [vmem:[#allocation10 + $0x220] sm:$0xff]
        %v3137 = vld [vmem:[#allocation10 + $0x228] sm:$0xff]
        %v3138 = vld [vmem:[#allocation10 + $0x230] sm:$0xff]
        %v3139 = vld [vmem:[#allocation10 + $0x238] sm:$0xff]
        %v3140 = vld [vmem:[#allocation10 + $0x240] sm:$0xff]
        %v3141 = vld [vmem:[#allocation10 + $0x248] sm:$0xff]
        %v3142 = vld [vmem:[#allocation10 + $0x250] sm:$0xff]
        %v3143 = vld [vmem:[#allocation10 + $0x258] sm:$0xff]
        %v3144 = vld [vmem:[#allocation10 + $0x260] sm:$0xff]
        %v3145 = vld [vmem:[#allocation10 + $0x268] sm:$0xff]
        %v3146 = vld [vmem:[#allocation10 + $0x270] sm:$0xff]
        %v3147 = vld [vmem:[#allocation10 + $0x278] sm:$0xff]
        %v3148 = vld [vmem:[#allocation10 + $0x280] sm:$0xff]
        %v3149 = vld [vmem:[#allocation10 + $0x288] sm:$0xff]
        %v3150 = vld [vmem:[#allocation10 + $0x290] sm:$0xff]
        %v3151 = vld [vmem:[#allocation10 + $0x298] sm:$0xff]
        %v3152 = vld [vmem:[#allocation10 + $0x2a0] sm:$0xff]
        %v3153 = vld [vmem:[#allocation10 + $0x2a8] sm:$0xff]
        %v3154 = vld [vmem:[#allocation10 + $0x2b0] sm:$0xff]
        %v3155 = vld [vmem:[#allocation10 + $0x2b8] sm:$0xff]
        %v3156 = vld [vmem:[#allocation10 + $0x2c0] sm:$0xff]
        %v3157 = vld [vmem:[#allocation10 + $0x2c8] sm:$0xff]
        %v3158 = vld [vmem:[#allocation10 + $0x2d0] sm:$0xff]
        %v3159 = vld [vmem:[#allocation10 + $0x2d8] sm:$0xff]
        %v3160 = vld [vmem:[#allocation10 + $0x2e0] sm:$0xff]
        %v3161 = vld [vmem:[#allocation10 + $0x2e8] sm:$0xff]
        %v3162 = vld [vmem:[#allocation10 + $0x2f0] sm:$0xff]
        %v3163 = vld [vmem:[#allocation10 + $0x2f8] sm:$0xff]
        %v3164 = vld [vmem:[#allocation10 + $0x300] sm:$0xff]
        %v3165 = vld [vmem:[#allocation10 + $0x308] sm:$0xff]
        %v3166 = vld [vmem:[#allocation10 + $0x310] sm:$0xff]
        %v3167 = vld [vmem:[#allocation10 + $0x318] sm:$0xff]
        %v3168 = vld [vmem:[#allocation10 + $0x320] sm:$0xff]
        %v3169 = vld [vmem:[#allocation10 + $0x328] sm:$0xff]
        %v3170 = vld [vmem:[#allocation10 + $0x330] sm:$0xff]
        %v3171 = vld [vmem:[#allocation10 + $0x338] sm:$0xff]
        %v3172 = vld [vmem:[#allocation10 + $0x340] sm:$0xff]
        %v3173 = vld [vmem:[#allocation10 + $0x348] sm:$0xff]
        %v3174 = vld [vmem:[#allocation10 + $0x350] sm:$0xff]
        %v3175 = vld [vmem:[#allocation10 + $0x358] sm:$0xff]
        %v3176 = vld [vmem:[#allocation10 + $0x360] sm:$0xff]
        %v3177 = vld [vmem:[#allocation10 + $0x368] sm:$0xff]
        %v3178 = vld [vmem:[#allocation10 + $0x370] sm:$0xff]
        %v3179 = vld [vmem:[#allocation10 + $0x378] sm:$0xff]
        %v3180 = vld [vmem:[#allocation10 + $0x380] sm:$0xff]
        %v3181 = vld [vmem:[#allocation10 + $0x388] sm:$0xff]
        %v3182 = vld [vmem:[#allocation10 + $0x390] sm:$0xff]
        %v3183 = vld [vmem:[#allocation10 + $0x398] sm:$0xff]
        %v3184 = vld [vmem:[#allocation10 + $0x3a0] sm:$0xff]
        %v3185 = vld [vmem:[#allocation10 + $0x3a8] sm:$0xff]
        %v3186 = vld [vmem:[#allocation10 + $0x3b0] sm:$0xff]
        %v3187 = vld [vmem:[#allocation10 + $0x3b8] sm:$0xff]
        %v3188 = vld [vmem:[#allocation10 + $0x3c0] sm:$0xff]
        %v3189 = vld [vmem:[#allocation10 + $0x3c8] sm:$0xff]
        %v3190 = vld [vmem:[#allocation10 + $0x3d0] sm:$0xff]
        %v3191 = vld [vmem:[#allocation10 + $0x3d8] sm:$0xff]
        %v3192 = vld [vmem:[#allocation10 + $0x3e0] sm:$0xff]
        %v3193 = vld [vmem:[#allocation10 + $0x3e8] sm:$0xff]
        %v3194 = vld [vmem:[#allocation10 + $0x3f0] sm:$0xff]
        %v3195 = vld [vmem:[#allocation10 + $0x3f8] sm:$0xff]
        %s3196 = scalar_lea.vmem [#allocation10], 1024
        %v3197 = vld [vmem:[%s3196] sm:$0xff]
        %v3198 = vld [vmem:[%s3196 + $0x8] sm:$0xff]
        %v3199 = vld [vmem:[%s3196 + $0x10] sm:$0xff]
        %v3200 = vld [vmem:[%s3196 + $0x18] sm:$0xff]
        %v3201 = vld [vmem:[%s3196 + $0x20] sm:$0xff]
        %v3202 = vld [vmem:[%s3196 + $0x28] sm:$0xff]
        %v3203 = vld [vmem:[%s3196 + $0x30] sm:$0xff]
        %v3204 = vld [vmem:[%s3196 + $0x38] sm:$0xff]
        %v3205 = vld [vmem:[%s3196 + $0x40] sm:$0xff]
        %v3206 = vld [vmem:[%s3196 + $0x48] sm:$0xff]
        %v3207 = vld [vmem:[%s3196 + $0x50] sm:$0xff]
        %v3208 = vld [vmem:[%s3196 + $0x58] sm:$0xff]
        %v3209 = vld [vmem:[%s3196 + $0x60] sm:$0xff]
        %v3210 = vld [vmem:[%s3196 + $0x68] sm:$0xff]
        %v3211 = vld [vmem:[%s3196 + $0x70] sm:$0xff]
        %v3212 = vld [vmem:[%s3196 + $0x78] sm:$0xff]
        %v3213 = vld [vmem:[%s3196 + $0x80] sm:$0xff]
        %v3214 = vld [vmem:[%s3196 + $0x88] sm:$0xff]
        %v3215 = vld [vmem:[%s3196 + $0x90] sm:$0xff]
        %v3216 = vld [vmem:[%s3196 + $0x98] sm:$0xff]
        %v3217 = vld [vmem:[%s3196 + $0xa0] sm:$0xff]
        %v3218 = vld [vmem:[%s3196 + $0xa8] sm:$0xff]
        %v3219 = vld [vmem:[%s3196 + $0xb0] sm:$0xff]
        %v3220 = vld [vmem:[%s3196 + $0xb8] sm:$0xff]
        %v3221 = vld [vmem:[%s3196 + $0xc0] sm:$0xff]
        %v3222 = vld [vmem:[%s3196 + $0xc8] sm:$0xff]
        %v3223 = vld [vmem:[%s3196 + $0xd0] sm:$0xff]
        %v3224 = vld [vmem:[%s3196 + $0xd8] sm:$0xff]
        %v3225 = vld [vmem:[%s3196 + $0xe0] sm:$0xff]
        %v3226 = vld [vmem:[%s3196 + $0xe8] sm:$0xff]
        %v3227 = vld [vmem:[%s3196 + $0xf0] sm:$0xff]
        %v3228 = vld [vmem:[%s3196 + $0xf8] sm:$0xff]
        %v3229 = vld [vmem:[%s3196 + $0x100] sm:$0xff]
        %v3230 = vld [vmem:[%s3196 + $0x108] sm:$0xff]
        %v3231 = vld [vmem:[%s3196 + $0x110] sm:$0xff]
        %v3232 = vld [vmem:[%s3196 + $0x118] sm:$0xff]
        %v3233 = vld [vmem:[%s3196 + $0x120] sm:$0xff]
        %v3234 = vld [vmem:[%s3196 + $0x128] sm:$0xff]
        %v3235 = vld [vmem:[%s3196 + $0x130] sm:$0xff]
        %v3236 = vld [vmem:[%s3196 + $0x138] sm:$0xff]
        %v3237 = vld [vmem:[%s3196 + $0x140] sm:$0xff]
        %v3238 = vld [vmem:[%s3196 + $0x148] sm:$0xff]
        %v3239 = vld [vmem:[%s3196 + $0x150] sm:$0xff]
        %v3240 = vld [vmem:[%s3196 + $0x158] sm:$0xff]
        %v3241 = vld [vmem:[%s3196 + $0x160] sm:$0xff]
        %v3242 = vld [vmem:[%s3196 + $0x168] sm:$0xff]
        %v3243 = vld [vmem:[%s3196 + $0x170] sm:$0xff]
        %v3244 = vld [vmem:[%s3196 + $0x178] sm:$0xff]
        %v3245 = vld [vmem:[%s3196 + $0x180] sm:$0xff]
        %v3246 = vld [vmem:[%s3196 + $0x188] sm:$0xff]
        %v3247 = vld [vmem:[%s3196 + $0x190] sm:$0xff]
        %v3248 = vld [vmem:[%s3196 + $0x198] sm:$0xff]
        %v3249 = vld [vmem:[%s3196 + $0x1a0] sm:$0xff]
        %v3250 = vld [vmem:[%s3196 + $0x1a8] sm:$0xff]
        %v3251 = vld [vmem:[%s3196 + $0x1b0] sm:$0xff]
        %v3252 = vld [vmem:[%s3196 + $0x1b8] sm:$0xff]
        %v3253 = vld [vmem:[%s3196 + $0x1c0] sm:$0xff]
        %v3254 = vld [vmem:[%s3196 + $0x1c8] sm:$0xff]
        %v3255 = vld [vmem:[%s3196 + $0x1d0] sm:$0xff]
        %v3256 = vld [vmem:[%s3196 + $0x1d8] sm:$0xff]
        %v3257 = vld [vmem:[%s3196 + $0x1e0] sm:$0xff]
        %v3258 = vld [vmem:[%s3196 + $0x1e8] sm:$0xff]
        %v3259 = vld [vmem:[%s3196 + $0x1f0] sm:$0xff]
        %v3260 = vld [vmem:[%s3196 + $0x1f8] sm:$0xff]
        %v3261 = vld [vmem:[%s3196 + $0x200] sm:$0xff]
        %v3262 = vld [vmem:[%s3196 + $0x208] sm:$0xff]
        %v3263 = vld [vmem:[%s3196 + $0x210] sm:$0xff]
        %v3264 = vld [vmem:[%s3196 + $0x218] sm:$0xff]
        %v3265 = vld [vmem:[%s3196 + $0x220] sm:$0xff]
        %v3266 = vld [vmem:[%s3196 + $0x228] sm:$0xff]
        %v3267 = vld [vmem:[%s3196 + $0x230] sm:$0xff]
        %v3268 = vld [vmem:[%s3196 + $0x238] sm:$0xff]
        %v3269 = vld [vmem:[%s3196 + $0x240] sm:$0xff]
        %v3270 = vld [vmem:[%s3196 + $0x248] sm:$0xff]
        %v3271 = vld [vmem:[%s3196 + $0x250] sm:$0xff]
        %v3272 = vld [vmem:[%s3196 + $0x258] sm:$0xff]
        %v3273 = vld [vmem:[%s3196 + $0x260] sm:$0xff]
        %v3274 = vld [vmem:[%s3196 + $0x268] sm:$0xff]
        %v3275 = vld [vmem:[%s3196 + $0x270] sm:$0xff]
        %v3276 = vld [vmem:[%s3196 + $0x278] sm:$0xff]
        %v3277 = vld [vmem:[%s3196 + $0x280] sm:$0xff]
        %v3278 = vld [vmem:[%s3196 + $0x288] sm:$0xff]
        %v3279 = vld [vmem:[%s3196 + $0x290] sm:$0xff]
        %v3280 = vld [vmem:[%s3196 + $0x298] sm:$0xff]
        %v3281 = vld [vmem:[%s3196 + $0x2a0] sm:$0xff]
        %v3282 = vld [vmem:[%s3196 + $0x2a8] sm:$0xff]
        %v3283 = vld [vmem:[%s3196 + $0x2b0] sm:$0xff]
        %v3284 = vld [vmem:[%s3196 + $0x2b8] sm:$0xff]
        %v3285 = vld [vmem:[%s3196 + $0x2c0] sm:$0xff]
        %v3286 = vld [vmem:[%s3196 + $0x2c8] sm:$0xff]
        %v3287 = vld [vmem:[%s3196 + $0x2d0] sm:$0xff]
        %v3288 = vld [vmem:[%s3196 + $0x2d8] sm:$0xff]
        %v3289 = vld [vmem:[%s3196 + $0x2e0] sm:$0xff]
        %v3290 = vld [vmem:[%s3196 + $0x2e8] sm:$0xff]
        %v3291 = vld [vmem:[%s3196 + $0x2f0] sm:$0xff]
        %v3292 = vld [vmem:[%s3196 + $0x2f8] sm:$0xff]
        %v3293 = vld [vmem:[%s3196 + $0x300] sm:$0xff]
        %v3294 = vld [vmem:[%s3196 + $0x308] sm:$0xff]
        %v3295 = vld [vmem:[%s3196 + $0x310] sm:$0xff]
        %v3296 = vld [vmem:[%s3196 + $0x318] sm:$0xff]
        %v3297 = vld [vmem:[%s3196 + $0x320] sm:$0xff]
        %v3298 = vld [vmem:[%s3196 + $0x328] sm:$0xff]
        %v3299 = vld [vmem:[%s3196 + $0x330] sm:$0xff]
        %v3300 = vld [vmem:[%s3196 + $0x338] sm:$0xff]
        %v3301 = vld [vmem:[%s3196 + $0x340] sm:$0xff]
        %v3302 = vld [vmem:[%s3196 + $0x348] sm:$0xff]
        %v3303 = vld [vmem:[%s3196 + $0x350] sm:$0xff]
        %v3304 = vld [vmem:[%s3196 + $0x358] sm:$0xff]
        %v3305 = vld [vmem:[%s3196 + $0x360] sm:$0xff]
        %v3306 = vld [vmem:[%s3196 + $0x368] sm:$0xff]
        %v3307 = vld [vmem:[%s3196 + $0x370] sm:$0xff]
        %v3308 = vld [vmem:[%s3196 + $0x378] sm:$0xff]
        %v3309 = vld [vmem:[%s3196 + $0x380] sm:$0xff]
        %v3310 = vld [vmem:[%s3196 + $0x388] sm:$0xff]
        %v3311 = vld [vmem:[%s3196 + $0x390] sm:$0xff]
        %v3312 = vld [vmem:[%s3196 + $0x398] sm:$0xff]
        %v3313 = vld [vmem:[%s3196 + $0x3a0] sm:$0xff]
        %v3314 = vld [vmem:[%s3196 + $0x3a8] sm:$0xff]
        %v3315 = vld [vmem:[%s3196 + $0x3b0] sm:$0xff]
        %v3316 = vld [vmem:[%s3196 + $0x3b8] sm:$0xff]
        %v3317 = vld [vmem:[%s3196 + $0x3c0] sm:$0xff]
        %v3318 = vld [vmem:[%s3196 + $0x3c8] sm:$0xff]
        %v3319 = vld [vmem:[%s3196 + $0x3d0] sm:$0xff]
        %v3320 = vld [vmem:[%s3196 + $0x3d8] sm:$0xff]
        %v3321 = vld [vmem:[%s3196 + $0x3e0] sm:$0xff]
        %v3322 = vld [vmem:[%s3196 + $0x3e8] sm:$0xff]
        %v3323 = vld [vmem:[%s3196 + $0x3f0] sm:$0xff]
        %v3324 = vld [vmem:[%s3196 + $0x3f8] sm:$0xff]
        %v3326 = vlaneseq
        %v3327 = vshrl.u32 %v3326, 7
        %v3328 = vsub.s32 0, %v3327
        %v3329 = vrot.slane %v3065, %v3328
        %v3330 = vlaneseq
        %v3331 = vshrl.u32 %v3330, 7
        %v3332 = vsub.s32 2, %v3331
        %v3333 = vrot.slane %v3065, %v3332
        %3336 = vmatprep.subr.mxu0 %v3258
        %3337 = vmatpush1.msra.mxu0 %v3257
        %3338 = vmatprep.subr.mxu0 %v3254
        %3339 = vmatpush1.msra.mxu0 %v3253
        %3340 = vmatprep.subr.mxu0 %v3250
        %3341 = vmatpush1.msra.mxu0 %v3249
        %3342 = vmatprep.subr.mxu0 %v3246
        %3343 = vmatpush1.msra.mxu0 %v3245
        %3344 = vmatprep.subr.mxu0 %v3242
        %3345 = vmatpush1.msra.mxu0 %v3241
        %3346 = vmatprep.subr.mxu0 %v3238
        %3347 = vmatpush1.msra.mxu0 %v3237
        %3348 = vmatprep.subr.mxu0 %v3234
        %3349 = vmatpush1.msra.mxu0 %v3233
        %3350 = vmatprep.subr.mxu0 %v3230
        %3351 = vmatpush1.msra.mxu0 %v3229
        %3352 = vmatprep.subr.mxu0 %v3226
        %3353 = vmatpush1.msra.mxu0 %v3225
        %3354 = vmatprep.subr.mxu0 %v3222
        %3355 = vmatpush1.msra.mxu0 %v3221
        %3356 = vmatprep.subr.mxu0 %v3218
        %3357 = vmatpush1.msra.mxu0 %v3217
        %3358 = vmatprep.subr.mxu0 %v3214
        %3359 = vmatpush1.msra.mxu0 %v3213
        %3360 = vmatprep.subr.mxu0 %v3210
        %3361 = vmatpush1.msra.mxu0 %v3209
        %3362 = vmatprep.subr.mxu0 %v3206
        %3363 = vmatpush1.msra.mxu0 %v3205
        %3364 = vmatprep.subr.mxu0 %v3202
        %3365 = vmatpush1.msra.mxu0 %v3201
        %3366 = vmatprep.subr.mxu0 %v3198
        %3367 = vmatpush1.msra.mxu0 %v3197
        %3368 = vmatprep.subr.mxu0 %v3322
        %3369 = vmatpush2.msra.mxu0 %v3321
        %3370 = vmatprep.subr.mxu0 %v3318
        %3371 = vmatpush2.msra.mxu0 %v3317
        %3372 = vmatprep.subr.mxu0 %v3314
        %3373 = vmatpush2.msra.mxu0 %v3313
        %3374 = vmatprep.subr.mxu0 %v3310
        %3375 = vmatpush2.msra.mxu0 %v3309
        %3376 = vmatprep.subr.mxu0 %v3306
        %3377 = vmatpush2.msra.mxu0 %v3305
        %3378 = vmatprep.subr.mxu0 %v3302
        %3379 = vmatpush2.msra.mxu0 %v3301
        %3380 = vmatprep.subr.mxu0 %v3298
        %3381 = vmatpush2.msra.mxu0 %v3297
        %3382 = vmatprep.subr.mxu0 %v3294
        %3383 = vmatpush2.msra.mxu0 %v3293
        %3384 = vmatprep.subr.mxu0 %v3290
        %3385 = vmatpush2.msra.mxu0 %v3289
        %3386 = vmatprep.subr.mxu0 %v3286
        %3387 = vmatpush2.msra.mxu0 %v3285
        %3388 = vmatprep.subr.mxu0 %v3282
        %3389 = vmatpush2.msra.mxu0 %v3281
        %3390 = vmatprep.subr.mxu0 %v3278
        %3391 = vmatpush2.msra.mxu0 %v3277
        %3392 = vmatprep.subr.mxu0 %v3274
        %3393 = vmatpush2.msra.mxu0 %v3273
        %3394 = vmatprep.subr.mxu0 %v3270
        %3395 = vmatpush2.msra.mxu0 %v3269
        %3396 = vmatprep.subr.mxu0 %v3266
        %3397 = vmatpush2.msra.mxu0 %v3265
        %3398 = vmatprep.subr.mxu0 %v3262
        %3399 = vmatpush2.msra.mxu0 %v3261
        %3400 = vmatprep.mubr.f32.mxu0 %v3333
        %3401 = vmatmul.mubr.f32.gmra.mxu0 %v3329
        %v3402 = vpop.f32.mrf.mxu0
        %v3403 = vadd.f32 0.0, %v3402
        %v3404 = vpop.f32.mrf.mxu0
        %v3405 = vadd.f32 0.0, %v3404
        %3406 = vdwg.mxu0
        %3407 = vmatprep.subr.mxu0 %v3260
        %3408 = vmatpush1.msra.mxu0 %v3259
        %3409 = vmatprep.subr.mxu0 %v3256
        %3410 = vmatpush1.msra.mxu0 %v3255
        %3411 = vmatprep.subr.mxu0 %v3252
        %3412 = vmatpush1.msra.mxu0 %v3251
        %3413 = vmatprep.subr.mxu0 %v3248
        %3414 = vmatpush1.msra.mxu0 %v3247
        %3415 = vmatprep.subr.mxu0 %v3244
        %3416 = vmatpush1.msra.mxu0 %v3243
        %3417 = vmatprep.subr.mxu0 %v3240
        %3418 = vmatpush1.msra.mxu0 %v3239
        %3419 = vmatprep.subr.mxu0 %v3236
        %3420 = vmatpush1.msra.mxu0 %v3235
        %3421 = vmatprep.subr.mxu0 %v3232
        %3422 = vmatpush1.msra.mxu0 %v3231
        %3423 = vmatprep.subr.mxu0 %v3228
        %3424 = vmatpush1.msra.mxu0 %v3227
        %3425 = vmatprep.subr.mxu0 %v3224
        %3426 = vmatpush1.msra.mxu0 %v3223
        %3427 = vmatprep.subr.mxu0 %v3220
        %3428 = vmatpush1.msra.mxu0 %v3219
        %3429 = vmatprep.subr.mxu0 %v3216
        %3430 = vmatpush1.msra.mxu0 %v3215
        %3431 = vmatprep.subr.mxu0 %v3212
        %3432 = vmatpush1.msra.mxu0 %v3211
        %3433 = vmatprep.subr.mxu0 %v3208
        %3434 = vmatpush1.msra.mxu0 %v3207
        %3435 = vmatprep.subr.mxu0 %v3204
        %3436 = vmatpush1.msra.mxu0 %v3203
        %3437 = vmatprep.subr.mxu0 %v3200
        %3438 = vmatpush1.msra.mxu0 %v3199
        %3439 = vmatprep.subr.mxu0 %v3324
        %3440 = vmatpush2.msra.mxu0 %v3323
        %3441 = vmatprep.subr.mxu0 %v3320
        %3442 = vmatpush2.msra.mxu0 %v3319
        %3443 = vmatprep.subr.mxu0 %v3316
        %3444 = vmatpush2.msra.mxu0 %v3315
        %3445 = vmatprep.subr.mxu0 %v3312
        %3446 = vmatpush2.msra.mxu0 %v3311
        %3447 = vmatprep.subr.mxu0 %v3308
        %3448 = vmatpush2.msra.mxu0 %v3307
        %3449 = vmatprep.subr.mxu0 %v3304
        %3450 = vmatpush2.msra.mxu0 %v3303
        %3451 = vmatprep.subr.mxu0 %v3300
        %3452 = vmatpush2.msra.mxu0 %v3299
        %3453 = vmatprep.subr.mxu0 %v3296
        %3454 = vmatpush2.msra.mxu0 %v3295
        %3455 = vmatprep.subr.mxu0 %v3292
        %3456 = vmatpush2.msra.mxu0 %v3291
        %3457 = vmatprep.subr.mxu0 %v3288
        %3458 = vmatpush2.msra.mxu0 %v3287
        %3459 = vmatprep.subr.mxu0 %v3284
        %3460 = vmatpush2.msra.mxu0 %v3283
        %3461 = vmatprep.subr.mxu0 %v3280
        %3462 = vmatpush2.msra.mxu0 %v3279
        %3463 = vmatprep.subr.mxu0 %v3276
        %3464 = vmatpush2.msra.mxu0 %v3275
        %3465 = vmatprep.subr.mxu0 %v3272
        %3466 = vmatpush2.msra.mxu0 %v3271
        %3467 = vmatprep.subr.mxu0 %v3268
        %3468 = vmatpush2.msra.mxu0 %v3267
        %3469 = vmatprep.subr.mxu0 %v3264
        %3470 = vmatpush2.msra.mxu0 %v3263
        %3471 = vmatprep.mubr.f32.mxu0 %v3333
        %3472 = vmatmul.mubr.f32.gmra.mxu0 %v3329
        %v3473 = vpop.f32.mrf.mxu0
        %v3474 = vadd.f32 0.0, %v3473
        %v3475 = vpop.f32.mrf.mxu0
        %v3476 = vadd.f32 0.0, %v3475
        %3477 = vdwg.mxu0
        %v3479 = vlaneseq
        %v3480 = vshrl.u32 %v3479, 7
        %v3481 = vsub.s32 0, %v3480
        %v3482 = vrot.slane %v3064, %v3481
        %v3483 = vlaneseq
        %v3484 = vshrl.u32 %v3483, 7
        %v3485 = vsub.s32 2, %v3484
        %v3486 = vrot.slane %v3064, %v3485
        %3489 = vmatprep.subr.mxu0 %v3129
        %3490 = vmatpush1.msra.mxu0 %v3128
        %3491 = vmatprep.subr.mxu0 %v3125
        %3492 = vmatpush1.msra.mxu0 %v3124
        %3493 = vmatprep.subr.mxu0 %v3121
        %3494 = vmatpush1.msra.mxu0 %v3120
        %3495 = vmatprep.subr.mxu0 %v3117
        %3496 = vmatpush1.msra.mxu0 %v3116
        %3497 = vmatprep.subr.mxu0 %v3113
        %3498 = vmatpush1.msra.mxu0 %v3112
        %3499 = vmatprep.subr.mxu0 %v3109
        %3500 = vmatpush1.msra.mxu0 %v3108
        %3501 = vmatprep.subr.mxu0 %v3105
        %3502 = vmatpush1.msra.mxu0 %v3104
        %3503 = vmatprep.subr.mxu0 %v3101
        %3504 = vmatpush1.msra.mxu0 %v3100
        %3505 = vmatprep.subr.mxu0 %v3097
        %3506 = vmatpush1.msra.mxu0 %v3096
        %3507 = vmatprep.subr.mxu0 %v3093
        %3508 = vmatpush1.msra.mxu0 %v3092
        %3509 = vmatprep.subr.mxu0 %v3089
        %3510 = vmatpush1.msra.mxu0 %v3088
        %3511 = vmatprep.subr.mxu0 %v3085
        %3512 = vmatpush1.msra.mxu0 %v3084
        %3513 = vmatprep.subr.mxu0 %v3081
        %3514 = vmatpush1.msra.mxu0 %v3080
        %3515 = vmatprep.subr.mxu0 %v3077
        %3516 = vmatpush1.msra.mxu0 %v3076
        %3517 = vmatprep.subr.mxu0 %v3073
        %3518 = vmatpush1.msra.mxu0 %v3072
        %3519 = vmatprep.subr.mxu0 %v3069
        %3520 = vmatpush1.msra.mxu0 %v3068
        %3521 = vmatprep.subr.mxu0 %v3193
        %3522 = vmatpush2.msra.mxu0 %v3192
        %3523 = vmatprep.subr.mxu0 %v3189
        %3524 = vmatpush2.msra.mxu0 %v3188
        %3525 = vmatprep.subr.mxu0 %v3185
        %3526 = vmatpush2.msra.mxu0 %v3184
        %3527 = vmatprep.subr.mxu0 %v3181
        %3528 = vmatpush2.msra.mxu0 %v3180
        %3529 = vmatprep.subr.mxu0 %v3177
        %3530 = vmatpush2.msra.mxu0 %v3176
        %3531 = vmatprep.subr.mxu0 %v3173
        %3532 = vmatpush2.msra.mxu0 %v3172
        %3533 = vmatprep.subr.mxu0 %v3169
        %3534 = vmatpush2.msra.mxu0 %v3168
        %3535 = vmatprep.subr.mxu0 %v3165
        %3536 = vmatpush2.msra.mxu0 %v3164
        %3537 = vmatprep.subr.mxu0 %v3161
        %3538 = vmatpush2.msra.mxu0 %v3160
        %3539 = vmatprep.subr.mxu0 %v3157
        %3540 = vmatpush2.msra.mxu0 %v3156
        %3541 = vmatprep.subr.mxu0 %v3153
        %3542 = vmatpush2.msra.mxu0 %v3152
        %3543 = vmatprep.subr.mxu0 %v3149
        %3544 = vmatpush2.msra.mxu0 %v3148
        %3545 = vmatprep.subr.mxu0 %v3145
        %3546 = vmatpush2.msra.mxu0 %v3144
        %3547 = vmatprep.subr.mxu0 %v3141
        %3548 = vmatpush2.msra.mxu0 %v3140
        %3549 = vmatprep.subr.mxu0 %v3137
        %3550 = vmatpush2.msra.mxu0 %v3136
        %3551 = vmatprep.subr.mxu0 %v3133
        %3552 = vmatpush2.msra.mxu0 %v3132
        %3553 = vmatprep.mubr.f32.mxu0 %v3486
        %3554 = vmatmul.mubr.f32.gmra.mxu0 %v3482
        %v3555 = vpop.f32.mrf.mxu0
        %v3556 = vadd.f32 %v3403, %v3555
        %v3557 = vpop.f32.mrf.mxu0
        %v3558 = vadd.f32 %v3405, %v3557
        %3559 = vdwg.mxu0
        %3560 = vmatprep.subr.mxu0 %v3131
        %3561 = vmatpush1.msra.mxu0 %v3130
        %3562 = vmatprep.subr.mxu0 %v3127
        %3563 = vmatpush1.msra.mxu0 %v3126
        %3564 = vmatprep.subr.mxu0 %v3123
        %3565 = vmatpush1.msra.mxu0 %v3122
        %3566 = vmatprep.subr.mxu0 %v3119
        %3567 = vmatpush1.msra.mxu0 %v3118
        %3568 = vmatprep.subr.mxu0 %v3115
        %3569 = vmatpush1.msra.mxu0 %v3114
        %3570 = vmatprep.subr.mxu0 %v3111
        %3571 = vmatpush1.msra.mxu0 %v3110
        %3572 = vmatprep.subr.mxu0 %v3107
        %3573 = vmatpush1.msra.mxu0 %v3106
        %3574 = vmatprep.subr.mxu0 %v3103
        %3575 = vmatpush1.msra.mxu0 %v3102
        %3576 = vmatprep.subr.mxu0 %v3099
        %3577 = vmatpush1.msra.mxu0 %v3098
        %3578 = vmatprep.subr.mxu0 %v3095
        %3579 = vmatpush1.msra.mxu0 %v3094
        %3580 = vmatprep.subr.mxu0 %v3091
        %3581 = vmatpush1.msra.mxu0 %v3090
        %3582 = vmatprep.subr.mxu0 %v3087
        %3583 = vmatpush1.msra.mxu0 %v3086
        %3584 = vmatprep.subr.mxu0 %v3083
        %3585 = vmatpush1.msra.mxu0 %v3082
        %3586 = vmatprep.subr.mxu0 %v3079
        %3587 = vmatpush1.msra.mxu0 %v3078
        %3588 = vmatprep.subr.mxu0 %v3075
        %3589 = vmatpush1.msra.mxu0 %v3074
        %3590 = vmatprep.subr.mxu0 %v3071
        %3591 = vmatpush1.msra.mxu0 %v3070
        %3592 = vmatprep.subr.mxu0 %v3195
        %3593 = vmatpush2.msra.mxu0 %v3194
        %3594 = vmatprep.subr.mxu0 %v3191
        %3595 = vmatpush2.msra.mxu0 %v3190
        %3596 = vmatprep.subr.mxu0 %v3187
        %3597 = vmatpush2.msra.mxu0 %v3186
        %3598 = vmatprep.subr.mxu0 %v3183
        %3599 = vmatpush2.msra.mxu0 %v3182
        %3600 = vmatprep.subr.mxu0 %v3179
        %3601 = vmatpush2.msra.mxu0 %v3178
        %3602 = vmatprep.subr.mxu0 %v3175
        %3603 = vmatpush2.msra.mxu0 %v3174
        %3604 = vmatprep.subr.mxu0 %v3171
        %3605 = vmatpush2.msra.mxu0 %v3170
        %3606 = vmatprep.subr.mxu0 %v3167
        %3607 = vmatpush2.msra.mxu0 %v3166
        %3608 = vmatprep.subr.mxu0 %v3163
        %3609 = vmatpush2.msra.mxu0 %v3162
        %3610 = vmatprep.subr.mxu0 %v3159
        %3611 = vmatpush2.msra.mxu0 %v3158
        %3612 = vmatprep.subr.mxu0 %v3155
        %3613 = vmatpush2.msra.mxu0 %v3154
        %3614 = vmatprep.subr.mxu0 %v3151
        %3615 = vmatpush2.msra.mxu0 %v3150
        %3616 = vmatprep.subr.mxu0 %v3147
        %3617 = vmatpush2.msra.mxu0 %v3146
        %3618 = vmatprep.subr.mxu0 %v3143
        %3619 = vmatpush2.msra.mxu0 %v3142
        %3620 = vmatprep.subr.mxu0 %v3139
        %3621 = vmatpush2.msra.mxu0 %v3138
        %3622 = vmatprep.subr.mxu0 %v3135
        %3623 = vmatpush2.msra.mxu0 %v3134
        %3624 = vmatprep.mubr.f32.mxu0 %v3486
        %3625 = vmatmul.mubr.f32.gmra.mxu0 %v3482
        %v3626 = vpop.f32.mrf.mxu0
        %v3627 = vadd.f32 %v3474, %v3626
        %v3628 = vpop.f32.mrf.mxu0
        %v3629 = vadd.f32 %v3476, %v3628
        %3630 = vdwg.mxu0
        %s3631 = scalar_lea.vmem [#allocation10], 2048
        %v3632 = vld [vmem:[%s3631] sm:$0xff]
        %v3633 = vld [vmem:[%s3631 + $0x8] sm:$0xff]
        %v3634 = vld [vmem:[%s3631 + $0x10] sm:$0xff]
        %v3635 = vld [vmem:[%s3631 + $0x18] sm:$0xff]
        %v3636 = vld [vmem:[%s3631 + $0x20] sm:$0xff]
        %v3637 = vld [vmem:[%s3631 + $0x28] sm:$0xff]
        %v3638 = vld [vmem:[%s3631 + $0x30] sm:$0xff]
        %v3639 = vld [vmem:[%s3631 + $0x38] sm:$0xff]
        %v3640 = vld [vmem:[%s3631 + $0x40] sm:$0xff]
        %v3641 = vld [vmem:[%s3631 + $0x48] sm:$0xff]
        %v3642 = vld [vmem:[%s3631 + $0x50] sm:$0xff]
        %v3643 = vld [vmem:[%s3631 + $0x58] sm:$0xff]
        %v3644 = vld [vmem:[%s3631 + $0x60] sm:$0xff]
        %v3645 = vld [vmem:[%s3631 + $0x68] sm:$0xff]
        %v3646 = vld [vmem:[%s3631 + $0x70] sm:$0xff]
        %v3647 = vld [vmem:[%s3631 + $0x78] sm:$0xff]
        %v3648 = vld [vmem:[%s3631 + $0x80] sm:$0xff]
        %v3649 = vld [vmem:[%s3631 + $0x88] sm:$0xff]
        %v3650 = vld [vmem:[%s3631 + $0x90] sm:$0xff]
        %v3651 = vld [vmem:[%s3631 + $0x98] sm:$0xff]
        %v3652 = vld [vmem:[%s3631 + $0xa0] sm:$0xff]
        %v3653 = vld [vmem:[%s3631 + $0xa8] sm:$0xff]
        %v3654 = vld [vmem:[%s3631 + $0xb0] sm:$0xff]
        %v3655 = vld [vmem:[%s3631 + $0xb8] sm:$0xff]
        %v3656 = vld [vmem:[%s3631 + $0xc0] sm:$0xff]
        %v3657 = vld [vmem:[%s3631 + $0xc8] sm:$0xff]
        %v3658 = vld [vmem:[%s3631 + $0xd0] sm:$0xff]
        %v3659 = vld [vmem:[%s3631 + $0xd8] sm:$0xff]
        %v3660 = vld [vmem:[%s3631 + $0xe0] sm:$0xff]
        %v3661 = vld [vmem:[%s3631 + $0xe8] sm:$0xff]
        %v3662 = vld [vmem:[%s3631 + $0xf0] sm:$0xff]
        %v3663 = vld [vmem:[%s3631 + $0xf8] sm:$0xff]
        %v3664 = vld [vmem:[%s3631 + $0x100] sm:$0xff]
        %v3665 = vld [vmem:[%s3631 + $0x108] sm:$0xff]
        %v3666 = vld [vmem:[%s3631 + $0x110] sm:$0xff]
        %v3667 = vld [vmem:[%s3631 + $0x118] sm:$0xff]
        %v3668 = vld [vmem:[%s3631 + $0x120] sm:$0xff]
        %v3669 = vld [vmem:[%s3631 + $0x128] sm:$0xff]
        %v3670 = vld [vmem:[%s3631 + $0x130] sm:$0xff]
        %v3671 = vld [vmem:[%s3631 + $0x138] sm:$0xff]
        %v3672 = vld [vmem:[%s3631 + $0x140] sm:$0xff]
        %v3673 = vld [vmem:[%s3631 + $0x148] sm:$0xff]
        %v3674 = vld [vmem:[%s3631 + $0x150] sm:$0xff]
        %v3675 = vld [vmem:[%s3631 + $0x158] sm:$0xff]
        %v3676 = vld [vmem:[%s3631 + $0x160] sm:$0xff]
        %v3677 = vld [vmem:[%s3631 + $0x168] sm:$0xff]
        %v3678 = vld [vmem:[%s3631 + $0x170] sm:$0xff]
        %v3679 = vld [vmem:[%s3631 + $0x178] sm:$0xff]
        %v3680 = vld [vmem:[%s3631 + $0x180] sm:$0xff]
        %v3681 = vld [vmem:[%s3631 + $0x188] sm:$0xff]
        %v3682 = vld [vmem:[%s3631 + $0x190] sm:$0xff]
        %v3683 = vld [vmem:[%s3631 + $0x198] sm:$0xff]
        %v3684 = vld [vmem:[%s3631 + $0x1a0] sm:$0xff]
        %v3685 = vld [vmem:[%s3631 + $0x1a8] sm:$0xff]
        %v3686 = vld [vmem:[%s3631 + $0x1b0] sm:$0xff]
        %v3687 = vld [vmem:[%s3631 + $0x1b8] sm:$0xff]
        %v3688 = vld [vmem:[%s3631 + $0x1c0] sm:$0xff]
        %v3689 = vld [vmem:[%s3631 + $0x1c8] sm:$0xff]
        %v3690 = vld [vmem:[%s3631 + $0x1d0] sm:$0xff]
        %v3691 = vld [vmem:[%s3631 + $0x1d8] sm:$0xff]
        %v3692 = vld [vmem:[%s3631 + $0x1e0] sm:$0xff]
        %v3693 = vld [vmem:[%s3631 + $0x1e8] sm:$0xff]
        %v3694 = vld [vmem:[%s3631 + $0x1f0] sm:$0xff]
        %v3695 = vld [vmem:[%s3631 + $0x1f8] sm:$0xff]
        %v3696 = vld [vmem:[%s3631 + $0x200] sm:$0xff]
        %v3697 = vld [vmem:[%s3631 + $0x208] sm:$0xff]
        %v3698 = vld [vmem:[%s3631 + $0x210] sm:$0xff]
        %v3699 = vld [vmem:[%s3631 + $0x218] sm:$0xff]
        %v3700 = vld [vmem:[%s3631 + $0x220] sm:$0xff]
        %v3701 = vld [vmem:[%s3631 + $0x228] sm:$0xff]
        %v3702 = vld [vmem:[%s3631 + $0x230] sm:$0xff]
        %v3703 = vld [vmem:[%s3631 + $0x238] sm:$0xff]
        %v3704 = vld [vmem:[%s3631 + $0x240] sm:$0xff]
        %v3705 = vld [vmem:[%s3631 + $0x248] sm:$0xff]
        %v3706 = vld [vmem:[%s3631 + $0x250] sm:$0xff]
        %v3707 = vld [vmem:[%s3631 + $0x258] sm:$0xff]
        %v3708 = vld [vmem:[%s3631 + $0x260] sm:$0xff]
        %v3709 = vld [vmem:[%s3631 + $0x268] sm:$0xff]
        %v3710 = vld [vmem:[%s3631 + $0x270] sm:$0xff]
        %v3711 = vld [vmem:[%s3631 + $0x278] sm:$0xff]
        %v3712 = vld [vmem:[%s3631 + $0x280] sm:$0xff]
        %v3713 = vld [vmem:[%s3631 + $0x288] sm:$0xff]
        %v3714 = vld [vmem:[%s3631 + $0x290] sm:$0xff]
        %v3715 = vld [vmem:[%s3631 + $0x298] sm:$0xff]
        %v3716 = vld [vmem:[%s3631 + $0x2a0] sm:$0xff]
        %v3717 = vld [vmem:[%s3631 + $0x2a8] sm:$0xff]
        %v3718 = vld [vmem:[%s3631 + $0x2b0] sm:$0xff]
        %v3719 = vld [vmem:[%s3631 + $0x2b8] sm:$0xff]
        %v3720 = vld [vmem:[%s3631 + $0x2c0] sm:$0xff]
        %v3721 = vld [vmem:[%s3631 + $0x2c8] sm:$0xff]
        %v3722 = vld [vmem:[%s3631 + $0x2d0] sm:$0xff]
        %v3723 = vld [vmem:[%s3631 + $0x2d8] sm:$0xff]
        %v3724 = vld [vmem:[%s3631 + $0x2e0] sm:$0xff]
        %v3725 = vld [vmem:[%s3631 + $0x2e8] sm:$0xff]
        %v3726 = vld [vmem:[%s3631 + $0x2f0] sm:$0xff]
        %v3727 = vld [vmem:[%s3631 + $0x2f8] sm:$0xff]
        %v3728 = vld [vmem:[%s3631 + $0x300] sm:$0xff]
        %v3729 = vld [vmem:[%s3631 + $0x308] sm:$0xff]
        %v3730 = vld [vmem:[%s3631 + $0x310] sm:$0xff]
        %v3731 = vld [vmem:[%s3631 + $0x318] sm:$0xff]
        %v3732 = vld [vmem:[%s3631 + $0x320] sm:$0xff]
        %v3733 = vld [vmem:[%s3631 + $0x328] sm:$0xff]
        %v3734 = vld [vmem:[%s3631 + $0x330] sm:$0xff]
        %v3735 = vld [vmem:[%s3631 + $0x338] sm:$0xff]
        %v3736 = vld [vmem:[%s3631 + $0x340] sm:$0xff]
        %v3737 = vld [vmem:[%s3631 + $0x348] sm:$0xff]
        %v3738 = vld [vmem:[%s3631 + $0x350] sm:$0xff]
        %v3739 = vld [vmem:[%s3631 + $0x358] sm:$0xff]
        %v3740 = vld [vmem:[%s3631 + $0x360] sm:$0xff]
        %v3741 = vld [vmem:[%s3631 + $0x368] sm:$0xff]
        %v3742 = vld [vmem:[%s3631 + $0x370] sm:$0xff]
        %v3743 = vld [vmem:[%s3631 + $0x378] sm:$0xff]
        %v3744 = vld [vmem:[%s3631 + $0x380] sm:$0xff]
        %v3745 = vld [vmem:[%s3631 + $0x388] sm:$0xff]
        %v3746 = vld [vmem:[%s3631 + $0x390] sm:$0xff]
        %v3747 = vld [vmem:[%s3631 + $0x398] sm:$0xff]
        %v3748 = vld [vmem:[%s3631 + $0x3a0] sm:$0xff]
        %v3749 = vld [vmem:[%s3631 + $0x3a8] sm:$0xff]
        %v3750 = vld [vmem:[%s3631 + $0x3b0] sm:$0xff]
        %v3751 = vld [vmem:[%s3631 + $0x3b8] sm:$0xff]
        %v3752 = vld [vmem:[%s3631 + $0x3c0] sm:$0xff]
        %v3753 = vld [vmem:[%s3631 + $0x3c8] sm:$0xff]
        %v3754 = vld [vmem:[%s3631 + $0x3d0] sm:$0xff]
        %v3755 = vld [vmem:[%s3631 + $0x3d8] sm:$0xff]
        %v3756 = vld [vmem:[%s3631 + $0x3e0] sm:$0xff]
        %v3757 = vld [vmem:[%s3631 + $0x3e8] sm:$0xff]
        %v3758 = vld [vmem:[%s3631 + $0x3f0] sm:$0xff]
        %v3759 = vld [vmem:[%s3631 + $0x3f8] sm:$0xff]
        %v3761 = vlaneseq
        %v3762 = vshrl.u32 %v3761, 7
        %v3763 = vsub.s32 0, %v3762
        %v3764 = vrot.slane %v3066, %v3763
        %v3765 = vlaneseq
        %v3766 = vshrl.u32 %v3765, 7
        %v3767 = vsub.s32 2, %v3766
        %v3768 = vrot.slane %v3066, %v3767
        %3771 = vmatprep.subr.mxu0 %v3693
        %3772 = vmatpush1.msra.mxu0 %v3692
        %3773 = vmatprep.subr.mxu0 %v3689
        %3774 = vmatpush1.msra.mxu0 %v3688
        %3775 = vmatprep.subr.mxu0 %v3685
        %3776 = vmatpush1.msra.mxu0 %v3684
        %3777 = vmatprep.subr.mxu0 %v3681
        %3778 = vmatpush1.msra.mxu0 %v3680
        %3779 = vmatprep.subr.mxu0 %v3677
        %3780 = vmatpush1.msra.mxu0 %v3676
        %3781 = vmatprep.subr.mxu0 %v3673
        %3782 = vmatpush1.msra.mxu0 %v3672
        %3783 = vmatprep.subr.mxu0 %v3669
        %3784 = vmatpush1.msra.mxu0 %v3668
        %3785 = vmatprep.subr.mxu0 %v3665
        %3786 = vmatpush1.msra.mxu0 %v3664
        %3787 = vmatprep.subr.mxu0 %v3661
        %3788 = vmatpush1.msra.mxu0 %v3660
        %3789 = vmatprep.subr.mxu0 %v3657
        %3790 = vmatpush1.msra.mxu0 %v3656
        %3791 = vmatprep.subr.mxu0 %v3653
        %3792 = vmatpush1.msra.mxu0 %v3652
        %3793 = vmatprep.subr.mxu0 %v3649
        %3794 = vmatpush1.msra.mxu0 %v3648
        %3795 = vmatprep.subr.mxu0 %v3645
        %3796 = vmatpush1.msra.mxu0 %v3644
        %3797 = vmatprep.subr.mxu0 %v3641
        %3798 = vmatpush1.msra.mxu0 %v3640
        %3799 = vmatprep.subr.mxu0 %v3637
        %3800 = vmatpush1.msra.mxu0 %v3636
        %3801 = vmatprep.subr.mxu0 %v3633
        %3802 = vmatpush1.msra.mxu0 %v3632
        %3803 = vmatprep.subr.mxu0 %v3757
        %3804 = vmatpush2.msra.mxu0 %v3756
        %3805 = vmatprep.subr.mxu0 %v3753
        %3806 = vmatpush2.msra.mxu0 %v3752
        %3807 = vmatprep.subr.mxu0 %v3749
        %3808 = vmatpush2.msra.mxu0 %v3748
        %3809 = vmatprep.subr.mxu0 %v3745
        %3810 = vmatpush2.msra.mxu0 %v3744
        %3811 = vmatprep.subr.mxu0 %v3741
        %3812 = vmatpush2.msra.mxu0 %v3740
        %3813 = vmatprep.subr.mxu0 %v3737
        %3814 = vmatpush2.msra.mxu0 %v3736
        %3815 = vmatprep.subr.mxu0 %v3733
        %3816 = vmatpush2.msra.mxu0 %v3732
        %3817 = vmatprep.subr.mxu0 %v3729
        %3818 = vmatpush2.msra.mxu0 %v3728
        %3819 = vmatprep.subr.mxu0 %v3725
        %3820 = vmatpush2.msra.mxu0 %v3724
        %3821 = vmatprep.subr.mxu0 %v3721
        %3822 = vmatpush2.msra.mxu0 %v3720
        %3823 = vmatprep.subr.mxu0 %v3717
        %3824 = vmatpush2.msra.mxu0 %v3716
        %3825 = vmatprep.subr.mxu0 %v3713
        %3826 = vmatpush2.msra.mxu0 %v3712
        %3827 = vmatprep.subr.mxu0 %v3709
        %3828 = vmatpush2.msra.mxu0 %v3708
        %3829 = vmatprep.subr.mxu0 %v3705
        %3830 = vmatpush2.msra.mxu0 %v3704
        %3831 = vmatprep.subr.mxu0 %v3701
        %3832 = vmatpush2.msra.mxu0 %v3700
        %3833 = vmatprep.subr.mxu0 %v3697
        %3834 = vmatpush2.msra.mxu0 %v3696
        %3835 = vmatprep.mubr.f32.mxu0 %v3768
        %3836 = vmatmul.mubr.f32.gmra.mxu0 %v3764
        %v3837 = vpop.f32.mrf.mxu0
        %v3838 = vadd.f32 0.0, %v3837
        %v3839 = vpop.f32.mrf.mxu0
        %v3840 = vadd.f32 0.0, %v3839
        %3841 = vdwg.mxu0
        %3842 = vmatprep.subr.mxu0 %v3695
        %3843 = vmatpush1.msra.mxu0 %v3694
        %3844 = vmatprep.subr.mxu0 %v3691
        %3845 = vmatpush1.msra.mxu0 %v3690
        %3846 = vmatprep.subr.mxu0 %v3687
        %3847 = vmatpush1.msra.mxu0 %v3686
        %3848 = vmatprep.subr.mxu0 %v3683
        %3849 = vmatpush1.msra.mxu0 %v3682
        %3850 = vmatprep.subr.mxu0 %v3679
        %3851 = vmatpush1.msra.mxu0 %v3678
        %3852 = vmatprep.subr.mxu0 %v3675
        %3853 = vmatpush1.msra.mxu0 %v3674
        %3854 = vmatprep.subr.mxu0 %v3671
        %3855 = vmatpush1.msra.mxu0 %v3670
        %3856 = vmatprep.subr.mxu0 %v3667
        %3857 = vmatpush1.msra.mxu0 %v3666
        %3858 = vmatprep.subr.mxu0 %v3663
        %3859 = vmatpush1.msra.mxu0 %v3662
        %3860 = vmatprep.subr.mxu0 %v3659
        %3861 = vmatpush1.msra.mxu0 %v3658
        %3862 = vmatprep.subr.mxu0 %v3655
        %3863 = vmatpush1.msra.mxu0 %v3654
        %3864 = vmatprep.subr.mxu0 %v3651
        %3865 = vmatpush1.msra.mxu0 %v3650
        %3866 = vmatprep.subr.mxu0 %v3647
        %3867 = vmatpush1.msra.mxu0 %v3646
        %3868 = vmatprep.subr.mxu0 %v3643
        %3869 = vmatpush1.msra.mxu0 %v3642
        %3870 = vmatprep.subr.mxu0 %v3639
        %3871 = vmatpush1.msra.mxu0 %v3638
        %3872 = vmatprep.subr.mxu0 %v3635
        %3873 = vmatpush1.msra.mxu0 %v3634
        %3874 = vmatprep.subr.mxu0 %v3759
        %3875 = vmatpush2.msra.mxu0 %v3758
        %3876 = vmatprep.subr.mxu0 %v3755
        %3877 = vmatpush2.msra.mxu0 %v3754
        %3878 = vmatprep.subr.mxu0 %v3751
        %3879 = vmatpush2.msra.mxu0 %v3750
        %3880 = vmatprep.subr.mxu0 %v3747
        %3881 = vmatpush2.msra.mxu0 %v3746
        %3882 = vmatprep.subr.mxu0 %v3743
        %3883 = vmatpush2.msra.mxu0 %v3742
        %3884 = vmatprep.subr.mxu0 %v3739
        %3885 = vmatpush2.msra.mxu0 %v3738
        %3886 = vmatprep.subr.mxu0 %v3735
        %3887 = vmatpush2.msra.mxu0 %v3734
        %3888 = vmatprep.subr.mxu0 %v3731
        %3889 = vmatpush2.msra.mxu0 %v3730
        %3890 = vmatprep.subr.mxu0 %v3727
        %3891 = vmatpush2.msra.mxu0 %v3726
        %3892 = vmatprep.subr.mxu0 %v3723
        %3893 = vmatpush2.msra.mxu0 %v3722
        %3894 = vmatprep.subr.mxu0 %v3719
        %3895 = vmatpush2.msra.mxu0 %v3718
        %3896 = vmatprep.subr.mxu0 %v3715
        %3897 = vmatpush2.msra.mxu0 %v3714
        %3898 = vmatprep.subr.mxu0 %v3711
        %3899 = vmatpush2.msra.mxu0 %v3710
        %3900 = vmatprep.subr.mxu0 %v3707
        %3901 = vmatpush2.msra.mxu0 %v3706
        %3902 = vmatprep.subr.mxu0 %v3703
        %3903 = vmatpush2.msra.mxu0 %v3702
        %3904 = vmatprep.subr.mxu0 %v3699
        %3905 = vmatpush2.msra.mxu0 %v3698
        %3906 = vmatprep.mubr.f32.mxu0 %v3768
        %3907 = vmatmul.mubr.f32.gmra.mxu0 %v3764
        %v3908 = vpop.f32.mrf.mxu0
        %v3909 = vadd.f32 0.0, %v3908
        %v3910 = vpop.f32.mrf.mxu0
        %v3911 = vadd.f32 0.0, %v3910
        %3912 = vdwg.mxu0
        %v3913 = vadd.f32 %v3556, %v3838
        %v3914 = vadd.f32 %v3558, %v3840
        %v3915 = vadd.f32 %v3627, %v3909
        %v3916 = vadd.f32 %v3629, %v3911
        %s3917 = scalar_lea.vmem [#allocation10], 3072
        %v3918 = vld [vmem:[%s3917] sm:$0xff]
        %v3919 = vld [vmem:[%s3917 + $0x8] sm:$0xff]
        %v3920 = vld [vmem:[%s3917 + $0x10] sm:$0xff]
        %v3921 = vld [vmem:[%s3917 + $0x18] sm:$0xff]
        %v3922 = vld [vmem:[%s3917 + $0x20] sm:$0xff]
        %v3923 = vld [vmem:[%s3917 + $0x28] sm:$0xff]
        %v3924 = vld [vmem:[%s3917 + $0x30] sm:$0xff]
        %v3925 = vld [vmem:[%s3917 + $0x38] sm:$0xff]
        %v3926 = vld [vmem:[%s3917 + $0x40] sm:$0xff]
        %v3927 = vld [vmem:[%s3917 + $0x48] sm:$0xff]
        %v3928 = vld [vmem:[%s3917 + $0x50] sm:$0xff]
        %v3929 = vld [vmem:[%s3917 + $0x58] sm:$0xff]
        %v3930 = vld [vmem:[%s3917 + $0x60] sm:$0xff]
        %v3931 = vld [vmem:[%s3917 + $0x68] sm:$0xff]
        %v3932 = vld [vmem:[%s3917 + $0x70] sm:$0xff]
        %v3933 = vld [vmem:[%s3917 + $0x78] sm:$0xff]
        %v3934 = vld [vmem:[%s3917 + $0x80] sm:$0xff]
        %v3935 = vld [vmem:[%s3917 + $0x88] sm:$0xff]
        %v3936 = vld [vmem:[%s3917 + $0x90] sm:$0xff]
        %v3937 = vld [vmem:[%s3917 + $0x98] sm:$0xff]
        %v3938 = vld [vmem:[%s3917 + $0xa0] sm:$0xff]
        %v3939 = vld [vmem:[%s3917 + $0xa8] sm:$0xff]
        %v3940 = vld [vmem:[%s3917 + $0xb0] sm:$0xff]
        %v3941 = vld [vmem:[%s3917 + $0xb8] sm:$0xff]
        %v3942 = vld [vmem:[%s3917 + $0xc0] sm:$0xff]
        %v3943 = vld [vmem:[%s3917 + $0xc8] sm:$0xff]
        %v3944 = vld [vmem:[%s3917 + $0xd0] sm:$0xff]
        %v3945 = vld [vmem:[%s3917 + $0xd8] sm:$0xff]
        %v3946 = vld [vmem:[%s3917 + $0xe0] sm:$0xff]
        %v3947 = vld [vmem:[%s3917 + $0xe8] sm:$0xff]
        %v3948 = vld [vmem:[%s3917 + $0xf0] sm:$0xff]
        %v3949 = vld [vmem:[%s3917 + $0xf8] sm:$0xff]
        %v3950 = vld [vmem:[%s3917 + $0x100] sm:$0xff]
        %v3951 = vld [vmem:[%s3917 + $0x108] sm:$0xff]
        %v3952 = vld [vmem:[%s3917 + $0x110] sm:$0xff]
        %v3953 = vld [vmem:[%s3917 + $0x118] sm:$0xff]
        %v3954 = vld [vmem:[%s3917 + $0x120] sm:$0xff]
        %v3955 = vld [vmem:[%s3917 + $0x128] sm:$0xff]
        %v3956 = vld [vmem:[%s3917 + $0x130] sm:$0xff]
        %v3957 = vld [vmem:[%s3917 + $0x138] sm:$0xff]
        %v3958 = vld [vmem:[%s3917 + $0x140] sm:$0xff]
        %v3959 = vld [vmem:[%s3917 + $0x148] sm:$0xff]
        %v3960 = vld [vmem:[%s3917 + $0x150] sm:$0xff]
        %v3961 = vld [vmem:[%s3917 + $0x158] sm:$0xff]
        %v3962 = vld [vmem:[%s3917 + $0x160] sm:$0xff]
        %v3963 = vld [vmem:[%s3917 + $0x168] sm:$0xff]
        %v3964 = vld [vmem:[%s3917 + $0x170] sm:$0xff]
        %v3965 = vld [vmem:[%s3917 + $0x178] sm:$0xff]
        %v3966 = vld [vmem:[%s3917 + $0x180] sm:$0xff]
        %v3967 = vld [vmem:[%s3917 + $0x188] sm:$0xff]
        %v3968 = vld [vmem:[%s3917 + $0x190] sm:$0xff]
        %v3969 = vld [vmem:[%s3917 + $0x198] sm:$0xff]
        %v3970 = vld [vmem:[%s3917 + $0x1a0] sm:$0xff]
        %v3971 = vld [vmem:[%s3917 + $0x1a8] sm:$0xff]
        %v3972 = vld [vmem:[%s3917 + $0x1b0] sm:$0xff]
        %v3973 = vld [vmem:[%s3917 + $0x1b8] sm:$0xff]
        %v3974 = vld [vmem:[%s3917 + $0x1c0] sm:$0xff]
        %v3975 = vld [vmem:[%s3917 + $0x1c8] sm:$0xff]
        %v3976 = vld [vmem:[%s3917 + $0x1d0] sm:$0xff]
        %v3977 = vld [vmem:[%s3917 + $0x1d8] sm:$0xff]
        %v3978 = vld [vmem:[%s3917 + $0x1e0] sm:$0xff]
        %v3979 = vld [vmem:[%s3917 + $0x1e8] sm:$0xff]
        %v3980 = vld [vmem:[%s3917 + $0x1f0] sm:$0xff]
        %v3981 = vld [vmem:[%s3917 + $0x1f8] sm:$0xff]
        %v3982 = vld [vmem:[%s3917 + $0x200] sm:$0xff]
        %v3983 = vld [vmem:[%s3917 + $0x208] sm:$0xff]
        %v3984 = vld [vmem:[%s3917 + $0x210] sm:$0xff]
        %v3985 = vld [vmem:[%s3917 + $0x218] sm:$0xff]
        %v3986 = vld [vmem:[%s3917 + $0x220] sm:$0xff]
        %v3987 = vld [vmem:[%s3917 + $0x228] sm:$0xff]
        %v3988 = vld [vmem:[%s3917 + $0x230] sm:$0xff]
        %v3989 = vld [vmem:[%s3917 + $0x238] sm:$0xff]
        %v3990 = vld [vmem:[%s3917 + $0x240] sm:$0xff]
        %v3991 = vld [vmem:[%s3917 + $0x248] sm:$0xff]
        %v3992 = vld [vmem:[%s3917 + $0x250] sm:$0xff]
        %v3993 = vld [vmem:[%s3917 + $0x258] sm:$0xff]
        %v3994 = vld [vmem:[%s3917 + $0x260] sm:$0xff]
        %v3995 = vld [vmem:[%s3917 + $0x268] sm:$0xff]
        %v3996 = vld [vmem:[%s3917 + $0x270] sm:$0xff]
        %v3997 = vld [vmem:[%s3917 + $0x278] sm:$0xff]
        %v3998 = vld [vmem:[%s3917 + $0x280] sm:$0xff]
        %v3999 = vld [vmem:[%s3917 + $0x288] sm:$0xff]
        %v4000 = vld [vmem:[%s3917 + $0x290] sm:$0xff]
        %v4001 = vld [vmem:[%s3917 + $0x298] sm:$0xff]
        %v4002 = vld [vmem:[%s3917 + $0x2a0] sm:$0xff]
        %v4003 = vld [vmem:[%s3917 + $0x2a8] sm:$0xff]
        %v4004 = vld [vmem:[%s3917 + $0x2b0] sm:$0xff]
        %v4005 = vld [vmem:[%s3917 + $0x2b8] sm:$0xff]
        %v4006 = vld [vmem:[%s3917 + $0x2c0] sm:$0xff]
        %v4007 = vld [vmem:[%s3917 + $0x2c8] sm:$0xff]
        %v4008 = vld [vmem:[%s3917 + $0x2d0] sm:$0xff]
        %v4009 = vld [vmem:[%s3917 + $0x2d8] sm:$0xff]
        %v4010 = vld [vmem:[%s3917 + $0x2e0] sm:$0xff]
        %v4011 = vld [vmem:[%s3917 + $0x2e8] sm:$0xff]
        %v4012 = vld [vmem:[%s3917 + $0x2f0] sm:$0xff]
        %v4013 = vld [vmem:[%s3917 + $0x2f8] sm:$0xff]
        %v4014 = vld [vmem:[%s3917 + $0x300] sm:$0xff]
        %v4015 = vld [vmem:[%s3917 + $0x308] sm:$0xff]
        %v4016 = vld [vmem:[%s3917 + $0x310] sm:$0xff]
        %v4017 = vld [vmem:[%s3917 + $0x318] sm:$0xff]
        %v4018 = vld [vmem:[%s3917 + $0x320] sm:$0xff]
        %v4019 = vld [vmem:[%s3917 + $0x328] sm:$0xff]
        %v4020 = vld [vmem:[%s3917 + $0x330] sm:$0xff]
        %v4021 = vld [vmem:[%s3917 + $0x338] sm:$0xff]
        %v4022 = vld [vmem:[%s3917 + $0x340] sm:$0xff]
        %v4023 = vld [vmem:[%s3917 + $0x348] sm:$0xff]
        %v4024 = vld [vmem:[%s3917 + $0x350] sm:$0xff]
        %v4025 = vld [vmem:[%s3917 + $0x358] sm:$0xff]
        %v4026 = vld [vmem:[%s3917 + $0x360] sm:$0xff]
        %v4027 = vld [vmem:[%s3917 + $0x368] sm:$0xff]
        %v4028 = vld [vmem:[%s3917 + $0x370] sm:$0xff]
        %v4029 = vld [vmem:[%s3917 + $0x378] sm:$0xff]
        %v4030 = vld [vmem:[%s3917 + $0x380] sm:$0xff]
        %v4031 = vld [vmem:[%s3917 + $0x388] sm:$0xff]
        %v4032 = vld [vmem:[%s3917 + $0x390] sm:$0xff]
        %v4033 = vld [vmem:[%s3917 + $0x398] sm:$0xff]
        %v4034 = vld [vmem:[%s3917 + $0x3a0] sm:$0xff]
        %v4035 = vld [vmem:[%s3917 + $0x3a8] sm:$0xff]
        %v4036 = vld [vmem:[%s3917 + $0x3b0] sm:$0xff]
        %v4037 = vld [vmem:[%s3917 + $0x3b8] sm:$0xff]
        %v4038 = vld [vmem:[%s3917 + $0x3c0] sm:$0xff]
        %v4039 = vld [vmem:[%s3917 + $0x3c8] sm:$0xff]
        %v4040 = vld [vmem:[%s3917 + $0x3d0] sm:$0xff]
        %v4041 = vld [vmem:[%s3917 + $0x3d8] sm:$0xff]
        %v4042 = vld [vmem:[%s3917 + $0x3e0] sm:$0xff]
        %v4043 = vld [vmem:[%s3917 + $0x3e8] sm:$0xff]
        %v4044 = vld [vmem:[%s3917 + $0x3f0] sm:$0xff]
        %v4045 = vld [vmem:[%s3917 + $0x3f8] sm:$0xff]
        %v4047 = vlaneseq
        %v4048 = vshrl.u32 %v4047, 7
        %v4049 = vsub.s32 0, %v4048
        %v4050 = vrot.slane %v3067, %v4049
        %v4051 = vlaneseq
        %v4052 = vshrl.u32 %v4051, 7
        %v4053 = vsub.s32 2, %v4052
        %v4054 = vrot.slane %v3067, %v4053
        %4057 = vmatprep.subr.mxu0 %v3979
        %4058 = vmatpush1.msra.mxu0 %v3978
        %4059 = vmatprep.subr.mxu0 %v3975
        %4060 = vmatpush1.msra.mxu0 %v3974
        %4061 = vmatprep.subr.mxu0 %v3971
        %4062 = vmatpush1.msra.mxu0 %v3970
        %4063 = vmatprep.subr.mxu0 %v3967
        %4064 = vmatpush1.msra.mxu0 %v3966
        %4065 = vmatprep.subr.mxu0 %v3963
        %4066 = vmatpush1.msra.mxu0 %v3962
        %4067 = vmatprep.subr.mxu0 %v3959
        %4068 = vmatpush1.msra.mxu0 %v3958
        %4069 = vmatprep.subr.mxu0 %v3955
        %4070 = vmatpush1.msra.mxu0 %v3954
        %4071 = vmatprep.subr.mxu0 %v3951
        %4072 = vmatpush1.msra.mxu0 %v3950
        %4073 = vmatprep.subr.mxu0 %v3947
        %4074 = vmatpush1.msra.mxu0 %v3946
        %4075 = vmatprep.subr.mxu0 %v3943
        %4076 = vmatpush1.msra.mxu0 %v3942
        %4077 = vmatprep.subr.mxu0 %v3939
        %4078 = vmatpush1.msra.mxu0 %v3938
        %4079 = vmatprep.subr.mxu0 %v3935
        %4080 = vmatpush1.msra.mxu0 %v3934
        %4081 = vmatprep.subr.mxu0 %v3931
        %4082 = vmatpush1.msra.mxu0 %v3930
        %4083 = vmatprep.subr.mxu0 %v3927
        %4084 = vmatpush1.msra.mxu0 %v3926
        %4085 = vmatprep.subr.mxu0 %v3923
        %4086 = vmatpush1.msra.mxu0 %v3922
        %4087 = vmatprep.subr.mxu0 %v3919
        %4088 = vmatpush1.msra.mxu0 %v3918
        %4089 = vmatprep.subr.mxu0 %v4043
        %4090 = vmatpush2.msra.mxu0 %v4042
        %4091 = vmatprep.subr.mxu0 %v4039
        %4092 = vmatpush2.msra.mxu0 %v4038
        %4093 = vmatprep.subr.mxu0 %v4035
        %4094 = vmatpush2.msra.mxu0 %v4034
        %4095 = vmatprep.subr.mxu0 %v4031
        %4096 = vmatpush2.msra.mxu0 %v4030
        %4097 = vmatprep.subr.mxu0 %v4027
        %4098 = vmatpush2.msra.mxu0 %v4026
        %4099 = vmatprep.subr.mxu0 %v4023
        %4100 = vmatpush2.msra.mxu0 %v4022
        %4101 = vmatprep.subr.mxu0 %v4019
        %4102 = vmatpush2.msra.mxu0 %v4018
        %4103 = vmatprep.subr.mxu0 %v4015
        %4104 = vmatpush2.msra.mxu0 %v4014
        %4105 = vmatprep.subr.mxu0 %v4011
        %4106 = vmatpush2.msra.mxu0 %v4010
        %4107 = vmatprep.subr.mxu0 %v4007
        %4108 = vmatpush2.msra.mxu0 %v4006
        %4109 = vmatprep.subr.mxu0 %v4003
        %4110 = vmatpush2.msra.mxu0 %v4002
        %4111 = vmatprep.subr.mxu0 %v3999
        %4112 = vmatpush2.msra.mxu0 %v3998
        %4113 = vmatprep.subr.mxu0 %v3995
        %4114 = vmatpush2.msra.mxu0 %v3994
        %4115 = vmatprep.subr.mxu0 %v3991
        %4116 = vmatpush2.msra.mxu0 %v3990
        %4117 = vmatprep.subr.mxu0 %v3987
        %4118 = vmatpush2.msra.mxu0 %v3986
        %4119 = vmatprep.subr.mxu0 %v3983
        %4120 = vmatpush2.msra.mxu0 %v3982
        %4121 = vmatprep.mubr.f32.mxu0 %v4054
        %4122 = vmatmul.mubr.f32.gmra.mxu0 %v4050
        %v4123 = vpop.f32.mrf.mxu0
        %v4124 = vadd.f32 0.0, %v4123
        %v4125 = vpop.f32.mrf.mxu0
        %v4126 = vadd.f32 0.0, %v4125
        %4127 = vdwg.mxu0
        %4128 = vmatprep.subr.mxu0 %v3981
        %4129 = vmatpush1.msra.mxu0 %v3980
        %4130 = vmatprep.subr.mxu0 %v3977
        %4131 = vmatpush1.msra.mxu0 %v3976
        %4132 = vmatprep.subr.mxu0 %v3973
        %4133 = vmatpush1.msra.mxu0 %v3972
        %4134 = vmatprep.subr.mxu0 %v3969
        %4135 = vmatpush1.msra.mxu0 %v3968
        %4136 = vmatprep.subr.mxu0 %v3965
        %4137 = vmatpush1.msra.mxu0 %v3964
        %4138 = vmatprep.subr.mxu0 %v3961
        %4139 = vmatpush1.msra.mxu0 %v3960
        %4140 = vmatprep.subr.mxu0 %v3957
        %4141 = vmatpush1.msra.mxu0 %v3956
        %4142 = vmatprep.subr.mxu0 %v3953
        %4143 = vmatpush1.msra.mxu0 %v3952
        %4144 = vmatprep.subr.mxu0 %v3949
        %4145 = vmatpush1.msra.mxu0 %v3948
        %4146 = vmatprep.subr.mxu0 %v3945
        %4147 = vmatpush1.msra.mxu0 %v3944
        %4148 = vmatprep.subr.mxu0 %v3941
        %4149 = vmatpush1.msra.mxu0 %v3940
        %4150 = vmatprep.subr.mxu0 %v3937
        %4151 = vmatpush1.msra.mxu0 %v3936
        %4152 = vmatprep.subr.mxu0 %v3933
        %4153 = vmatpush1.msra.mxu0 %v3932
        %4154 = vmatprep.subr.mxu0 %v3929
        %4155 = vmatpush1.msra.mxu0 %v3928
        %4156 = vmatprep.subr.mxu0 %v3925
        %4157 = vmatpush1.msra.mxu0 %v3924
        %4158 = vmatprep.subr.mxu0 %v3921
        %4159 = vmatpush1.msra.mxu0 %v3920
        %4160 = vmatprep.subr.mxu0 %v4045
        %4161 = vmatpush2.msra.mxu0 %v4044
        %4162 = vmatprep.subr.mxu0 %v4041
        %4163 = vmatpush2.msra.mxu0 %v4040
        %4164 = vmatprep.subr.mxu0 %v4037
        %4165 = vmatpush2.msra.mxu0 %v4036
        %4166 = vmatprep.subr.mxu0 %v4033
        %4167 = vmatpush2.msra.mxu0 %v4032
        %4168 = vmatprep.subr.mxu0 %v4029
        %4169 = vmatpush2.msra.mxu0 %v4028
        %4170 = vmatprep.subr.mxu0 %v4025
        %4171 = vmatpush2.msra.mxu0 %v4024
        %4172 = vmatprep.subr.mxu0 %v4021
        %4173 = vmatpush2.msra.mxu0 %v4020
        %4174 = vmatprep.subr.mxu0 %v4017
        %4175 = vmatpush2.msra.mxu0 %v4016
        %4176 = vmatprep.subr.mxu0 %v4013
        %4177 = vmatpush2.msra.mxu0 %v4012
        %4178 = vmatprep.subr.mxu0 %v4009
        %4179 = vmatpush2.msra.mxu0 %v4008
        %4180 = vmatprep.subr.mxu0 %v4005
        %4181 = vmatpush2.msra.mxu0 %v4004
        %4182 = vmatprep.subr.mxu0 %v4001
        %4183 = vmatpush2.msra.mxu0 %v4000
        %4184 = vmatprep.subr.mxu0 %v3997
        %4185 = vmatpush2.msra.mxu0 %v3996
        %4186 = vmatprep.subr.mxu0 %v3993
        %4187 = vmatpush2.msra.mxu0 %v3992
        %4188 = vmatprep.subr.mxu0 %v3989
        %4189 = vmatpush2.msra.mxu0 %v3988
        %4190 = vmatprep.subr.mxu0 %v3985
        %4191 = vmatpush2.msra.mxu0 %v3984
        %4192 = vmatprep.mubr.f32.mxu0 %v4054
        %4193 = vmatmul.mubr.f32.gmra.mxu0 %v4050
        %v4194 = vpop.f32.mrf.mxu0
        %v4195 = vadd.f32 0.0, %v4194
        %v4196 = vpop.f32.mrf.mxu0
        %v4197 = vadd.f32 0.0, %v4196
        %4198 = vdwg.mxu0
        %v4199 = vadd.f32 %v3913, %v4124
        %v4200 = vadd.f32 %v3914, %v4126
        %v4201 = vadd.f32 %v3915, %v4195
        %v4202 = vadd.f32 %v3916, %v4197
        %v4207 = vcombine.low %v4199, %v4200
        %v4208 = vcombine.low %v4201, %v4202
        %v4210 = vunpack.c.l.s4 1966171168
        %v4211 = vunpack.c.0.s8 %v4210
        %v4212 = vlaneseq
        %v4213 = vshrl.u32 %v4212, 7
        %v4214 = vsub.s32 %v4211, %v4213
        %v4215 = vrot.slane %v4207, %v4214
        %v4217 = vunpack.c.l.s4 1966171168
        %v4218 = vunpack.c.0.s8 %v4217
        %v4219 = vlaneseq
        %v4220 = vshrl.u32 %v4219, 7
        %v4221 = vsub.s32 %v4218, %v4220
        %v4222 = vrot.slane %v4208, %v4221
        %v4223 = vcombine.low %v4215, %v4222
        %v4225 = vunpack.c.l.s4 1966171168
        %v4226 = vunpack.c.0.s8 %v4225
        %v4227 = vlaneseq
        %v4228 = vshrl.u32 %v4227, 7
        %v4229 = vsub.s32 %v4226, %v4228
        %v4230 = vrot.slane %v4223, %v4229
        %v4232 = vlaneseq
        %vm4233 = vcmp.ge.s32.totalorder %v4232, 0
        %vm4234 = vcmp.lt.s32.totalorder %v4232, 512
        %vm4235 = vmand %vm4233, %vm4234
        %4236 = vst.msk [vmem:[%s544] sm:$0xf] %vm4235, %v4230
        %v4237 = vpack.c.bf16 %v4199, %v4199
        %v4238 = vpack.c.bf16 %v4200, %v4200
        %v4239 = vpack.c.bf16 %v4201, %v4201
        %v4240 = vpack.c.bf16 %v4202, %v4202
        %v4241 = vld [vmem:[#allocation11] sm:$0xff]
        %v4242 = vld [vmem:[#allocation11 + $0x8] sm:$0xff]
        %v4243 = vld [vmem:[#allocation11 + $0x10] sm:$0xff]
        %v4244 = vld [vmem:[#allocation11 + $0x18] sm:$0xff]
        %v4245 = vld [vmem:[#allocation11 + $0x20] sm:$0xff]
        %v4246 = vld [vmem:[#allocation11 + $0x28] sm:$0xff]
        %v4247 = vld [vmem:[#allocation11 + $0x30] sm:$0xff]
        %v4248 = vld [vmem:[#allocation11 + $0x38] sm:$0xff]
        %v4249 = vld [vmem:[#allocation11 + $0x40] sm:$0xff]
        %v4250 = vld [vmem:[#allocation11 + $0x48] sm:$0xff]
        %v4251 = vld [vmem:[#allocation11 + $0x50] sm:$0xff]
        %v4252 = vld [vmem:[#allocation11 + $0x58] sm:$0xff]
        %v4253 = vld [vmem:[#allocation11 + $0x60] sm:$0xff]
        %v4254 = vld [vmem:[#allocation11 + $0x68] sm:$0xff]
        %v4255 = vld [vmem:[#allocation11 + $0x70] sm:$0xff]
        %v4256 = vld [vmem:[#allocation11 + $0x78] sm:$0xff]
        %v4257 = vld [vmem:[#allocation11 + $0x80] sm:$0xff]
        %v4258 = vld [vmem:[#allocation11 + $0x88] sm:$0xff]
        %v4259 = vld [vmem:[#allocation11 + $0x90] sm:$0xff]
        %v4260 = vld [vmem:[#allocation11 + $0x98] sm:$0xff]
        %v4261 = vld [vmem:[#allocation11 + $0xa0] sm:$0xff]
        %v4262 = vld [vmem:[#allocation11 + $0xa8] sm:$0xff]
        %v4263 = vld [vmem:[#allocation11 + $0xb0] sm:$0xff]
        %v4264 = vld [vmem:[#allocation11 + $0xb8] sm:$0xff]
        %v4265 = vld [vmem:[#allocation11 + $0xc0] sm:$0xff]
        %v4266 = vld [vmem:[#allocation11 + $0xc8] sm:$0xff]
        %v4267 = vld [vmem:[#allocation11 + $0xd0] sm:$0xff]
        %v4268 = vld [vmem:[#allocation11 + $0xd8] sm:$0xff]
        %v4269 = vld [vmem:[#allocation11 + $0xe0] sm:$0xff]
        %v4270 = vld [vmem:[#allocation11 + $0xe8] sm:$0xff]
        %v4271 = vld [vmem:[#allocation11 + $0xf0] sm:$0xff]
        %v4272 = vld [vmem:[#allocation11 + $0xf8] sm:$0xff]
        %v4273 = vld [vmem:[#allocation11 + $0x100] sm:$0xff]
        %v4274 = vld [vmem:[#allocation11 + $0x108] sm:$0xff]
        %v4275 = vld [vmem:[#allocation11 + $0x110] sm:$0xff]
        %v4276 = vld [vmem:[#allocation11 + $0x118] sm:$0xff]
        %v4277 = vld [vmem:[#allocation11 + $0x120] sm:$0xff]
        %v4278 = vld [vmem:[#allocation11 + $0x128] sm:$0xff]
        %v4279 = vld [vmem:[#allocation11 + $0x130] sm:$0xff]
        %v4280 = vld [vmem:[#allocation11 + $0x138] sm:$0xff]
        %v4281 = vld [vmem:[#allocation11 + $0x140] sm:$0xff]
        %v4282 = vld [vmem:[#allocation11 + $0x148] sm:$0xff]
        %v4283 = vld [vmem:[#allocation11 + $0x150] sm:$0xff]
        %v4284 = vld [vmem:[#allocation11 + $0x158] sm:$0xff]
        %v4285 = vld [vmem:[#allocation11 + $0x160] sm:$0xff]
        %v4286 = vld [vmem:[#allocation11 + $0x168] sm:$0xff]
        %v4287 = vld [vmem:[#allocation11 + $0x170] sm:$0xff]
        %v4288 = vld [vmem:[#allocation11 + $0x178] sm:$0xff]
        %v4289 = vld [vmem:[#allocation11 + $0x180] sm:$0xff]
        %v4290 = vld [vmem:[#allocation11 + $0x188] sm:$0xff]
        %v4291 = vld [vmem:[#allocation11 + $0x190] sm:$0xff]
        %v4292 = vld [vmem:[#allocation11 + $0x198] sm:$0xff]
        %v4293 = vld [vmem:[#allocation11 + $0x1a0] sm:$0xff]
        %v4294 = vld [vmem:[#allocation11 + $0x1a8] sm:$0xff]
        %v4295 = vld [vmem:[#allocation11 + $0x1b0] sm:$0xff]
        %v4296 = vld [vmem:[#allocation11 + $0x1b8] sm:$0xff]
        %v4297 = vld [vmem:[#allocation11 + $0x1c0] sm:$0xff]
        %v4298 = vld [vmem:[#allocation11 + $0x1c8] sm:$0xff]
        %v4299 = vld [vmem:[#allocation11 + $0x1d0] sm:$0xff]
        %v4300 = vld [vmem:[#allocation11 + $0x1d8] sm:$0xff]
        %v4301 = vld [vmem:[#allocation11 + $0x1e0] sm:$0xff]
        %v4302 = vld [vmem:[#allocation11 + $0x1e8] sm:$0xff]
        %v4303 = vld [vmem:[#allocation11 + $0x1f0] sm:$0xff]
        %v4304 = vld [vmem:[#allocation11 + $0x1f8] sm:$0xff]
        %v4305 = vld [vmem:[#allocation11 + $0x200] sm:$0xff]
        %v4306 = vld [vmem:[#allocation11 + $0x208] sm:$0xff]
        %v4307 = vld [vmem:[#allocation11 + $0x210] sm:$0xff]
        %v4308 = vld [vmem:[#allocation11 + $0x218] sm:$0xff]
        %v4309 = vld [vmem:[#allocation11 + $0x220] sm:$0xff]
        %v4310 = vld [vmem:[#allocation11 + $0x228] sm:$0xff]
        %v4311 = vld [vmem:[#allocation11 + $0x230] sm:$0xff]
        %v4312 = vld [vmem:[#allocation11 + $0x238] sm:$0xff]
        %v4313 = vld [vmem:[#allocation11 + $0x240] sm:$0xff]
        %v4314 = vld [vmem:[#allocation11 + $0x248] sm:$0xff]
        %v4315 = vld [vmem:[#allocation11 + $0x250] sm:$0xff]
        %v4316 = vld [vmem:[#allocation11 + $0x258] sm:$0xff]
        %v4317 = vld [vmem:[#allocation11 + $0x260] sm:$0xff]
        %v4318 = vld [vmem:[#allocation11 + $0x268] sm:$0xff]
        %v4319 = vld [vmem:[#allocation11 + $0x270] sm:$0xff]
        %v4320 = vld [vmem:[#allocation11 + $0x278] sm:$0xff]
        %v4321 = vld [vmem:[#allocation11 + $0x280] sm:$0xff]
        %v4322 = vld [vmem:[#allocation11 + $0x288] sm:$0xff]
        %v4323 = vld [vmem:[#allocation11 + $0x290] sm:$0xff]
        %v4324 = vld [vmem:[#allocation11 + $0x298] sm:$0xff]
        %v4325 = vld [vmem:[#allocation11 + $0x2a0] sm:$0xff]
        %v4326 = vld [vmem:[#allocation11 + $0x2a8] sm:$0xff]
        %v4327 = vld [vmem:[#allocation11 + $0x2b0] sm:$0xff]
        %v4328 = vld [vmem:[#allocation11 + $0x2b8] sm:$0xff]
        %v4329 = vld [vmem:[#allocation11 + $0x2c0] sm:$0xff]
        %v4330 = vld [vmem:[#allocation11 + $0x2c8] sm:$0xff]
        %v4331 = vld [vmem:[#allocation11 + $0x2d0] sm:$0xff]
        %v4332 = vld [vmem:[#allocation11 + $0x2d8] sm:$0xff]
        %v4333 = vld [vmem:[#allocation11 + $0x2e0] sm:$0xff]
        %v4334 = vld [vmem:[#allocation11 + $0x2e8] sm:$0xff]
        %v4335 = vld [vmem:[#allocation11 + $0x2f0] sm:$0xff]
        %v4336 = vld [vmem:[#allocation11 + $0x2f8] sm:$0xff]
        %v4337 = vld [vmem:[#allocation11 + $0x300] sm:$0xff]
        %v4338 = vld [vmem:[#allocation11 + $0x308] sm:$0xff]
        %v4339 = vld [vmem:[#allocation11 + $0x310] sm:$0xff]
        %v4340 = vld [vmem:[#allocation11 + $0x318] sm:$0xff]
        %v4341 = vld [vmem:[#allocation11 + $0x320] sm:$0xff]
        %v4342 = vld [vmem:[#allocation11 + $0x328] sm:$0xff]
        %v4343 = vld [vmem:[#allocation11 + $0x330] sm:$0xff]
        %v4344 = vld [vmem:[#allocation11 + $0x338] sm:$0xff]
        %v4345 = vld [vmem:[#allocation11 + $0x340] sm:$0xff]
        %v4346 = vld [vmem:[#allocation11 + $0x348] sm:$0xff]
        %v4347 = vld [vmem:[#allocation11 + $0x350] sm:$0xff]
        %v4348 = vld [vmem:[#allocation11 + $0x358] sm:$0xff]
        %v4349 = vld [vmem:[#allocation11 + $0x360] sm:$0xff]
        %v4350 = vld [vmem:[#allocation11 + $0x368] sm:$0xff]
        %v4351 = vld [vmem:[#allocation11 + $0x370] sm:$0xff]
        %v4352 = vld [vmem:[#allocation11 + $0x378] sm:$0xff]
        %v4353 = vld [vmem:[#allocation11 + $0x380] sm:$0xff]
        %v4354 = vld [vmem:[#allocation11 + $0x388] sm:$0xff]
        %v4355 = vld [vmem:[#allocation11 + $0x390] sm:$0xff]
        %v4356 = vld [vmem:[#allocation11 + $0x398] sm:$0xff]
        %v4357 = vld [vmem:[#allocation11 + $0x3a0] sm:$0xff]
        %v4358 = vld [vmem:[#allocation11 + $0x3a8] sm:$0xff]
        %v4359 = vld [vmem:[#allocation11 + $0x3b0] sm:$0xff]
        %v4360 = vld [vmem:[#allocation11 + $0x3b8] sm:$0xff]
        %v4361 = vld [vmem:[#allocation11 + $0x3c0] sm:$0xff]
        %v4362 = vld [vmem:[#allocation11 + $0x3c8] sm:$0xff]
        %v4363 = vld [vmem:[#allocation11 + $0x3d0] sm:$0xff]
        %v4364 = vld [vmem:[#allocation11 + $0x3d8] sm:$0xff]
        %v4365 = vld [vmem:[#allocation11 + $0x3e0] sm:$0xff]
        %v4366 = vld [vmem:[#allocation11 + $0x3e8] sm:$0xff]
        %v4367 = vld [vmem:[#allocation11 + $0x3f0] sm:$0xff]
        %v4368 = vld [vmem:[#allocation11 + $0x3f8] sm:$0xff]
        %v4369 = vld [vmem:[#allocation13] sm:$0xf]
        %v4498 = vunpack.c.l.b16 %v4241
        %v4499 = vunpack.c.h.b16 %v4241
        %v4500 = vunpack.c.l.b16 %v4242
        %v4501 = vunpack.c.h.b16 %v4242
        %v4502 = vunpack.c.l.b16 %v4243
        %v4503 = vunpack.c.h.b16 %v4243
        %v4504 = vunpack.c.l.b16 %v4244
        %v4505 = vunpack.c.h.b16 %v4244
        %v4506 = vunpack.c.l.b16 %v4245
        %v4507 = vunpack.c.h.b16 %v4245
        %v4508 = vunpack.c.l.b16 %v4246
        %v4509 = vunpack.c.h.b16 %v4246
        %v4510 = vunpack.c.l.b16 %v4247
        %v4511 = vunpack.c.h.b16 %v4247
        %v4512 = vunpack.c.l.b16 %v4248
        %v4513 = vunpack.c.h.b16 %v4248
        %v4514 = vunpack.c.l.b16 %v4249
        %v4515 = vunpack.c.h.b16 %v4249
        %v4516 = vunpack.c.l.b16 %v4250
        %v4517 = vunpack.c.h.b16 %v4250
        %v4518 = vunpack.c.l.b16 %v4251
        %v4519 = vunpack.c.h.b16 %v4251
        %v4520 = vunpack.c.l.b16 %v4252
        %v4521 = vunpack.c.h.b16 %v4252
        %v4522 = vunpack.c.l.b16 %v4253
        %v4523 = vunpack.c.h.b16 %v4253
        %v4524 = vunpack.c.l.b16 %v4254
        %v4525 = vunpack.c.h.b16 %v4254
        %v4526 = vunpack.c.l.b16 %v4255
        %v4527 = vunpack.c.h.b16 %v4255
        %v4528 = vunpack.c.l.b16 %v4256
        %v4529 = vunpack.c.h.b16 %v4256
        %v4530 = vunpack.c.l.b16 %v4257
        %v4531 = vunpack.c.h.b16 %v4257
        %v4532 = vunpack.c.l.b16 %v4258
        %v4533 = vunpack.c.h.b16 %v4258
        %v4534 = vunpack.c.l.b16 %v4259
        %v4535 = vunpack.c.h.b16 %v4259
        %v4536 = vunpack.c.l.b16 %v4260
        %v4537 = vunpack.c.h.b16 %v4260
        %v4538 = vunpack.c.l.b16 %v4261
        %v4539 = vunpack.c.h.b16 %v4261
        %v4540 = vunpack.c.l.b16 %v4262
        %v4541 = vunpack.c.h.b16 %v4262
        %v4542 = vunpack.c.l.b16 %v4263
        %v4543 = vunpack.c.h.b16 %v4263
        %v4544 = vunpack.c.l.b16 %v4264
        %v4545 = vunpack.c.h.b16 %v4264
        %v4546 = vunpack.c.l.b16 %v4265
        %v4547 = vunpack.c.h.b16 %v4265
        %v4548 = vunpack.c.l.b16 %v4266
        %v4549 = vunpack.c.h.b16 %v4266
        %v4550 = vunpack.c.l.b16 %v4267
        %v4551 = vunpack.c.h.b16 %v4267
        %v4552 = vunpack.c.l.b16 %v4268
        %v4553 = vunpack.c.h.b16 %v4268
        %v4554 = vunpack.c.l.b16 %v4269
        %v4555 = vunpack.c.h.b16 %v4269
        %v4556 = vunpack.c.l.b16 %v4270
        %v4557 = vunpack.c.h.b16 %v4270
        %v4558 = vunpack.c.l.b16 %v4271
        %v4559 = vunpack.c.h.b16 %v4271
        %v4560 = vunpack.c.l.b16 %v4272
        %v4561 = vunpack.c.h.b16 %v4272
        %v4562 = vunpack.c.l.b16 %v4273
        %v4563 = vunpack.c.h.b16 %v4273
        %v4564 = vunpack.c.l.b16 %v4274
        %v4565 = vunpack.c.h.b16 %v4274
        %v4566 = vunpack.c.l.b16 %v4275
        %v4567 = vunpack.c.h.b16 %v4275
        %v4568 = vunpack.c.l.b16 %v4276
        %v4569 = vunpack.c.h.b16 %v4276
        %v4570 = vunpack.c.l.b16 %v4277
        %v4571 = vunpack.c.h.b16 %v4277
        %v4572 = vunpack.c.l.b16 %v4278
        %v4573 = vunpack.c.h.b16 %v4278
        %v4574 = vunpack.c.l.b16 %v4279
        %v4575 = vunpack.c.h.b16 %v4279
        %v4576 = vunpack.c.l.b16 %v4280
        %v4577 = vunpack.c.h.b16 %v4280
        %v4578 = vunpack.c.l.b16 %v4281
        %v4579 = vunpack.c.h.b16 %v4281
        %v4580 = vunpack.c.l.b16 %v4282
        %v4581 = vunpack.c.h.b16 %v4282
        %v4582 = vunpack.c.l.b16 %v4283
        %v4583 = vunpack.c.h.b16 %v4283
        %v4584 = vunpack.c.l.b16 %v4284
        %v4585 = vunpack.c.h.b16 %v4284
        %v4586 = vunpack.c.l.b16 %v4285
        %v4587 = vunpack.c.h.b16 %v4285
        %v4588 = vunpack.c.l.b16 %v4286
        %v4589 = vunpack.c.h.b16 %v4286
        %v4590 = vunpack.c.l.b16 %v4287
        %v4591 = vunpack.c.h.b16 %v4287
        %v4592 = vunpack.c.l.b16 %v4288
        %v4593 = vunpack.c.h.b16 %v4288
        %v4594 = vunpack.c.l.b16 %v4289
        %v4595 = vunpack.c.h.b16 %v4289
        %v4596 = vunpack.c.l.b16 %v4290
        %v4597 = vunpack.c.h.b16 %v4290
        %v4598 = vunpack.c.l.b16 %v4291
        %v4599 = vunpack.c.h.b16 %v4291
        %v4600 = vunpack.c.l.b16 %v4292
        %v4601 = vunpack.c.h.b16 %v4292
        %v4602 = vunpack.c.l.b16 %v4293
        %v4603 = vunpack.c.h.b16 %v4293
        %v4604 = vunpack.c.l.b16 %v4294
        %v4605 = vunpack.c.h.b16 %v4294
        %v4606 = vunpack.c.l.b16 %v4295
        %v4607 = vunpack.c.h.b16 %v4295
        %v4608 = vunpack.c.l.b16 %v4296
        %v4609 = vunpack.c.h.b16 %v4296
        %v4610 = vunpack.c.l.b16 %v4297
        %v4611 = vunpack.c.h.b16 %v4297
        %v4612 = vunpack.c.l.b16 %v4298
        %v4613 = vunpack.c.h.b16 %v4298
        %v4614 = vunpack.c.l.b16 %v4299
        %v4615 = vunpack.c.h.b16 %v4299
        %v4616 = vunpack.c.l.b16 %v4300
        %v4617 = vunpack.c.h.b16 %v4300
        %v4618 = vunpack.c.l.b16 %v4301
        %v4619 = vunpack.c.h.b16 %v4301
        %v4620 = vunpack.c.l.b16 %v4302
        %v4621 = vunpack.c.h.b16 %v4302
        %v4622 = vunpack.c.l.b16 %v4303
        %v4623 = vunpack.c.h.b16 %v4303
        %v4624 = vunpack.c.l.b16 %v4304
        %v4625 = vunpack.c.h.b16 %v4304
        %v4626 = vunpack.c.l.b16 %v4305
        %v4627 = vunpack.c.h.b16 %v4305
        %v4628 = vunpack.c.l.b16 %v4306
        %v4629 = vunpack.c.h.b16 %v4306
        %v4630 = vunpack.c.l.b16 %v4307
        %v4631 = vunpack.c.h.b16 %v4307
        %v4632 = vunpack.c.l.b16 %v4308
        %v4633 = vunpack.c.h.b16 %v4308
        %v4634 = vunpack.c.l.b16 %v4309
        %v4635 = vunpack.c.h.b16 %v4309
        %v4636 = vunpack.c.l.b16 %v4310
        %v4637 = vunpack.c.h.b16 %v4310
        %v4638 = vunpack.c.l.b16 %v4311
        %v4639 = vunpack.c.h.b16 %v4311
        %v4640 = vunpack.c.l.b16 %v4312
        %v4641 = vunpack.c.h.b16 %v4312
        %v4642 = vunpack.c.l.b16 %v4313
        %v4643 = vunpack.c.h.b16 %v4313
        %v4644 = vunpack.c.l.b16 %v4314
        %v4645 = vunpack.c.h.b16 %v4314
        %v4646 = vunpack.c.l.b16 %v4315
        %v4647 = vunpack.c.h.b16 %v4315
        %v4648 = vunpack.c.l.b16 %v4316
        %v4649 = vunpack.c.h.b16 %v4316
        %v4650 = vunpack.c.l.b16 %v4317
        %v4651 = vunpack.c.h.b16 %v4317
        %v4652 = vunpack.c.l.b16 %v4318
        %v4653 = vunpack.c.h.b16 %v4318
        %v4654 = vunpack.c.l.b16 %v4319
        %v4655 = vunpack.c.h.b16 %v4319
        %v4656 = vunpack.c.l.b16 %v4320
        %v4657 = vunpack.c.h.b16 %v4320
        %v4658 = vunpack.c.l.b16 %v4321
        %v4659 = vunpack.c.h.b16 %v4321
        %v4660 = vunpack.c.l.b16 %v4322
        %v4661 = vunpack.c.h.b16 %v4322
        %v4662 = vunpack.c.l.b16 %v4323
        %v4663 = vunpack.c.h.b16 %v4323
        %v4664 = vunpack.c.l.b16 %v4324
        %v4665 = vunpack.c.h.b16 %v4324
        %v4666 = vunpack.c.l.b16 %v4325
        %v4667 = vunpack.c.h.b16 %v4325
        %v4668 = vunpack.c.l.b16 %v4326
        %v4669 = vunpack.c.h.b16 %v4326
        %v4670 = vunpack.c.l.b16 %v4327
        %v4671 = vunpack.c.h.b16 %v4327
        %v4672 = vunpack.c.l.b16 %v4328
        %v4673 = vunpack.c.h.b16 %v4328
        %v4674 = vunpack.c.l.b16 %v4329
        %v4675 = vunpack.c.h.b16 %v4329
        %v4676 = vunpack.c.l.b16 %v4330
        %v4677 = vunpack.c.h.b16 %v4330
        %v4678 = vunpack.c.l.b16 %v4331
        %v4679 = vunpack.c.h.b16 %v4331
        %v4680 = vunpack.c.l.b16 %v4332
        %v4681 = vunpack.c.h.b16 %v4332
        %v4682 = vunpack.c.l.b16 %v4333
        %v4683 = vunpack.c.h.b16 %v4333
        %v4684 = vunpack.c.l.b16 %v4334
        %v4685 = vunpack.c.h.b16 %v4334
        %v4686 = vunpack.c.l.b16 %v4335
        %v4687 = vunpack.c.h.b16 %v4335
        %v4688 = vunpack.c.l.b16 %v4336
        %v4689 = vunpack.c.h.b16 %v4336
        %v4690 = vunpack.c.l.b16 %v4337
        %v4691 = vunpack.c.h.b16 %v4337
        %v4692 = vunpack.c.l.b16 %v4338
        %v4693 = vunpack.c.h.b16 %v4338
        %v4694 = vunpack.c.l.b16 %v4339
        %v4695 = vunpack.c.h.b16 %v4339
        %v4696 = vunpack.c.l.b16 %v4340
        %v4697 = vunpack.c.h.b16 %v4340
        %v4698 = vunpack.c.l.b16 %v4341
        %v4699 = vunpack.c.h.b16 %v4341
        %v4700 = vunpack.c.l.b16 %v4342
        %v4701 = vunpack.c.h.b16 %v4342
        %v4702 = vunpack.c.l.b16 %v4343
        %v4703 = vunpack.c.h.b16 %v4343
        %v4704 = vunpack.c.l.b16 %v4344
        %v4705 = vunpack.c.h.b16 %v4344
        %v4706 = vunpack.c.l.b16 %v4345
        %v4707 = vunpack.c.h.b16 %v4345
        %v4708 = vunpack.c.l.b16 %v4346
        %v4709 = vunpack.c.h.b16 %v4346
        %v4710 = vunpack.c.l.b16 %v4347
        %v4711 = vunpack.c.h.b16 %v4347
        %v4712 = vunpack.c.l.b16 %v4348
        %v4713 = vunpack.c.h.b16 %v4348
        %v4714 = vunpack.c.l.b16 %v4349
        %v4715 = vunpack.c.h.b16 %v4349
        %v4716 = vunpack.c.l.b16 %v4350
        %v4717 = vunpack.c.h.b16 %v4350
        %v4718 = vunpack.c.l.b16 %v4351
        %v4719 = vunpack.c.h.b16 %v4351
        %v4720 = vunpack.c.l.b16 %v4352
        %v4721 = vunpack.c.h.b16 %v4352
        %v4722 = vunpack.c.l.b16 %v4353
        %v4723 = vunpack.c.h.b16 %v4353
        %v4724 = vunpack.c.l.b16 %v4354
        %v4725 = vunpack.c.h.b16 %v4354
        %v4726 = vunpack.c.l.b16 %v4355
        %v4727 = vunpack.c.h.b16 %v4355
        %v4728 = vunpack.c.l.b16 %v4356
        %v4729 = vunpack.c.h.b16 %v4356
        %v4730 = vunpack.c.l.b16 %v4357
        %v4731 = vunpack.c.h.b16 %v4357
        %v4732 = vunpack.c.l.b16 %v4358
        %v4733 = vunpack.c.h.b16 %v4358
        %v4734 = vunpack.c.l.b16 %v4359
        %v4735 = vunpack.c.h.b16 %v4359
        %v4736 = vunpack.c.l.b16 %v4360
        %v4737 = vunpack.c.h.b16 %v4360
        %v4738 = vunpack.c.l.b16 %v4361
        %v4739 = vunpack.c.h.b16 %v4361
        %v4740 = vunpack.c.l.b16 %v4362
        %v4741 = vunpack.c.h.b16 %v4362
        %v4742 = vunpack.c.l.b16 %v4363
        %v4743 = vunpack.c.h.b16 %v4363
        %v4744 = vunpack.c.l.b16 %v4364
        %v4745 = vunpack.c.h.b16 %v4364
        %v4746 = vunpack.c.l.b16 %v4365
        %v4747 = vunpack.c.h.b16 %v4365
        %v4748 = vunpack.c.l.b16 %v4366
        %v4749 = vunpack.c.h.b16 %v4366
        %v4750 = vunpack.c.l.b16 %v4367
        %v4751 = vunpack.c.h.b16 %v4367
        %v4752 = vunpack.c.l.b16 %v4368
        %v4753 = vunpack.c.h.b16 %v4368
        %v4754 = vpack.c.b16 %v4502, %v4498
        %v4755 = vpack.c.b16 %v4503, %v4499
        %v4756 = vpack.c.b16 %v4504, %v4500
        %v4757 = vpack.c.b16 %v4505, %v4501
        %v4758 = vpack.c.b16 %v4510, %v4506
        %v4759 = vpack.c.b16 %v4511, %v4507
        %v4760 = vpack.c.b16 %v4512, %v4508
        %v4761 = vpack.c.b16 %v4513, %v4509
        %v4762 = vpack.c.b16 %v4518, %v4514
        %v4763 = vpack.c.b16 %v4519, %v4515
        %v4764 = vpack.c.b16 %v4520, %v4516
        %v4765 = vpack.c.b16 %v4521, %v4517
        %v4766 = vpack.c.b16 %v4526, %v4522
        %v4767 = vpack.c.b16 %v4527, %v4523
        %v4768 = vpack.c.b16 %v4528, %v4524
        %v4769 = vpack.c.b16 %v4529, %v4525
        %v4770 = vpack.c.b16 %v4534, %v4530
        %v4771 = vpack.c.b16 %v4535, %v4531
        %v4772 = vpack.c.b16 %v4536, %v4532
        %v4773 = vpack.c.b16 %v4537, %v4533
        %v4774 = vpack.c.b16 %v4542, %v4538
        %v4775 = vpack.c.b16 %v4543, %v4539
        %v4776 = vpack.c.b16 %v4544, %v4540
        %v4777 = vpack.c.b16 %v4545, %v4541
        %v4778 = vpack.c.b16 %v4550, %v4546
        %v4779 = vpack.c.b16 %v4551, %v4547
        %v4780 = vpack.c.b16 %v4552, %v4548
        %v4781 = vpack.c.b16 %v4553, %v4549
        %v4782 = vpack.c.b16 %v4558, %v4554
        %v4783 = vpack.c.b16 %v4559, %v4555
        %v4784 = vpack.c.b16 %v4560, %v4556
        %v4785 = vpack.c.b16 %v4561, %v4557
        %v4786 = vpack.c.b16 %v4566, %v4562
        %v4787 = vpack.c.b16 %v4567, %v4563
        %v4788 = vpack.c.b16 %v4568, %v4564
        %v4789 = vpack.c.b16 %v4569, %v4565
        %v4790 = vpack.c.b16 %v4574, %v4570
        %v4791 = vpack.c.b16 %v4575, %v4571
        %v4792 = vpack.c.b16 %v4576, %v4572
        %v4793 = vpack.c.b16 %v4577, %v4573
        %v4794 = vpack.c.b16 %v4582, %v4578
        %v4795 = vpack.c.b16 %v4583, %v4579
        %v4796 = vpack.c.b16 %v4584, %v4580
        %v4797 = vpack.c.b16 %v4585, %v4581
        %v4798 = vpack.c.b16 %v4590, %v4586
        %v4799 = vpack.c.b16 %v4591, %v4587
        %v4800 = vpack.c.b16 %v4592, %v4588
        %v4801 = vpack.c.b16 %v4593, %v4589
        %v4802 = vpack.c.b16 %v4598, %v4594
        %v4803 = vpack.c.b16 %v4599, %v4595
        %v4804 = vpack.c.b16 %v4600, %v4596
        %v4805 = vpack.c.b16 %v4601, %v4597
        %v4806 = vpack.c.b16 %v4606, %v4602
        %v4807 = vpack.c.b16 %v4607, %v4603
        %v4808 = vpack.c.b16 %v4608, %v4604
        %v4809 = vpack.c.b16 %v4609, %v4605
        %v4810 = vpack.c.b16 %v4614, %v4610
        %v4811 = vpack.c.b16 %v4615, %v4611
        %v4812 = vpack.c.b16 %v4616, %v4612
        %v4813 = vpack.c.b16 %v4617, %v4613
        %v4814 = vpack.c.b16 %v4622, %v4618
        %v4815 = vpack.c.b16 %v4623, %v4619
        %v4816 = vpack.c.b16 %v4624, %v4620
        %v4817 = vpack.c.b16 %v4625, %v4621
        %v4818 = vpack.c.b16 %v4630, %v4626
        %v4819 = vpack.c.b16 %v4631, %v4627
        %v4820 = vpack.c.b16 %v4632, %v4628
        %v4821 = vpack.c.b16 %v4633, %v4629
        %v4822 = vpack.c.b16 %v4638, %v4634
        %v4823 = vpack.c.b16 %v4639, %v4635
        %v4824 = vpack.c.b16 %v4640, %v4636
        %v4825 = vpack.c.b16 %v4641, %v4637
        %v4826 = vpack.c.b16 %v4646, %v4642
        %v4827 = vpack.c.b16 %v4647, %v4643
        %v4828 = vpack.c.b16 %v4648, %v4644
        %v4829 = vpack.c.b16 %v4649, %v4645
        %v4830 = vpack.c.b16 %v4654, %v4650
        %v4831 = vpack.c.b16 %v4655, %v4651
        %v4832 = vpack.c.b16 %v4656, %v4652
        %v4833 = vpack.c.b16 %v4657, %v4653
        %v4834 = vpack.c.b16 %v4662, %v4658
        %v4835 = vpack.c.b16 %v4663, %v4659
        %v4836 = vpack.c.b16 %v4664, %v4660
        %v4837 = vpack.c.b16 %v4665, %v4661
        %v4838 = vpack.c.b16 %v4670, %v4666
        %v4839 = vpack.c.b16 %v4671, %v4667
        %v4840 = vpack.c.b16 %v4672, %v4668
        %v4841 = vpack.c.b16 %v4673, %v4669
        %v4842 = vpack.c.b16 %v4678, %v4674
        %v4843 = vpack.c.b16 %v4679, %v4675
        %v4844 = vpack.c.b16 %v4680, %v4676
        %v4845 = vpack.c.b16 %v4681, %v4677
        %v4846 = vpack.c.b16 %v4686, %v4682
        %v4847 = vpack.c.b16 %v4687, %v4683
        %v4848 = vpack.c.b16 %v4688, %v4684
        %v4849 = vpack.c.b16 %v4689, %v4685
        %v4850 = vpack.c.b16 %v4694, %v4690
        %v4851 = vpack.c.b16 %v4695, %v4691
        %v4852 = vpack.c.b16 %v4696, %v4692
        %v4853 = vpack.c.b16 %v4697, %v4693
        %v4854 = vpack.c.b16 %v4702, %v4698
        %v4855 = vpack.c.b16 %v4703, %v4699
        %v4856 = vpack.c.b16 %v4704, %v4700
        %v4857 = vpack.c.b16 %v4705, %v4701
        %v4858 = vpack.c.b16 %v4710, %v4706
        %v4859 = vpack.c.b16 %v4711, %v4707
        %v4860 = vpack.c.b16 %v4712, %v4708
        %v4861 = vpack.c.b16 %v4713, %v4709
        %v4862 = vpack.c.b16 %v4718, %v4714
        %v4863 = vpack.c.b16 %v4719, %v4715
        %v4864 = vpack.c.b16 %v4720, %v4716
        %v4865 = vpack.c.b16 %v4721, %v4717
        %v4866 = vpack.c.b16 %v4726, %v4722
        %v4867 = vpack.c.b16 %v4727, %v4723
        %v4868 = vpack.c.b16 %v4728, %v4724
        %v4869 = vpack.c.b16 %v4729, %v4725
        %v4870 = vpack.c.b16 %v4734, %v4730
        %v4871 = vpack.c.b16 %v4735, %v4731
        %v4872 = vpack.c.b16 %v4736, %v4732
        %v4873 = vpack.c.b16 %v4737, %v4733
        %v4874 = vpack.c.b16 %v4742, %v4738
        %v4875 = vpack.c.b16 %v4743, %v4739
        %v4876 = vpack.c.b16 %v4744, %v4740
        %v4877 = vpack.c.b16 %v4745, %v4741
        %v4878 = vpack.c.b16 %v4750, %v4746
        %v4879 = vpack.c.b16 %v4751, %v4747
        %v4880 = vpack.c.b16 %v4752, %v4748
        %v4881 = vpack.c.b16 %v4753, %v4749
        %v5011 = vlaneseq
        %v5012 = vshrl.u32 %v5011, 7
        %v5013 = vsub.s32 0, %v5012
        %v5014 = vrot.slane %v4369, %v5013
        %v5015 = vlaneseq
        %v5016 = vshrl.u32 %v5015, 7
        %v5017 = vsub.s32 1, %v5016
        %v5018 = vrot.slane %v4369, %v5017
        %v5019 = vlaneseq
        %v5020 = vshrl.u32 %v5019, 7
        %v5021 = vsub.s32 2, %v5020
        %v5022 = vrot.slane %v4369, %v5021
        %v5023 = vlaneseq
        %v5024 = vshrl.u32 %v5023, 7
        %v5025 = vsub.s32 3, %v5024
        %v5026 = vrot.slane %v4369, %v5025
        %5031 = vmatprep.subr.bf16.mxu0 %v4783
        %5032 = vmatpush1.bf16.msra.mxu0 %v4782
        %5033 = vmatprep.subr.bf16.mxu0 %v4779
        %5034 = vmatpush1.bf16.msra.mxu0 %v4778
        %5035 = vmatprep.subr.bf16.mxu0 %v4775
        %5036 = vmatpush1.bf16.msra.mxu0 %v4774
        %5037 = vmatprep.subr.bf16.mxu0 %v4771
        %5038 = vmatpush1.bf16.msra.mxu0 %v4770
        %5039 = vmatprep.subr.bf16.mxu0 %v4767
        %5040 = vmatpush1.bf16.msra.mxu0 %v4766
        %5041 = vmatprep.subr.bf16.mxu0 %v4763
        %5042 = vmatpush1.bf16.msra.mxu0 %v4762
        %5043 = vmatprep.subr.bf16.mxu0 %v4759
        %5044 = vmatpush1.bf16.msra.mxu0 %v4758
        %5045 = vmatprep.subr.bf16.mxu0 %v4755
        %5046 = vmatpush1.bf16.msra.mxu0 %v4754
        %5047 = vmatprep.subr.bf16.mxu0 %v4815
        %5048 = vmatpush2.bf16.msra.mxu0 %v4814
        %5049 = vmatprep.subr.bf16.mxu0 %v4811
        %5050 = vmatpush2.bf16.msra.mxu0 %v4810
        %5051 = vmatprep.subr.bf16.mxu0 %v4807
        %5052 = vmatpush2.bf16.msra.mxu0 %v4806
        %5053 = vmatprep.subr.bf16.mxu0 %v4803
        %5054 = vmatpush2.bf16.msra.mxu0 %v4802
        %5055 = vmatprep.subr.bf16.mxu0 %v4799
        %5056 = vmatpush2.bf16.msra.mxu0 %v4798
        %5057 = vmatprep.subr.bf16.mxu0 %v4795
        %5058 = vmatpush2.bf16.msra.mxu0 %v4794
        %5059 = vmatprep.subr.bf16.mxu0 %v4791
        %5060 = vmatpush2.bf16.msra.mxu0 %v4790
        %5061 = vmatprep.subr.bf16.mxu0 %v4787
        %5062 = vmatpush2.bf16.msra.mxu0 %v4786
        %5063 = vmatprep.mubr.bf16.mxu0 %v4238
        %5064 = vmatmul.mubr.bf16.gmra.mxu0 %v4237
        %v5065 = vpop.f32.mrf.mxu0
        %v5066 = vadd.f32 %v5014, %v5065
        %v5067 = vpop.f32.mrf.mxu0
        %v5068 = vadd.f32 %v5018, %v5067
        %v5069 = vpop.f32.mrf.mxu0
        %v5070 = vpop.f32.mrf.mxu0
        %5071 = vdwg.mxu0
        %5072 = vmatprep.subr.bf16.mxu0 %v4847
        %5073 = vmatpush1.bf16.msra.mxu0 %v4846
        %5074 = vmatprep.subr.bf16.mxu0 %v4843
        %5075 = vmatpush1.bf16.msra.mxu0 %v4842
        %5076 = vmatprep.subr.bf16.mxu0 %v4839
        %5077 = vmatpush1.bf16.msra.mxu0 %v4838
        %5078 = vmatprep.subr.bf16.mxu0 %v4835
        %5079 = vmatpush1.bf16.msra.mxu0 %v4834
        %5080 = vmatprep.subr.bf16.mxu0 %v4831
        %5081 = vmatpush1.bf16.msra.mxu0 %v4830
        %5082 = vmatprep.subr.bf16.mxu0 %v4827
        %5083 = vmatpush1.bf16.msra.mxu0 %v4826
        %5084 = vmatprep.subr.bf16.mxu0 %v4823
        %5085 = vmatpush1.bf16.msra.mxu0 %v4822
        %5086 = vmatprep.subr.bf16.mxu0 %v4819
        %5087 = vmatpush1.bf16.msra.mxu0 %v4818
        %5088 = vmatprep.subr.bf16.mxu0 %v4879
        %5089 = vmatpush2.bf16.msra.mxu0 %v4878
        %5090 = vmatprep.subr.bf16.mxu0 %v4875
        %5091 = vmatpush2.bf16.msra.mxu0 %v4874
        %5092 = vmatprep.subr.bf16.mxu0 %v4871
        %5093 = vmatpush2.bf16.msra.mxu0 %v4870
        %5094 = vmatprep.subr.bf16.mxu0 %v4867
        %5095 = vmatpush2.bf16.msra.mxu0 %v4866
        %5096 = vmatprep.subr.bf16.mxu0 %v4863
        %5097 = vmatpush2.bf16.msra.mxu0 %v4862
        %5098 = vmatprep.subr.bf16.mxu0 %v4859
        %5099 = vmatpush2.bf16.msra.mxu0 %v4858
        %5100 = vmatprep.subr.bf16.mxu0 %v4855
        %5101 = vmatpush2.bf16.msra.mxu0 %v4854
        %5102 = vmatprep.subr.bf16.mxu0 %v4851
        %5103 = vmatpush2.bf16.msra.mxu0 %v4850
        %5104 = vmatprep.mubr.bf16.mxu0 %v4240
        %5105 = vmatmul.mubr.bf16.gmra.mxu0 %v4239
        %v5106 = vpop.f32.mrf.mxu0
        %v5107 = vadd.f32 %v5066, %v5106
        %v5108 = vpop.f32.mrf.mxu0
        %v5109 = vadd.f32 %v5068, %v5108
        %v5110 = vpop.f32.mrf.mxu0
        %v5111 = vpop.f32.mrf.mxu0
        %5112 = vdwg.mxu0
        %5113 = vmatprep.subr.bf16.mxu0 %v4785
        %5114 = vmatpush1.bf16.msra.mxu0 %v4784
        %5115 = vmatprep.subr.bf16.mxu0 %v4781
        %5116 = vmatpush1.bf16.msra.mxu0 %v4780
        %5117 = vmatprep.subr.bf16.mxu0 %v4777
        %5118 = vmatpush1.bf16.msra.mxu0 %v4776
        %5119 = vmatprep.subr.bf16.mxu0 %v4773
        %5120 = vmatpush1.bf16.msra.mxu0 %v4772
        %5121 = vmatprep.subr.bf16.mxu0 %v4769
        %5122 = vmatpush1.bf16.msra.mxu0 %v4768
        %5123 = vmatprep.subr.bf16.mxu0 %v4765
        %5124 = vmatpush1.bf16.msra.mxu0 %v4764
        %5125 = vmatprep.subr.bf16.mxu0 %v4761
        %5126 = vmatpush1.bf16.msra.mxu0 %v4760
        %5127 = vmatprep.subr.bf16.mxu0 %v4757
        %5128 = vmatpush1.bf16.msra.mxu0 %v4756
        %5129 = vmatprep.subr.bf16.mxu0 %v4817
        %5130 = vmatpush2.bf16.msra.mxu0 %v4816
        %5131 = vmatprep.subr.bf16.mxu0 %v4813
        %5132 = vmatpush2.bf16.msra.mxu0 %v4812
        %5133 = vmatprep.subr.bf16.mxu0 %v4809
        %5134 = vmatpush2.bf16.msra.mxu0 %v4808
        %5135 = vmatprep.subr.bf16.mxu0 %v4805
        %5136 = vmatpush2.bf16.msra.mxu0 %v4804
        %5137 = vmatprep.subr.bf16.mxu0 %v4801
        %5138 = vmatpush2.bf16.msra.mxu0 %v4800
        %5139 = vmatprep.subr.bf16.mxu0 %v4797
        %5140 = vmatpush2.bf16.msra.mxu0 %v4796
        %5141 = vmatprep.subr.bf16.mxu0 %v4793
        %5142 = vmatpush2.bf16.msra.mxu0 %v4792
        %5143 = vmatprep.subr.bf16.mxu0 %v4789
        %5144 = vmatpush2.bf16.msra.mxu0 %v4788
        %5145 = vmatprep.mubr.bf16.mxu0 %v4238
        %5146 = vmatmul.mubr.bf16.gmra.mxu0 %v4237
        %v5147 = vpop.f32.mrf.mxu0
        %v5148 = vadd.f32 %v5022, %v5147
        %v5149 = vpop.f32.mrf.mxu0
        %v5150 = vadd.f32 %v5026, %v5149
        %v5151 = vpop.f32.mrf.mxu0
        %v5152 = vpop.f32.mrf.mxu0
        %5153 = vdwg.mxu0
        %5154 = vmatprep.subr.bf16.mxu0 %v4849
        %5155 = vmatpush1.bf16.msra.mxu0 %v4848
        %5156 = vmatprep.subr.bf16.mxu0 %v4845
        %5157 = vmatpush1.bf16.msra.mxu0 %v4844
        %5158 = vmatprep.subr.bf16.mxu0 %v4841
        %5159 = vmatpush1.bf16.msra.mxu0 %v4840
        %5160 = vmatprep.subr.bf16.mxu0 %v4837
        %5161 = vmatpush1.bf16.msra.mxu0 %v4836
        %5162 = vmatprep.subr.bf16.mxu0 %v4833
        %5163 = vmatpush1.bf16.msra.mxu0 %v4832
        %5164 = vmatprep.subr.bf16.mxu0 %v4829
        %5165 = vmatpush1.bf16.msra.mxu0 %v4828
        %5166 = vmatprep.subr.bf16.mxu0 %v4825
        %5167 = vmatpush1.bf16.msra.mxu0 %v4824
        %5168 = vmatprep.subr.bf16.mxu0 %v4821
        %5169 = vmatpush1.bf16.msra.mxu0 %v4820
        %5170 = vmatprep.subr.bf16.mxu0 %v4881
        %5171 = vmatpush2.bf16.msra.mxu0 %v4880
        %5172 = vmatprep.subr.bf16.mxu0 %v4877
        %5173 = vmatpush2.bf16.msra.mxu0 %v4876
        %5174 = vmatprep.subr.bf16.mxu0 %v4873
        %5175 = vmatpush2.bf16.msra.mxu0 %v4872
        %5176 = vmatprep.subr.bf16.mxu0 %v4869
        %5177 = vmatpush2.bf16.msra.mxu0 %v4868
        %5178 = vmatprep.subr.bf16.mxu0 %v4865
        %5179 = vmatpush2.bf16.msra.mxu0 %v4864
        %5180 = vmatprep.subr.bf16.mxu0 %v4861
        %5181 = vmatpush2.bf16.msra.mxu0 %v4860
        %5182 = vmatprep.subr.bf16.mxu0 %v4857
        %5183 = vmatpush2.bf16.msra.mxu0 %v4856
        %5184 = vmatprep.subr.bf16.mxu0 %v4853
        %5185 = vmatpush2.bf16.msra.mxu0 %v4852
        %5186 = vmatprep.mubr.bf16.mxu0 %v4240
        %5187 = vmatmul.mubr.bf16.gmra.mxu0 %v4239
        %v5188 = vpop.f32.mrf.mxu0
        %v5189 = vadd.f32 %v5148, %v5188
        %v5190 = vpop.f32.mrf.mxu0
        %v5191 = vadd.f32 %v5150, %v5190
        %v5192 = vpop.f32.mrf.mxu0
        %v5193 = vpop.f32.mrf.mxu0
        %5194 = vdwg.mxu0
        %v5195 = vmax.f32 %v5107, 0.0
        %v5196 = vmax.f32 %v5109, 0.0
        %v5197 = vmax.f32 %v5189, 0.0
        %v5198 = vmax.f32 %v5191, 0.0
        %v5199 = vpack.c.bf16 %v5195, %v5195
        %v5200 = vpack.c.bf16 %v5196, %v5196
        %v5201 = vpack.c.bf16 %v5197, %v5197
        %v5202 = vpack.c.bf16 %v5198, %v5198
        %v5203 = vld [vmem:[#allocation14] sm:$0xf]
        %v5204 = vld [vmem:[#allocation14 + $0x4] sm:$0xf]
        %v5205 = vld [vmem:[#allocation14 + $0x8] sm:$0xf]
        %v5206 = vld [vmem:[#allocation14 + $0xc] sm:$0xf]
        %v5207 = vld [vmem:[#allocation14 + $0x10] sm:$0xf]
        %v5208 = vld [vmem:[#allocation14 + $0x14] sm:$0xf]
        %v5209 = vld [vmem:[#allocation14 + $0x18] sm:$0xf]
        %v5210 = vld [vmem:[#allocation14 + $0x1c] sm:$0xf]
        %v5211 = vld [vmem:[#allocation14 + $0x20] sm:$0xf]
        %v5212 = vld [vmem:[#allocation14 + $0x24] sm:$0xf]
        %v5213 = vld [vmem:[#allocation14 + $0x28] sm:$0xf]
        %v5214 = vld [vmem:[#allocation14 + $0x2c] sm:$0xf]
        %v5215 = vld [vmem:[#allocation14 + $0x30] sm:$0xf]
        %v5216 = vld [vmem:[#allocation14 + $0x34] sm:$0xf]
        %v5217 = vld [vmem:[#allocation14 + $0x38] sm:$0xf]
        %v5218 = vld [vmem:[#allocation14 + $0x3c] sm:$0xf]
        %v5219 = vld [vmem:[#allocation14 + $0x40] sm:$0xf]
        %v5220 = vld [vmem:[#allocation14 + $0x44] sm:$0xf]
        %v5221 = vld [vmem:[#allocation14 + $0x48] sm:$0xf]
        %v5222 = vld [vmem:[#allocation14 + $0x4c] sm:$0xf]
        %v5223 = vld [vmem:[#allocation14 + $0x50] sm:$0xf]
        %v5224 = vld [vmem:[#allocation14 + $0x54] sm:$0xf]
        %v5225 = vld [vmem:[#allocation14 + $0x58] sm:$0xf]
        %v5226 = vld [vmem:[#allocation14 + $0x5c] sm:$0xf]
        %v5227 = vld [vmem:[#allocation14 + $0x60] sm:$0xf]
        %v5228 = vld [vmem:[#allocation14 + $0x64] sm:$0xf]
        %v5229 = vld [vmem:[#allocation14 + $0x68] sm:$0xf]
        %v5230 = vld [vmem:[#allocation14 + $0x6c] sm:$0xf]
        %v5231 = vld [vmem:[#allocation14 + $0x70] sm:$0xf]
        %v5232 = vld [vmem:[#allocation14 + $0x74] sm:$0xf]
        %v5233 = vld [vmem:[#allocation14 + $0x78] sm:$0xf]
        %v5234 = vld [vmem:[#allocation14 + $0x7c] sm:$0xf]
        %v5235 = vld [vmem:[#allocation14 + $0x80] sm:$0xf]
        %v5236 = vld [vmem:[#allocation14 + $0x84] sm:$0xf]
        %v5237 = vld [vmem:[#allocation14 + $0x88] sm:$0xf]
        %v5238 = vld [vmem:[#allocation14 + $0x8c] sm:$0xf]
        %v5239 = vld [vmem:[#allocation14 + $0x90] sm:$0xf]
        %v5240 = vld [vmem:[#allocation14 + $0x94] sm:$0xf]
        %v5241 = vld [vmem:[#allocation14 + $0x98] sm:$0xf]
        %v5242 = vld [vmem:[#allocation14 + $0x9c] sm:$0xf]
        %v5243 = vld [vmem:[#allocation14 + $0xa0] sm:$0xf]
        %v5244 = vld [vmem:[#allocation14 + $0xa4] sm:$0xf]
        %v5245 = vld [vmem:[#allocation14 + $0xa8] sm:$0xf]
        %v5246 = vld [vmem:[#allocation14 + $0xac] sm:$0xf]
        %v5247 = vld [vmem:[#allocation14 + $0xb0] sm:$0xf]
        %v5248 = vld [vmem:[#allocation14 + $0xb4] sm:$0xf]
        %v5249 = vld [vmem:[#allocation14 + $0xb8] sm:$0xf]
        %v5250 = vld [vmem:[#allocation14 + $0xbc] sm:$0xf]
        %v5251 = vld [vmem:[#allocation14 + $0xc0] sm:$0xf]
        %v5252 = vld [vmem:[#allocation14 + $0xc4] sm:$0xf]
        %v5253 = vld [vmem:[#allocation14 + $0xc8] sm:$0xf]
        %v5254 = vld [vmem:[#allocation14 + $0xcc] sm:$0xf]
        %v5255 = vld [vmem:[#allocation14 + $0xd0] sm:$0xf]
        %v5256 = vld [vmem:[#allocation14 + $0xd4] sm:$0xf]
        %v5257 = vld [vmem:[#allocation14 + $0xd8] sm:$0xf]
        %v5258 = vld [vmem:[#allocation14 + $0xdc] sm:$0xf]
        %v5259 = vld [vmem:[#allocation14 + $0xe0] sm:$0xf]
        %v5260 = vld [vmem:[#allocation14 + $0xe4] sm:$0xf]
        %v5261 = vld [vmem:[#allocation14 + $0xe8] sm:$0xf]
        %v5262 = vld [vmem:[#allocation14 + $0xec] sm:$0xf]
        %v5263 = vld [vmem:[#allocation14 + $0xf0] sm:$0xf]
        %v5264 = vld [vmem:[#allocation14 + $0xf4] sm:$0xf]
        %v5265 = vld [vmem:[#allocation14 + $0xf8] sm:$0xf]
        %v5266 = vld [vmem:[#allocation14 + $0xfc] sm:$0xf]
        %v5267 = vld [vmem:[#allocation16] sm:$0x1]
        %v5332 = vunpack.c.l.b16 %v5203
        %v5333 = vunpack.c.l.b16 %v5204
        %v5334 = vunpack.c.l.b16 %v5205
        %v5335 = vunpack.c.l.b16 %v5206
        %v5336 = vunpack.c.l.b16 %v5207
        %v5337 = vunpack.c.l.b16 %v5208
        %v5338 = vunpack.c.l.b16 %v5209
        %v5339 = vunpack.c.l.b16 %v5210
        %v5340 = vunpack.c.l.b16 %v5211
        %v5341 = vunpack.c.l.b16 %v5212
        %v5342 = vunpack.c.l.b16 %v5213
        %v5343 = vunpack.c.l.b16 %v5214
        %v5344 = vunpack.c.l.b16 %v5215
        %v5345 = vunpack.c.l.b16 %v5216
        %v5346 = vunpack.c.l.b16 %v5217
        %v5347 = vunpack.c.l.b16 %v5218
        %v5348 = vunpack.c.l.b16 %v5219
        %v5349 = vunpack.c.l.b16 %v5220
        %v5350 = vunpack.c.l.b16 %v5221
        %v5351 = vunpack.c.l.b16 %v5222
        %v5352 = vunpack.c.l.b16 %v5223
        %v5353 = vunpack.c.l.b16 %v5224
        %v5354 = vunpack.c.l.b16 %v5225
        %v5355 = vunpack.c.l.b16 %v5226
        %v5356 = vunpack.c.l.b16 %v5227
        %v5357 = vunpack.c.l.b16 %v5228
        %v5358 = vunpack.c.l.b16 %v5229
        %v5359 = vunpack.c.l.b16 %v5230
        %v5360 = vunpack.c.l.b16 %v5231
        %v5361 = vunpack.c.l.b16 %v5232
        %v5362 = vunpack.c.l.b16 %v5233
        %v5363 = vunpack.c.l.b16 %v5234
        %v5364 = vunpack.c.l.b16 %v5235
        %v5365 = vunpack.c.l.b16 %v5236
        %v5366 = vunpack.c.l.b16 %v5237
        %v5367 = vunpack.c.l.b16 %v5238
        %v5368 = vunpack.c.l.b16 %v5239
        %v5369 = vunpack.c.l.b16 %v5240
        %v5370 = vunpack.c.l.b16 %v5241
        %v5371 = vunpack.c.l.b16 %v5242
        %v5372 = vunpack.c.l.b16 %v5243
        %v5373 = vunpack.c.l.b16 %v5244
        %v5374 = vunpack.c.l.b16 %v5245
        %v5375 = vunpack.c.l.b16 %v5246
        %v5376 = vunpack.c.l.b16 %v5247
        %v5377 = vunpack.c.l.b16 %v5248
        %v5378 = vunpack.c.l.b16 %v5249
        %v5379 = vunpack.c.l.b16 %v5250
        %v5380 = vunpack.c.l.b16 %v5251
        %v5381 = vunpack.c.l.b16 %v5252
        %v5382 = vunpack.c.l.b16 %v5253
        %v5383 = vunpack.c.l.b16 %v5254
        %v5384 = vunpack.c.l.b16 %v5255
        %v5385 = vunpack.c.l.b16 %v5256
        %v5386 = vunpack.c.l.b16 %v5257
        %v5387 = vunpack.c.l.b16 %v5258
        %v5388 = vunpack.c.l.b16 %v5259
        %v5389 = vunpack.c.l.b16 %v5260
        %v5390 = vunpack.c.l.b16 %v5261
        %v5391 = vunpack.c.l.b16 %v5262
        %v5392 = vunpack.c.l.b16 %v5263
        %v5393 = vunpack.c.l.b16 %v5264
        %v5394 = vunpack.c.l.b16 %v5265
        %v5395 = vunpack.c.l.b16 %v5266
        %v5396 = vpack.c.b16 %v5333, %v5332
        %v5397 = vpack.c.b16 %v5335, %v5334
        %v5398 = vpack.c.b16 %v5337, %v5336
        %v5399 = vpack.c.b16 %v5339, %v5338
        %v5400 = vpack.c.b16 %v5341, %v5340
        %v5401 = vpack.c.b16 %v5343, %v5342
        %v5402 = vpack.c.b16 %v5345, %v5344
        %v5403 = vpack.c.b16 %v5347, %v5346
        %v5404 = vpack.c.b16 %v5349, %v5348
        %v5405 = vpack.c.b16 %v5351, %v5350
        %v5406 = vpack.c.b16 %v5353, %v5352
        %v5407 = vpack.c.b16 %v5355, %v5354
        %v5408 = vpack.c.b16 %v5357, %v5356
        %v5409 = vpack.c.b16 %v5359, %v5358
        %v5410 = vpack.c.b16 %v5361, %v5360
        %v5411 = vpack.c.b16 %v5363, %v5362
        %v5412 = vpack.c.b16 %v5365, %v5364
        %v5413 = vpack.c.b16 %v5367, %v5366
        %v5414 = vpack.c.b16 %v5369, %v5368
        %v5415 = vpack.c.b16 %v5371, %v5370
        %v5416 = vpack.c.b16 %v5373, %v5372
        %v5417 = vpack.c.b16 %v5375, %v5374
        %v5418 = vpack.c.b16 %v5377, %v5376
        %v5419 = vpack.c.b16 %v5379, %v5378
        %v5420 = vpack.c.b16 %v5381, %v5380
        %v5421 = vpack.c.b16 %v5383, %v5382
        %v5422 = vpack.c.b16 %v5385, %v5384
        %v5423 = vpack.c.b16 %v5387, %v5386
        %v5424 = vpack.c.b16 %v5389, %v5388
        %v5425 = vpack.c.b16 %v5391, %v5390
        %v5426 = vpack.c.b16 %v5393, %v5392
        %v5427 = vpack.c.b16 %v5395, %v5394
        %5460 = vmatprep.subr.bf16.mxu0 0
        %5461 = vmatpush1.bf16.msra.mxu0 %v5403
        %5462 = vmatprep.subr.bf16.mxu0 0
        %5463 = vmatpush1.bf16.msra.mxu0 %v5402
        %5464 = vmatprep.subr.bf16.mxu0 0
        %5465 = vmatpush1.bf16.msra.mxu0 %v5401
        %5466 = vmatprep.subr.bf16.mxu0 0
        %5467 = vmatpush1.bf16.msra.mxu0 %v5400
        %5468 = vmatprep.subr.bf16.mxu0 0
        %5469 = vmatpush1.bf16.msra.mxu0 %v5399
        %5470 = vmatprep.subr.bf16.mxu0 0
        %5471 = vmatpush1.bf16.msra.mxu0 %v5398
        %5472 = vmatprep.subr.bf16.mxu0 0
        %5473 = vmatpush1.bf16.msra.mxu0 %v5397
        %5474 = vmatprep.subr.bf16.mxu0 0
        %5475 = vmatpush1.bf16.msra.mxu0 %v5396
        %5476 = vmatprep.subr.bf16.mxu0 0
        %5477 = vmatpush2.bf16.msra.mxu0 %v5411
        %5478 = vmatprep.subr.bf16.mxu0 0
        %5479 = vmatpush2.bf16.msra.mxu0 %v5410
        %5480 = vmatprep.subr.bf16.mxu0 0
        %5481 = vmatpush2.bf16.msra.mxu0 %v5409
        %5482 = vmatprep.subr.bf16.mxu0 0
        %5483 = vmatpush2.bf16.msra.mxu0 %v5408
        %5484 = vmatprep.subr.bf16.mxu0 0
        %5485 = vmatpush2.bf16.msra.mxu0 %v5407
        %5486 = vmatprep.subr.bf16.mxu0 0
        %5487 = vmatpush2.bf16.msra.mxu0 %v5406
        %5488 = vmatprep.subr.bf16.mxu0 0
        %5489 = vmatpush2.bf16.msra.mxu0 %v5405
        %5490 = vmatprep.subr.bf16.mxu0 0
        %5491 = vmatpush2.bf16.msra.mxu0 %v5404
        %5492 = vmatprep.mubr.bf16.mxu0 %v5200
        %5493 = vmatmul.mubr.bf16.gmra.mxu0 %v5199
        %v5494 = vpop.f32.mrf.mxu0
        %v5495 = vadd.f32 %v5267, %v5494
        %v5496 = vpop.f32.mrf.mxu0
        %v5497 = vpop.f32.mrf.mxu0
        %v5498 = vpop.f32.mrf.mxu0
        %5499 = vdwg.mxu0
        %5500 = vmatprep.subr.bf16.mxu0 0
        %5501 = vmatpush1.bf16.msra.mxu0 %v5419
        %5502 = vmatprep.subr.bf16.mxu0 0
        %5503 = vmatpush1.bf16.msra.mxu0 %v5418
        %5504 = vmatprep.subr.bf16.mxu0 0
        %5505 = vmatpush1.bf16.msra.mxu0 %v5417
        %5506 = vmatprep.subr.bf16.mxu0 0
        %5507 = vmatpush1.bf16.msra.mxu0 %v5416
        %5508 = vmatprep.subr.bf16.mxu0 0
        %5509 = vmatpush1.bf16.msra.mxu0 %v5415
        %5510 = vmatprep.subr.bf16.mxu0 0
        %5511 = vmatpush1.bf16.msra.mxu0 %v5414
        %5512 = vmatprep.subr.bf16.mxu0 0
        %5513 = vmatpush1.bf16.msra.mxu0 %v5413
        %5514 = vmatprep.subr.bf16.mxu0 0
        %5515 = vmatpush1.bf16.msra.mxu0 %v5412
        %5516 = vmatprep.subr.bf16.mxu0 0
        %5517 = vmatpush2.bf16.msra.mxu0 %v5427
        %5518 = vmatprep.subr.bf16.mxu0 0
        %5519 = vmatpush2.bf16.msra.mxu0 %v5426
        %5520 = vmatprep.subr.bf16.mxu0 0
        %5521 = vmatpush2.bf16.msra.mxu0 %v5425
        %5522 = vmatprep.subr.bf16.mxu0 0
        %5523 = vmatpush2.bf16.msra.mxu0 %v5424
        %5524 = vmatprep.subr.bf16.mxu0 0
        %5525 = vmatpush2.bf16.msra.mxu0 %v5423
        %5526 = vmatprep.subr.bf16.mxu0 0
        %5527 = vmatpush2.bf16.msra.mxu0 %v5422
        %5528 = vmatprep.subr.bf16.mxu0 0
        %5529 = vmatpush2.bf16.msra.mxu0 %v5421
        %5530 = vmatprep.subr.bf16.mxu0 0
        %5531 = vmatpush2.bf16.msra.mxu0 %v5420
        %5532 = vmatprep.mubr.bf16.mxu0 %v5202
        %5533 = vmatmul.mubr.bf16.gmra.mxu0 %v5201
        %v5534 = vpop.f32.mrf.mxu0
        %v5535 = vadd.f32 %v5495, %v5534
        %v5536 = vpop.f32.mrf.mxu0
        %v5537 = vpop.f32.mrf.mxu0
        %v5538 = vpop.f32.mrf.mxu0
        %5539 = vdwg.mxu0
        %5540 = vst [vmem:[%s535] sm:$0x1] %v5535
        %p5541 = scmp.lt.s32.totalorder %s32, 1
        %s5542 = scalar_select %p5541, %s32, 1
        %s5543 = smul.addr %s5542, 4
        %s5544 = scalar_lea.vmem %s11, %s5543
        %s5545 = sand.u32 %s302, 1
        %s5546 = scalar_lea.sflag [#allocation4], %s5545
        %s5547 = sand.u32 %s302, 1
        %s5548 = scalar_lea.vmem [#allocation17], %s5547
        // Predicated region
        $region101: #{testnet_forward.1} parent=63 // pred_check
          %p5549 = pneg %p286
        $region102: #{testnet_forward.1} parent=63 // pred_check_branch
          %5551 = sbr.rel (%p5549) target = $region104
        $region103: #{testnet_forward.1} parent=63 // pred_region
          _
        $region104: #{testnet_forward.1} parent=63 // pred_fallthru
          _
        // Predicated region
        $region105: #{testnet_forward.1} parent=63 // pred_check
          %p5552 = pneg %p312
        $region106: #{testnet_forward.1} parent=63 // pred_check_branch
          %5554 = sbr.rel (%p5552) target = $region108
        $region107: #{testnet_forward.1} parent=63 // pred_region
          %s5556 = ssub.s32 16, 16
          %5557 = vsyncadd %s5546, %s5556
          %s5558 = smul.addr %s32, 16
          %s5559 = scalar_lea.hbm %s12, %s5558
          %s5561 = sshll.u32 %s5548, 4
          %s5562 = int_to_ptr.vmem [resolvable:$true] %s5561
          %5564 = dma.vmem_to_hbm [thread:$0]  %s5562, 16, %s5559, %s5546
        $region108: #{testnet_forward.1} parent=63 // pred_fallthru
          _
      $region64: #{testnet_forward.1} parent=5 // pred_fallthru
        _
      %p5565 = scmp.le.s32.totalorder 2, %s27
      // Predicated region
      $region109: #{testnet_forward.1} parent=5 // pred_check
        %p5566 = pneg %p5565
      $region110: #{testnet_forward.1} parent=5 // pred_check_branch
        %5568 = sbr.rel (%p5566) target = $region112
      $region111: #{testnet_forward.1} parent=5 // pred_region
        %s5569 = ssub.s32 %s27, 2
        // Predicated region
        $region113: #{testnet_forward.1} parent=111 // pred_check
          %p5570 = pneg %p292
        $region114: #{testnet_forward.1} parent=111 // pred_check_branch
          %5572 = sbr.rel (%p5570) target = $region116
        $region115: #{testnet_forward.1} parent=111 // pred_region
          %p5573 = scmp.lt.s32.totalorder %s33, 1
          %s5574 = scalar_select %p5573, %s33, 1
          %s5575 = smul.addr %s5574, 4
          %s5576 = scalar_lea.vmem %s11, %s5575
        $region116: #{testnet_forward.1} parent=111 // pred_fallthru
          _
        // Predicated region
        $region117: #{testnet_forward.1} parent=111 // pred_check
          %p5577 = pneg %p318
        $region118: #{testnet_forward.1} parent=111 // pred_check_branch
          %5579 = sbr.rel (%p5577) target = $region120
        $region119: #{testnet_forward.1} parent=111 // pred_region
          %s5580 = sand.u32 %s303, 1
          %s5581 = scalar_lea.sflag [#allocation4], %s5580
          %s5582 = sand.u32 %s303, 1
          %s5583 = scalar_lea.vmem [#allocation17], %s5582
          %5584 = dma.done %s5581, 16
        $region120: #{testnet_forward.1} parent=111 // pred_fallthru
          _
      $region112: #{testnet_forward.1} parent=5 // pred_fallthru
        _
    $region6: #{testnet_forward.1} parent=1 // loop_footer
      %s31 = sadd.s32 1, %s27
    $region7: #{testnet_forward.1} parent=1 // loop_footer_branch
      %26 = sbr.rel target = $region3
    $region8: #{testnet_forward.1} parent=1 // loop_exit
      _
    %5585 = vsyncpa [#allocation3], 1
    %s5586 = scalar_lea.sflag [#allocation3], 1
    %5587 = vsyncpa %s5586, 1
    %5588 = vsyncpa [#allocation6], 1
    %5589 = vsyncpa [#allocation9], 1
    %5590 = vsyncpa [#allocation12], 1
    %5591 = vsyncpa [#allocation15], 1
    %5592 = vsyncpa [#allocation4], 1
    %s5593 = scalar_lea.sflag [#allocation4], 1
    %5594 = vsyncpa %s5593, 1

</llo_original>
